<compile_context>
chip_gen: v7x
topology: tpu7x:2x2x1
jax: 0.10.0
libtpu: 0.0.40
codegen_flags: <defaults>
</compile_context>

<pallas_src>
import math

import jax
import jax.numpy as jnp
from jax import lax
from jax.experimental import pallas as pl
from jax.experimental.pallas import tpu as pltpu
from jax.scipy.special import gammaln, digamma, polygamma

EPS_NCE = 1e-9           # EPISILON in the reference
NCE_TEMPERATURE = 0.1
TARGET_CON = 1.0
FISHER_C = 1.0


# ----------------------------- Pallas kernel --------------------------------

def _linear(x, w_ref, b_ref):
    w = w_ref[...]
    # weights arrive as bf16; cast the activation so the MXU runs native bf16,
    # accumulate in f32.
    return jnp.dot(x.astype(w.dtype), w,
                   preferred_element_type=jnp.float32) + b_ref[...]


def _l2norm(x, eps=1e-12):
    # F.normalize(x, p=2, dim=1)  ==  x / max(||x||, eps)
    ss = jnp.sum(x * x, axis=1, keepdims=True)
    return x * lax.rsqrt(jnp.maximum(ss, eps * eps))


def albef_kernel(img_emb, txt_emb, tgt_col, tgt_row,
                 im_w, im_b, txt_w, txt_b, ch_w2, ch_b2,
                 bc_w0, bc_b0, bc_w1, bc_b1, bc_w2, bc_b2,
                 bc_h1w, bc_h1b, bc_h2w, bc_h2b,
                 vec_o, scal_o):
    ie = img_emb[...]            # (B, 768) f32
    te = txt_emb[...]            # (B, 768) f32
    B = ie.shape[0]

    # image_map + L2 normalize
    img_f = _l2norm(_linear(ie, im_w, im_b))             # (B, 64)

    # fused text path: one (768, 832) matmul = [cls_head.0 | text_map]
    y = _linear(te, txt_w, txt_b)                        # (B, 832)
    h = jnp.maximum(y[:, 0:768], 0.0)                    # cls_head Linear+ReLU
    txt_f = _l2norm(y[:, 768:832])                       # text_map + normalize

    # cls_head 768->1 as VPU multiply + lane reduce (no N=1 matmul)
    logits = jnp.sum(h * ch_w2[...], axis=1, keepdims=True) + ch_b2[...]   # (B,1)
    proxy = 1.0 / (1.0 + jnp.exp(-logits))               # sigmoid

    # -------- fused (block-diagonal) image+text BayesCap MLPs ---------------
    x_cat = jnp.concatenate([img_f, txt_f], axis=1)      # (B, 128)
    h0 = jnp.maximum(_linear(x_cat, bc_w0, bc_b0), 0.0)  # Linear(64,32)x2 + ReLU
    h1m = jnp.maximum(_linear(h0, bc_w1, bc_b1), 0.0)    # Linear(32,32)x2 + ReLU
    # TODO(synk): Dropout(p=0.1) in BayesCap_MLP is treated as identity (no RNG).
    x_intr = _linear(h1m, bc_w2, bc_b2) + x_cat          # Linear(32,64)x2 + residual
    h1 = jnp.maximum(_linear(x_intr, bc_h1w, bc_h1b), 0.0)   # heads 1st layers (B,384)
    h2 = _linear(h1, bc_h2w, bc_h2b)                          # heads 2nd layers (B,384)
    # layout: [img_mu | img_1alpha | img_beta | txt_mu | txt_1alpha | txt_beta]
    # block_alpha / block_beta end with ReLU, block_mu does not.
    lane = lax.broadcasted_iota(jnp.int32, h2.shape, 1)
    relu_mask = ((lane >= 64) & (lane < 192)) | (lane >= 256)
    h2 = jnp.where(relu_mask, jnp.maximum(h2, 0.0), h2)

    # -------- NCE loss -------------------------------------------------------
    # img_f/txt_f are unit-norm, so 1 - 0.5*||f1_i - f2_j||^2 == f1_i . f2_j.
    cos = lax.dot_general(img_f, txt_f, (((1,), (1,)), ((), ())),
                          preferred_element_type=jnp.float32)      # (B, B)
    sm = ((tgt_col[...] - tgt_row[...]) != 0.0).astype(jnp.float32)  # (B, B)
    z = cos * (1.0 / NCE_TEMPERATURE)
    zs = z - jnp.max(z, axis=1, keepdims=True)
    e = jnp.exp(zs)
    rowsum = jnp.sum(e, axis=1, keepdims=True)                     # (B, 1)
    p_sm = e * pl.reciprocal(rowsum, approx=True)                  # softmax(dim=1)
    log_p = zs - jnp.log(rowsum)                                   # log-softmax
    log_pos = -log_p * (1.0 - sm)
    log_neg = -jnp.log(1.0 - p_sm + EPS_NCE) * sm
    denom = jnp.sum(1.0 - sm, axis=1, keepdims=True)
    log_sm = (jnp.sum(log_pos, axis=1, keepdims=True)
              + jnp.sum(log_neg, axis=1, keepdims=True)) / denom   # (B, 1)

    # BCEWithLogitsLoss per-element values
    y_t = tgt_col[...]
    bce_el = (jnp.maximum(logits, 0.0) - logits * y_t
              + jnp.log1p(jnp.exp(-jnp.abs(logits))))              # (B, 1)

    # -------- lane-dense packed outputs (static sub-slice stores) -----------
    vec_o[:, 0:64] = img_f
    vec_o[:, 64:128] = txt_f
    vec_o[:, 128:512] = h2

    lane128 = lax.broadcasted_iota(jnp.int32, (B, 128), 1)
    scal = (jnp.where(lane128 == 0, logits, 0.0)
            + jnp.where(lane128 == 1, proxy, 0.0)
            + jnp.where(lane128 == 2, bce_el, 0.0)
            + jnp.where(lane128 == 3, log_sm, 0.0))
    scal_o[...] = scal                                             # (B, 128)


# ----------------------------- plain-JAX glue --------------------------------

def _scatter_dim0(base, idx, value):
    """torch.Tensor.scatter_(0, idx.unsqueeze(-1), value) for a (B, C) tensor."""
    idx2 = idx.reshape(-1, 1)
    cols = jnp.broadcast_to(jnp.arange(base.shape[1]), idx2.shape)
    return base.at[idx2, cols].set(value)


def compute_fisher_mse(labels_1hot, evi_alp):
    evi_alp0 = jnp.sum(evi_alp, axis=-1, keepdims=True)
    g1_alp = polygamma(1, evi_alp)
    g1_alp0 = polygamma(1, evi_alp0)
    gap = labels_1hot - evi_alp / evi_alp0
    loss_mse = jnp.mean(jnp.sum(gap ** 2 * g1_alp, axis=-1))
    loss_var = jnp.mean(jnp.sum(
        evi_alp * (evi_alp0 - evi_alp) * g1_alp
        / (evi_alp0 * evi_alp0 * (evi_alp0 + 1.0)), axis=-1))
    loss_det_fisher = -jnp.mean(
        jnp.sum(jnp.log(g1_alp), axis=-1)
        + jnp.log(jnp.sum(g1_alp0 / g1_alp, axis=-1)))
    return loss_mse, loss_var, loss_det_fisher


def compute_kl_loss(alphas, labels, target_concentration,
                    concentration=1.0, epsilon=1e-8):
    if target_concentration < 1.0:
        concentration = target_concentration
    target_alphas = jnp.ones_like(alphas) * concentration
    target_alphas = target_alphas + _scatter_dim0(
        jnp.zeros_like(alphas), labels, target_concentration - 1.0)
    alp0 = jnp.sum(alphas, axis=-1, keepdims=True)
    t_alp0 = jnp.sum(target_alphas, axis=-1, keepdims=True)
    alp0_term = gammaln(alp0 + epsilon) - gammaln(t_alp0 + epsilon)
    alp0_term = jnp.where(jnp.isfinite(alp0_term), alp0_term,
                          jnp.zeros_like(alp0_term))
    alphas_term = jnp.sum(
        gammaln(target_alphas + epsilon) - gammaln(alphas + epsilon)
        + (alphas - target_alphas)
        * (digamma(alphas + epsilon) - digamma(alp0 + epsilon)),
        axis=-1, keepdims=True)
    alphas_term = jnp.where(jnp.isfinite(alphas_term), alphas_term,
                            jnp.zeros_like(alphas_term))
    return jnp.mean(jnp.squeeze(alp0_term + alphas_term))


# ----------------------------- params & packing ------------------------------

def _init_linear(key, fan_in, fan_out):
    k1, k2 = jax.random.split(key)
    bound = 1.0 / math.sqrt(fan_in)
    w = jax.random.uniform(k1, (fan_in, fan_out), jnp.float32, -bound, bound)
    b = jax.random.uniform(k2, (1, fan_out), jnp.float32, -bound, bound)
    return w, b


def _init_bayescap(keys):
    """Per-modality BayesCap params with per-head fusion already applied."""
    m0w, m0b = _init_linear(next(keys), 64, 32)
    m1w, m1b = _init_linear(next(keys), 32, 32)
    m2w, m2b = _init_linear(next(keys), 32, 64)
    mu0w, mu0b = _init_linear(next(keys), 64, 64)
    mu1w, mu1b = _init_linear(next(keys), 64, 64)
    a0w, a0b = _init_linear(next(keys), 64, 64)
    a1w, a1b = _init_linear(next(keys), 64, 64)
    b0w, b0b = _init_linear(next(keys), 64, 64)
    b1w, b1b = _init_linear(next(keys), 64, 64)
    # fused first layers of the three heads: (64, 192)
    h1w = jnp.concatenate([mu0w, a0w, b0w], axis=1)
    h1b = jnp.concatenate([mu0b, a0b, b0b], axis=1)
    # fused (block-diagonal) second layers: (192, 192)
    h2w = jnp.zeros((192, 192), jnp.float32)
    h2w = h2w.at[0:64, 0:64].set(mu1w)
    h2w = h2w.at[64:128, 64:128].set(a1w)
    h2w = h2w.at[128:192, 128:192].set(b1w)
    h2b = jnp.concatenate([mu1b, a1b, b1b], axis=1)
    return [m0w, m0b, m1w, m1b, m2w, m2b, h1w, h1b, h2w, h2b]


def init_params(key):
    keys = iter(jax.random.split(key, 32))
    p = {}
    p['image_map'] = list(_init_linear(next(keys), 768, 64))
    p['text_map'] = list(_init_linear(next(keys), 768, 64))
    p['cls1'] = list(_init_linear(next(keys), 768, 768))
    p['cls2'] = list(_init_linear(next(keys), 768, 1))
    p['img_bc'] = _init_bayescap(keys)
    p['txt_bc'] = _init_bayescap(keys)
    return p


def _blockdiag(a, b):
    ra, ca = a.shape
    rb, cb = b.shape
    out = jnp.zeros((ra + rb, ca + cb), a.dtype)
    return out.at[:ra, :ca].set(a).at[ra:, ca:].set(b)


def prepare_params(params):
    """One-time weight packing: fusion + bf16 cast, hoisted out of the step."""
    bf16 = jnp.bfloat16
    im_w, im_b = params['image_map']
    tm_w, tm_b = params['text_map']
    ch_w1, ch_b1 = params['cls1']
    ch_w2, ch_b2 = params['cls2']

    # fused text-path weight: [cls_head.0 (768,768) | text_map (768,64)]
    txt_w = jnp.concatenate([ch_w1, tm_w], axis=1).astype(bf16)   # (768, 832)
    txt_b = jnp.concatenate([ch_b1, tm_b], axis=1)                # (1, 832)

    # fused (block-diagonal across modalities) BayesCap weights
    ibc, tbc = params['img_bc'], params['txt_bc']
    bc = []
    for i in range(0, 10, 2):
        bc.append(_blockdiag(ibc[i], tbc[i]).astype(bf16))
        bc.append(jnp.concatenate([ibc[i + 1], tbc[i + 1]], axis=1))

    packed = {
        'img_w': im_w.astype(bf16), 'img_b': im_b,
        'txt_w': txt_w, 'txt_b': txt_b,
        'cls2_w': ch_w2.reshape(1, 768), 'cls2_b': ch_b2,   # VPU path, keep f32
        'bc': bc,
    }
    return jax.tree_util.tree_map(lambda x: x, packed)


# --------------------------------- wrapper ------------------------------------

def albef_forward(image_embeds_cls, text_embeds_cls, targets, packed, train=True):
    B = image_embeds_cls.shape[0]
    # TODO(synk): for throughput, pad/stack B up to >=8 (ideally 128+) before the
    # call; the kernel cost is dominated by weight DMA and is ~independent of B.
    tgt_f = targets.astype(jnp.float32)
    tgt_col = tgt_f[:, None]        # (B, 1)
    tgt_row = tgt_f[None, :]        # (1, B)

    inputs = [image_embeds_cls, text_embeds_cls, tgt_col, tgt_row,
              packed['img_w'], packed['img_b'],
              packed['txt_w'], packed['txt_b'],
              packed['cls2_w'], packed['cls2_b'],
              *packed['bc']]

    f32 = jnp.float32
    out_shapes = (
        jax.ShapeDtypeStruct((B, 512), f32),   # [img_f|txt_f|img_bc(192)|txt_bc(192)]
        jax.ShapeDtypeStruct((B, 128), f32),   # [logits|proxy|bce_el|nce_row|pad]
    )

    def full_spec(shape):
        nd = len(shape)
        return pl.BlockSpec(shape, lambda i, nd=nd: (0,) * nd)

    in_specs = [full_spec(x.shape) for x in inputs]
    out_specs = tuple(full_spec(s.shape) for s in out_shapes)

    vec, scal = pl.pallas_call(
        albef_kernel,
        out_shape=out_shapes,
        grid=(1,),
        in_specs=in_specs,
        out_specs=out_specs,
        compiler_params=pltpu.CompilerParams(
            dimension_semantics=("arbitrary",),
            vmem_limit_bytes=16 << 20),
    )(*inputs)

    image_features = vec[:, 0:64]
    text_features = vec[:, 64:128]
    img_mu, img_1alpha, img_beta = vec[:, 128:192], vec[:, 192:256], vec[:, 256:320]
    txt_mu, txt_1alpha, txt_beta = vec[:, 320:384], vec[:, 384:448], vec[:, 448:512]

    logits = scal[:, 0:1]
    preds_proxy = scal[:, 1:2]
    bce_loss_val = jnp.mean(scal[:, 2])
    nce_loss_val = jnp.mean(scal[:, 3])

    # outer-product "features": unused downstream (as in reference), plain XLA.
    features = (image_features[:, :, None] * text_features[:, None, :]).reshape(B, -1)

    preds = (preds_proxy >= 0.5).astype(jnp.int32)

    loss_cl = 0.0
    grad_loss = 0.0
    nce = 0.0
    if train:
        # TODO(synk): TempCombLoss (self.Cri) is not provided in the reference module;
        # BayesCap outputs are computed, but loss_cl is left at 0.
        loss_cl = 0.0

        evi_alp = jax.nn.softplus(logits) + 1.0
        # torch.zeros_like(logits).scatter_(0, targets.unsqueeze(-1), 0) == zeros
        labels_1hot = _scatter_dim0(jnp.zeros_like(logits), targets, 0.0)
        loss_mse, loss_var, loss_fisher = compute_fisher_mse(labels_1hot, evi_alp)
        evi_alp = (evi_alp - TARGET_CON) * (1.0 - labels_1hot) + TARGET_CON
        loss_kl = compute_kl_loss(evi_alp, targets, TARGET_CON)
        grad_loss = loss_mse + loss_var + FISHER_C * loss_fisher + 1.0 * loss_kl
        nce = nce_loss_val

    loss = bce_loss_val + 1e-4 * loss_cl + 0.1 * grad_loss + 0.01 * nce
    return {
        'loss': loss,
        'preds': preds,
        'preds_proxy': preds_proxy,
        # extra (for inspection):
        'image_features': image_features,
        'text_features': text_features,
        'features': features,
        'logits': logits,
        'img_bayescap': (img_mu, img_1alpha, img_beta),
        'txt_bayescap': (txt_mu, txt_1alpha, txt_beta),
    }


# ----------------------------------- main ------------------------------------

if __name__ == "__main__":
    key = jax.random.PRNGKey(0)
    k_img, k_txt, k_tgt, k_par = jax.random.split(key, 4)

    B = 2
    # TODO(synk): VisionTransformer / BertModel encoders are external to this module's
    # provided dependencies; their CLS embeddings are synthesized as kernel inputs.
    image_embeds_cls = jax.random.normal(k_img, (B, 768), jnp.float32)
    text_embeds_cls = jax.random.normal(k_txt, (B, 768), jnp.float32)
    targets = jax.random.randint(k_tgt, (B,), 0, 2)

    params = init_params(k_par)
    packed = prepare_params(params)          # one-time fusion + bf16 cast
    packed = jax.block_until_ready(packed)

    out = albef_forward(image_embeds_cls, text_embeds_cls, targets, packed, train=True)
    jax.block_until_ready(out['loss'])
    jax.block_until_ready(out['preds'])
    jax.block_until_ready(out['preds_proxy'])
    print("KERNEL_OK")
</pallas_src>

<mosaic_0001>
module attributes {stable_mosaic.version = 11 : i64} {
  func.func @albef_kernel(%arg0: i32, %arg1: memref<2x768xf32, #tpu.memory_space<vmem>>, %arg2: memref<2x768xf32, #tpu.memory_space<vmem>>, %arg3: memref<2x1xf32, #tpu.memory_space<vmem>>, %arg4: memref<1x2xf32, #tpu.memory_space<vmem>>, %arg5: memref<768x64xbf16, #tpu.memory_space<vmem>>, %arg6: memref<1x64xf32, #tpu.memory_space<vmem>>, %arg7: memref<768x832xbf16, #tpu.memory_space<vmem>>, %arg8: memref<1x832xf32, #tpu.memory_space<vmem>>, %arg9: memref<1x768xf32, #tpu.memory_space<vmem>>, %arg10: memref<1x1xf32, #tpu.memory_space<vmem>>, %arg11: memref<128x64xbf16, #tpu.memory_space<vmem>>, %arg12: memref<1x64xf32, #tpu.memory_space<vmem>>, %arg13: memref<64x64xbf16, #tpu.memory_space<vmem>>, %arg14: memref<1x64xf32, #tpu.memory_space<vmem>>, %arg15: memref<64x128xbf16, #tpu.memory_space<vmem>>, %arg16: memref<1x128xf32, #tpu.memory_space<vmem>>, %arg17: memref<128x384xbf16, #tpu.memory_space<vmem>>, %arg18: memref<1x384xf32, #tpu.memory_space<vmem>>, %arg19: memref<384x384xbf16, #tpu.memory_space<vmem>>, %arg20: memref<1x384xf32, #tpu.memory_space<vmem>>, %arg21: memref<2x512xf32, #tpu.memory_space<vmem>>, %arg22: memref<2x128xf32, #tpu.memory_space<vmem>>) attributes {dimension_semantics = [#tpu.dimension_semantics<arbitrary>], iteration_bounds = array<i64: 1>, scalar_prefetch = 0 : i64, scratch_operands = 0 : i64, tpu.core_type = #tpu.core_type<tc>, window_params = [{pipeline_mode = #tpu.pipeline_mode<synchronous>, transform_indices = @transform_0, window_bounds = array<i64: 2, 768>}, {pipeline_mode = #tpu.pipeline_mode<synchronous>, transform_indices = @transform_1, window_bounds = array<i64: 2, 768>}, {pipeline_mode = #tpu.pipeline_mode<synchronous>, transform_indices = @transform_2, window_bounds = array<i64: 2, 1>}, {pipeline_mode = #tpu.pipeline_mode<synchronous>, transform_indices = @transform_3, window_bounds = array<i64: 1, 2>}, {pipeline_mode = #tpu.pipeline_mode<synchronous>, transform_indices = @transform_4, window_bounds = array<i64: 768, 64>}, {pipeline_mode = #tpu.pipeline_mode<synchronous>, transform_indices = @transform_5, window_bounds = array<i64: 1, 64>}, {pipeline_mode = #tpu.pipeline_mode<synchronous>, transform_indices = @transform_6, window_bounds = array<i64: 768, 832>}, {pipeline_mode = #tpu.pipeline_mode<synchronous>, transform_indices = @transform_7, window_bounds = array<i64: 1, 832>}, {pipeline_mode = #tpu.pipeline_mode<synchronous>, transform_indices = @transform_8, window_bounds = array<i64: 1, 768>}, {pipeline_mode = #tpu.pipeline_mode<synchronous>, transform_indices = @transform_9, window_bounds = array<i64: 1, 1>}, {pipeline_mode = #tpu.pipeline_mode<synchronous>, transform_indices = @transform_10, window_bounds = array<i64: 128, 64>}, {pipeline_mode = #tpu.pipeline_mode<synchronous>, transform_indices = @transform_11, window_bounds = array<i64: 1, 64>}, {pipeline_mode = #tpu.pipeline_mode<synchronous>, transform_indices = @transform_12, window_bounds = array<i64: 64, 64>}, {pipeline_mode = #tpu.pipeline_mode<synchronous>, transform_indices = @transform_13, window_bounds = array<i64: 1, 64>}, {pipeline_mode = #tpu.pipeline_mode<synchronous>, transform_indices = @transform_14, window_bounds = array<i64: 64, 128>}, {pipeline_mode = #tpu.pipeline_mode<synchronous>, transform_indices = @transform_15, window_bounds = array<i64: 1, 128>}, {pipeline_mode = #tpu.pipeline_mode<synchronous>, transform_indices = @transform_16, window_bounds = array<i64: 128, 384>}, {pipeline_mode = #tpu.pipeline_mode<synchronous>, transform_indices = @transform_17, window_bounds = array<i64: 1, 384>}, {pipeline_mode = #tpu.pipeline_mode<synchronous>, transform_indices = @transform_18, window_bounds = array<i64: 384, 384>}, {pipeline_mode = #tpu.pipeline_mode<synchronous>, transform_indices = @transform_19, window_bounds = array<i64: 1, 384>}, {pipeline_mode = #tpu.pipeline_mode<synchronous>, transform_indices = @transform_20, window_bounds = array<i64: 2, 512>}, {pipeline_mode = #tpu.pipeline_mode<synchronous>, transform_indices = @transform_21, window_bounds = array<i64: 2, 128>}]} {
    %c0 = arith.constant 0 : index
    %c0_0 = arith.constant 0 : index
    %0 = vector.load %arg1[%c0, %c0_0] : memref<2x768xf32, #tpu.memory_space<vmem>>, vector<2x768xf32>
    %c0_1 = arith.constant 0 : index
    %c0_2 = arith.constant 0 : index
    %1 = vector.load %arg2[%c0_1, %c0_2] : memref<2x768xf32, #tpu.memory_space<vmem>>, vector<2x768xf32>
    %c0_3 = arith.constant 0 : index
    %c0_4 = arith.constant 0 : index
    %2 = vector.load %arg5[%c0_3, %c0_4] : memref<768x64xbf16, #tpu.memory_space<vmem>>, vector<768x64xbf16>
    %3 = arith.truncf %0 : vector<2x768xf32> to vector<2x768xbf16>
    %cst = arith.constant dense<0.000000e+00> : vector<2x64xf32>
    %4 = tpu.matmul %3, %2, %cst {dimension_numbers = #tpu.dot_dimension_numbers<[1], [0], [0], [1], [0, 0, 1, 1], [], []>} : vector<2x768xbf16>, vector<768x64xbf16>, vector<2x64xf32> -> vector<2x64xf32>
    %c0_5 = arith.constant 0 : index
    %c0_6 = arith.constant 0 : index
    %5 = vector.load %arg6[%c0_5, %c0_6] : memref<1x64xf32, #tpu.memory_space<vmem>>, vector<1x64xf32>
    %6 = vector.broadcast %5 : vector<1x64xf32> to vector<2x64xf32>
    %7 = arith.addf %4, %6 : vector<2x64xf32>
    %8 = arith.mulf %7, %7 : vector<2x64xf32>
    %cst_7 = arith.constant dense<0.000000e+00> : vector<2xf32>
    %9 = vector.multi_reduction <add>, %8, %cst_7 [1] : vector<2x64xf32> to vector<2xf32>
    %10 = vector.shape_cast %9 : vector<2xf32> to vector<2x1xf32>
    %cst_8 = arith.constant 1.000000e-24 : f32
    %11 = vector.broadcast %cst_8 : f32 to vector<2x1xf32>
    %12 = arith.maximumf %10, %11 : vector<2x1xf32>
    %13 = math.rsqrt %12 : vector<2x1xf32>
    %14 = vector.broadcast %13 : vector<2x1xf32> to vector<2x64xf32>
    %15 = arith.mulf %7, %14 : vector<2x64xf32>
    %c0_9 = arith.constant 0 : index
    %c0_10 = arith.constant 0 : index
    %16 = vector.load %arg7[%c0_9, %c0_10] : memref<768x832xbf16, #tpu.memory_space<vmem>>, vector<768x832xbf16>
    %17 = arith.truncf %1 : vector<2x768xf32> to vector<2x768xbf16>
    %cst_11 = arith.constant dense<0.000000e+00> : vector<2x832xf32>
    %18 = tpu.matmul %17, %16, %cst_11 {dimension_numbers = #tpu.dot_dimension_numbers<[1], [0], [0], [1], [0, 0, 1, 1], [], []>} : vector<2x768xbf16>, vector<768x832xbf16>, vector<2x832xf32> -> vector<2x832xf32>
    %c0_12 = arith.constant 0 : index
    %c0_13 = arith.constant 0 : index
    %19 = vector.load %arg8[%c0_12, %c0_13] : memref<1x832xf32, #tpu.memory_space<vmem>>, vector<1x832xf32>
    %20 = vector.broadcast %19 : vector<1x832xf32> to vector<2x832xf32>
    %21 = arith.addf %18, %20 : vector<2x832xf32>
    %22 = vector.extract_strided_slice %21 {offsets = [0, 0], sizes = [2, 768], strides = [1, 1]} : vector<2x832xf32> to vector<2x768xf32>
    %cst_14 = arith.constant 0.000000e+00 : f32
    %23 = vector.broadcast %cst_14 : f32 to vector<2x768xf32>
    %24 = arith.maximumf %22, %23 : vector<2x768xf32>
    %25 = vector.extract_strided_slice %21 {offsets = [0, 768], sizes = [2, 64], strides = [1, 1]} : vector<2x832xf32> to vector<2x64xf32>
    %26 = arith.mulf %25, %25 : vector<2x64xf32>
    %cst_15 = arith.constant dense<0.000000e+00> : vector<2xf32>
    %27 = vector.multi_reduction <add>, %26, %cst_15 [1] : vector<2x64xf32> to vector<2xf32>
    %28 = vector.shape_cast %27 : vector<2xf32> to vector<2x1xf32>
    %cst_16 = arith.constant 1.000000e-24 : f32
    %29 = vector.broadcast %cst_16 : f32 to vector<2x1xf32>
    %30 = arith.maximumf %28, %29 : vector<2x1xf32>
    %31 = math.rsqrt %30 : vector<2x1xf32>
    %32 = vector.broadcast %31 : vector<2x1xf32> to vector<2x64xf32>
    %33 = arith.mulf %25, %32 : vector<2x64xf32>
    %c0_17 = arith.constant 0 : index
    %c0_18 = arith.constant 0 : index
    %34 = vector.load %arg9[%c0_17, %c0_18] : memref<1x768xf32, #tpu.memory_space<vmem>>, vector<1x768xf32>
    %35 = vector.broadcast %34 : vector<1x768xf32> to vector<2x768xf32>
    %36 = arith.mulf %24, %35 : vector<2x768xf32>
    %cst_19 = arith.constant dense<0.000000e+00> : vector<2xf32>
    %37 = vector.multi_reduction <add>, %36, %cst_19 [1] : vector<2x768xf32> to vector<2xf32>
    %38 = vector.shape_cast %37 : vector<2xf32> to vector<2x1xf32>
    %c0_20 = arith.constant 0 : index
    %c0_21 = arith.constant 0 : index
    %39 = vector.load %arg10[%c0_20, %c0_21] : memref<1x1xf32, #tpu.memory_space<vmem>>, vector<1x1xf32>
    %40 = vector.broadcast %39 : vector<1x1xf32> to vector<2x1xf32>
    %41 = arith.addf %38, %40 : vector<2x1xf32>
    %cst_22 = arith.constant 0.000000e+00 : f32
    %42 = vector.broadcast %cst_22 : f32 to vector<2x1xf32>
    %43 = arith.subf %42, %41 : vector<2x1xf32>
    %44 = math.exp %43 : vector<2x1xf32>
    %cst_23 = arith.constant 1.000000e+00 : f32
    %45 = vector.broadcast %cst_23 : f32 to vector<2x1xf32>
    %46 = arith.addf %45, %44 : vector<2x1xf32>
    %cst_24 = arith.constant 1.000000e+00 : f32
    %47 = vector.broadcast %cst_24 : f32 to vector<2x1xf32>
    %48 = arith.divf %47, %46 : vector<2x1xf32>
    %49 = tpu.concatenate %15, %33 in 1 : vector<2x64xf32>, vector<2x64xf32> -> vector<2x128xf32>
    %c0_25 = arith.constant 0 : index
    %c0_26 = arith.constant 0 : index
    %50 = vector.load %arg11[%c0_25, %c0_26] : memref<128x64xbf16, #tpu.memory_space<vmem>>, vector<128x64xbf16>
    %51 = arith.truncf %49 : vector<2x128xf32> to vector<2x128xbf16>
    %cst_27 = arith.constant dense<0.000000e+00> : vector<2x64xf32>
    %52 = tpu.matmul %51, %50, %cst_27 {dimension_numbers = #tpu.dot_dimension_numbers<[1], [0], [0], [1], [0, 0, 1, 1], [], []>} : vector<2x128xbf16>, vector<128x64xbf16>, vector<2x64xf32> -> vector<2x64xf32>
    %c0_28 = arith.constant 0 : index
    %c0_29 = arith.constant 0 : index
    %53 = vector.load %arg12[%c0_28, %c0_29] : memref<1x64xf32, #tpu.memory_space<vmem>>, vector<1x64xf32>
    %54 = vector.broadcast %53 : vector<1x64xf32> to vector<2x64xf32>
    %55 = arith.addf %52, %54 : vector<2x64xf32>
    %cst_30 = arith.constant 0.000000e+00 : f32
    %56 = vector.broadcast %cst_30 : f32 to vector<2x64xf32>
    %57 = arith.maximumf %55, %56 : vector<2x64xf32>
    %c0_31 = arith.constant 0 : index
    %c0_32 = arith.constant 0 : index
    %58 = vector.load %arg13[%c0_31, %c0_32] : memref<64x64xbf16, #tpu.memory_space<vmem>>, vector<64x64xbf16>
    %59 = arith.truncf %57 : vector<2x64xf32> to vector<2x64xbf16>
    %cst_33 = arith.constant dense<0.000000e+00> : vector<2x64xf32>
    %60 = tpu.matmul %59, %58, %cst_33 {dimension_numbers = #tpu.dot_dimension_numbers<[1], [0], [0], [1], [0, 0, 1, 1], [], []>} : vector<2x64xbf16>, vector<64x64xbf16>, vector<2x64xf32> -> vector<2x64xf32>
    %c0_34 = arith.constant 0 : index
    %c0_35 = arith.constant 0 : index
    %61 = vector.load %arg14[%c0_34, %c0_35] : memref<1x64xf32, #tpu.memory_space<vmem>>, vector<1x64xf32>
    %62 = vector.broadcast %61 : vector<1x64xf32> to vector<2x64xf32>
    %63 = arith.addf %60, %62 : vector<2x64xf32>
    %cst_36 = arith.constant 0.000000e+00 : f32
    %64 = vector.broadcast %cst_36 : f32 to vector<2x64xf32>
    %65 = arith.maximumf %63, %64 : vector<2x64xf32>
    %c0_37 = arith.constant 0 : index
    %c0_38 = arith.constant 0 : index
    %66 = vector.load %arg15[%c0_37, %c0_38] : memref<64x128xbf16, #tpu.memory_space<vmem>>, vector<64x128xbf16>
    %67 = arith.truncf %65 : vector<2x64xf32> to vector<2x64xbf16>
    %cst_39 = arith.constant dense<0.000000e+00> : vector<2x128xf32>
    %68 = tpu.matmul %67, %66, %cst_39 {dimension_numbers = #tpu.dot_dimension_numbers<[1], [0], [0], [1], [0, 0, 1, 1], [], []>} : vector<2x64xbf16>, vector<64x128xbf16>, vector<2x128xf32> -> vector<2x128xf32>
    %c0_40 = arith.constant 0 : index
    %c0_41 = arith.constant 0 : index
    %69 = vector.load %arg16[%c0_40, %c0_41] : memref<1x128xf32, #tpu.memory_space<vmem>>, vector<1x128xf32>
    %70 = vector.broadcast %69 : vector<1x128xf32> to vector<2x128xf32>
    %71 = arith.addf %68, %70 : vector<2x128xf32>
    %72 = arith.addf %71, %49 : vector<2x128xf32>
    %c0_42 = arith.constant 0 : index
    %c0_43 = arith.constant 0 : index
    %73 = vector.load %arg17[%c0_42, %c0_43] : memref<128x384xbf16, #tpu.memory_space<vmem>>, vector<128x384xbf16>
    %74 = arith.truncf %72 : vector<2x128xf32> to vector<2x128xbf16>
    %cst_44 = arith.constant dense<0.000000e+00> : vector<2x384xf32>
    %75 = tpu.matmul %74, %73, %cst_44 {dimension_numbers = #tpu.dot_dimension_numbers<[1], [0], [0], [1], [0, 0, 1, 1], [], []>} : vector<2x128xbf16>, vector<128x384xbf16>, vector<2x384xf32> -> vector<2x384xf32>
    %c0_45 = arith.constant 0 : index
    %c0_46 = arith.constant 0 : index
    %76 = vector.load %arg18[%c0_45, %c0_46] : memref<1x384xf32, #tpu.memory_space<vmem>>, vector<1x384xf32>
    %77 = vector.broadcast %76 : vector<1x384xf32> to vector<2x384xf32>
    %78 = arith.addf %75, %77 : vector<2x384xf32>
    %cst_47 = arith.constant 0.000000e+00 : f32
    %79 = vector.broadcast %cst_47 : f32 to vector<2x384xf32>
    %80 = arith.maximumf %78, %79 : vector<2x384xf32>
    %c0_48 = arith.constant 0 : index
    %c0_49 = arith.constant 0 : index
    %81 = vector.load %arg19[%c0_48, %c0_49] : memref<384x384xbf16, #tpu.memory_space<vmem>>, vector<384x384xbf16>
    %82 = arith.truncf %80 : vector<2x384xf32> to vector<2x384xbf16>
    %cst_50 = arith.constant dense<0.000000e+00> : vector<2x384xf32>
    %83 = tpu.matmul %82, %81, %cst_50 {dimension_numbers = #tpu.dot_dimension_numbers<[1], [0], [0], [1], [0, 0, 1, 1], [], []>} : vector<2x384xbf16>, vector<384x384xbf16>, vector<2x384xf32> -> vector<2x384xf32>
    %c0_51 = arith.constant 0 : index
    %c0_52 = arith.constant 0 : index
    %84 = vector.load %arg20[%c0_51, %c0_52] : memref<1x384xf32, #tpu.memory_space<vmem>>, vector<1x384xf32>
    %85 = vector.broadcast %84 : vector<1x384xf32> to vector<2x384xf32>
    %86 = arith.addf %83, %85 : vector<2x384xf32>
    %87 = tpu.iota {dimensions = array<i32: 1>} : vector<2x384xi32>
    %c64_i32 = arith.constant 64 : i32
    %88 = vector.broadcast %c64_i32 : i32 to vector<2x384xi32>
    %89 = arith.cmpi sge, %87, %88 : vector<2x384xi32>
    %c192_i32 = arith.constant 192 : i32
    %90 = vector.broadcast %c192_i32 : i32 to vector<2x384xi32>
    %91 = arith.cmpi slt, %87, %90 : vector<2x384xi32>
    %92 = arith.andi %89, %91 : vector<2x384xi1>
    %c256_i32 = arith.constant 256 : i32
    %93 = vector.broadcast %c256_i32 : i32 to vector<2x384xi32>
    %94 = arith.cmpi sge, %87, %93 : vector<2x384xi32>
    %95 = arith.ori %92, %94 : vector<2x384xi1>
    %cst_53 = arith.constant 0.000000e+00 : f32
    %96 = vector.broadcast %cst_53 : f32 to vector<2x384xf32>
    %97 = arith.maximumf %86, %96 : vector<2x384xf32>
    %98 = arith.select %95, %97, %86 : vector<2x384xi1>, vector<2x384xf32>
    %cst_54 = arith.constant dense<0.000000e+00> : vector<2x2xf32>
    %99 = tpu.matmul %15, %33, %cst_54 {dimension_numbers = #tpu.dot_dimension_numbers<[1], [1], [0], [0], [0, 0, 1, 0], [], []>} : vector<2x64xf32>, vector<2x64xf32>, vector<2x2xf32> -> vector<2x2xf32>
    %c0_55 = arith.constant 0 : index
    %c0_56 = arith.constant 0 : index
    %100 = vector.load %arg3[%c0_55, %c0_56] : memref<2x1xf32, #tpu.memory_space<vmem>>, vector<2x1xf32>
    %c0_57 = arith.constant 0 : index
    %c0_58 = arith.constant 0 : index
    %101 = vector.load %arg4[%c0_57, %c0_58] : memref<1x2xf32, #tpu.memory_space<vmem>>, vector<1x2xf32>
    %102 = vector.broadcast %100 : vector<2x1xf32> to vector<2x2xf32>
    %103 = vector.broadcast %101 : vector<1x2xf32> to vector<2x2xf32>
    %104 = arith.subf %102, %103 : vector<2x2xf32>
    %cst_59 = arith.constant 0.000000e+00 : f32
    %105 = vector.broadcast %cst_59 : f32 to vector<2x2xf32>
    %106 = arith.cmpf one, %104, %105 : vector<2x2xf32>
    %107 = arith.extui %106 : vector<2x2xi1> to vector<2x2xi32>
    %108 = arith.sitofp %107 : vector<2x2xi32> to vector<2x2xf32>
    %cst_60 = arith.constant 1.000000e+01 : f32
    %109 = vector.broadcast %cst_60 : f32 to vector<2x2xf32>
    %110 = arith.mulf %99, %109 : vector<2x2xf32>
    %cst_61 = arith.constant dense<0xFF800000> : vector<2xf32>
    %111 = vector.multi_reduction <maximumf>, %110, %cst_61 [1] : vector<2x2xf32> to vector<2xf32>
    %112 = vector.shape_cast %111 : vector<2xf32> to vector<2x1xf32>
    %113 = vector.broadcast %112 : vector<2x1xf32> to vector<2x2xf32>
    %114 = arith.subf %110, %113 : vector<2x2xf32>
    %115 = math.exp %114 : vector<2x2xf32>
    %cst_62 = arith.constant dense<0.000000e+00> : vector<2xf32>
    %116 = vector.multi_reduction <add>, %115, %cst_62 [1] : vector<2x2xf32> to vector<2xf32>
    %117 = vector.shape_cast %116 : vector<2xf32> to vector<2x1xf32>
    %118 = tpu.reciprocal %117 {approx = true} : vector<2x1xf32> -> vector<2x1xf32>
    %119 = vector.broadcast %118 : vector<2x1xf32> to vector<2x2xf32>
    %120 = arith.mulf %115, %119 : vector<2x2xf32>
    %121 = math.log %117 : vector<2x1xf32>
    %122 = vector.broadcast %121 : vector<2x1xf32> to vector<2x2xf32>
    %123 = arith.subf %114, %122 : vector<2x2xf32>
    %cst_63 = arith.constant 0.000000e+00 : f32
    %124 = vector.broadcast %cst_63 : f32 to vector<2x2xf32>
    %125 = arith.subf %124, %123 : vector<2x2xf32>
    %cst_64 = arith.constant 1.000000e+00 : f32
    %126 = vector.broadcast %cst_64 : f32 to vector<2x2xf32>
    %127 = arith.subf %126, %108 : vector<2x2xf32>
    %128 = arith.mulf %125, %127 : vector<2x2xf32>
    %cst_65 = arith.constant 1.000000e+00 : f32
    %129 = vector.broadcast %cst_65 : f32 to vector<2x2xf32>
    %130 = arith.subf %129, %120 : vector<2x2xf32>
    %cst_66 = arith.constant 9.99999971E-10 : f32
    %131 = vector.broadcast %cst_66 : f32 to vector<2x2xf32>
    %132 = arith.addf %130, %131 : vector<2x2xf32>
    %133 = math.log %132 : vector<2x2xf32>
    %cst_67 = arith.constant 0.000000e+00 : f32
    %134 = vector.broadcast %cst_67 : f32 to vector<2x2xf32>
    %135 = arith.subf %134, %133 : vector<2x2xf32>
    %136 = arith.mulf %135, %108 : vector<2x2xf32>
    %cst_68 = arith.constant 1.000000e+00 : f32
    %137 = vector.broadcast %cst_68 : f32 to vector<2x2xf32>
    %138 = arith.subf %137, %108 : vector<2x2xf32>
    %cst_69 = arith.constant dense<0.000000e+00> : vector<2xf32>
    %139 = vector.multi_reduction <add>, %138, %cst_69 [1] : vector<2x2xf32> to vector<2xf32>
    %140 = vector.shape_cast %139 : vector<2xf32> to vector<2x1xf32>
    %cst_70 = arith.constant dense<0.000000e+00> : vector<2xf32>
    %141 = vector.multi_reduction <add>, %128, %cst_70 [1] : vector<2x2xf32> to vector<2xf32>
    %142 = vector.shape_cast %141 : vector<2xf32> to vector<2x1xf32>
    %cst_71 = arith.constant dense<0.000000e+00> : vector<2xf32>
    %143 = vector.multi_reduction <add>, %136, %cst_71 [1] : vector<2x2xf32> to vector<2xf32>
    %144 = vector.shape_cast %143 : vector<2xf32> to vector<2x1xf32>
    %145 = arith.addf %142, %144 : vector<2x1xf32>
    %146 = arith.divf %145, %140 : vector<2x1xf32>
    %c0_72 = arith.constant 0 : index
    %c0_73 = arith.constant 0 : index
    %147 = vector.load %arg3[%c0_72, %c0_73] : memref<2x1xf32, #tpu.memory_space<vmem>>, vector<2x1xf32>
    %cst_74 = arith.constant 0.000000e+00 : f32
    %148 = vector.broadcast %cst_74 : f32 to vector<2x1xf32>
    %149 = arith.maximumf %41, %148 : vector<2x1xf32>
    %150 = arith.mulf %41, %147 : vector<2x1xf32>
    %151 = arith.subf %149, %150 : vector<2x1xf32>
    %152 = math.absf %41 : vector<2x1xf32>
    %cst_75 = arith.constant 0.000000e+00 : f32
    %153 = vector.broadcast %cst_75 : f32 to vector<2x1xf32>
    %154 = arith.subf %153, %152 : vector<2x1xf32>
    %155 = math.exp %154 : vector<2x1xf32>
    %156 = math.log1p %155 : vector<2x1xf32>
    %157 = arith.addf %151, %156 : vector<2x1xf32>
    %c0_76 = arith.constant 0 : index
    %c0_77 = arith.constant 0 : index
    %158 = vector.load %arg21[%c0_76, %c0_77] : memref<2x512xf32, #tpu.memory_space<vmem>>, vector<2x64xf32>
    tpu.vector_store %arg21[%c0_76, %c0_77], %15 {strides = array<i32>} : memref<2x512xf32, #tpu.memory_space<vmem>>, vector<2x64xf32>,
    %c0_78 = arith.constant 0 : index
    %c64 = arith.constant 64 : index
    %159 = vector.load %arg21[%c0_78, %c64] : memref<2x512xf32, #tpu.memory_space<vmem>>, vector<2x64xf32>
    tpu.vector_store %arg21[%c0_78, %c64], %33 {strides = array<i32>} : memref<2x512xf32, #tpu.memory_space<vmem>>, vector<2x64xf32>,
    %c0_79 = arith.constant 0 : index
    %c128 = arith.constant 128 : index
    %160 = vector.load %arg21[%c0_79, %c128] : memref<2x512xf32, #tpu.memory_space<vmem>>, vector<2x384xf32>
    tpu.vector_store %arg21[%c0_79, %c128], %98 {strides = array<i32>} : memref<2x512xf32, #tpu.memory_space<vmem>>, vector<2x384xf32>,
    %161 = tpu.iota {dimensions = array<i32: 1>} : vector<2x128xi32>
    %c0_i32 = arith.constant 0 : i32
    %162 = vector.broadcast %c0_i32 : i32 to vector<2x128xi32>
    %163 = arith.cmpi eq, %161, %162 : vector<2x128xi32>
    %cst_80 = arith.constant 0.000000e+00 : f32
    %164 = vector.shape_cast %41 : vector<2x1xf32> to vector<2x1xf32>
    %165 = vector.broadcast %164 : vector<2x1xf32> to vector<2x128xf32>
    %166 = vector.broadcast %cst_80 : f32 to vector<2x128xf32>
    %167 = arith.select %163, %165, %166 : vector<2x128xi1>, vector<2x128xf32>
    %c1_i32 = arith.constant 1 : i32
    %168 = vector.broadcast %c1_i32 : i32 to vector<2x128xi32>
    %169 = arith.cmpi eq, %161, %168 : vector<2x128xi32>
    %cst_81 = arith.constant 0.000000e+00 : f32
    %170 = vector.shape_cast %48 : vector<2x1xf32> to vector<2x1xf32>
    %171 = vector.broadcast %170 : vector<2x1xf32> to vector<2x128xf32>
    %172 = vector.broadcast %cst_81 : f32 to vector<2x128xf32>
    %173 = arith.select %169, %171, %172 : vector<2x128xi1>, vector<2x128xf32>
    %174 = arith.addf %167, %173 : vector<2x128xf32>
    %c2_i32 = arith.constant 2 : i32
    %175 = vector.broadcast %c2_i32 : i32 to vector<2x128xi32>
    %176 = arith.cmpi eq, %161, %175 : vector<2x128xi32>
    %cst_82 = arith.constant 0.000000e+00 : f32
    %177 = vector.shape_cast %157 : vector<2x1xf32> to vector<2x1xf32>
    %178 = vector.broadcast %177 : vector<2x1xf32> to vector<2x128xf32>
    %179 = vector.broadcast %cst_82 : f32 to vector<2x128xf32>
    %180 = arith.select %176, %178, %179 : vector<2x128xi1>, vector<2x128xf32>
    %181 = arith.addf %174, %180 : vector<2x128xf32>
    %c3_i32 = arith.constant 3 : i32
    %182 = vector.broadcast %c3_i32 : i32 to vector<2x128xi32>
    %183 = arith.cmpi eq, %161, %182 : vector<2x128xi32>
    %cst_83 = arith.constant 0.000000e+00 : f32
    %184 = vector.shape_cast %146 : vector<2x1xf32> to vector<2x1xf32>
    %185 = vector.broadcast %184 : vector<2x1xf32> to vector<2x128xf32>
    %186 = vector.broadcast %cst_83 : f32 to vector<2x128xf32>
    %187 = arith.select %183, %185, %186 : vector<2x128xi1>, vector<2x128xf32>
    %188 = arith.addf %181, %187 : vector<2x128xf32>
    %c0_84 = arith.constant 0 : index
    %c0_85 = arith.constant 0 : index
    %189 = vector.load %arg22[%c0_84, %c0_85] : memref<2x128xf32, #tpu.memory_space<vmem>>, vector<2x128xf32>
    tpu.vector_store %arg22[%c0_84, %c0_85], %188 {strides = array<i32>} : memref<2x128xf32, #tpu.memory_space<vmem>>, vector<2x128xf32>,
    return
  }
  func.func @transform_0(%arg0: i32) -> (i32, i32) {
    %c0_i32 = arith.constant 0 : i32
    %c0_i32_0 = arith.constant 0 : i32
    %c0_i32_1 = arith.constant 0 : i32
    return %c0_i32, %c0_i32_0 : i32, i32
  }
  func.func @transform_1(%arg0: i32) -> (i32, i32) {
    %c0_i32 = arith.constant 0 : i32
    %c0_i32_0 = arith.constant 0 : i32
    %c0_i32_1 = arith.constant 0 : i32
    return %c0_i32, %c0_i32_0 : i32, i32
  }
  func.func @transform_2(%arg0: i32) -> (i32, i32) {
    %c0_i32 = arith.constant 0 : i32
    %c0_i32_0 = arith.constant 0 : i32
    %c0_i32_1 = arith.constant 0 : i32
    return %c0_i32, %c0_i32_0 : i32, i32
  }
  func.func @transform_3(%arg0: i32) -> (i32, i32) {
    %c0_i32 = arith.constant 0 : i32
    %c0_i32_0 = arith.constant 0 : i32
    %c0_i32_1 = arith.constant 0 : i32
    return %c0_i32, %c0_i32_0 : i32, i32
  }
  func.func @transform_4(%arg0: i32) -> (i32, i32) {
    %c0_i32 = arith.constant 0 : i32
    %c0_i32_0 = arith.constant 0 : i32
    %c0_i32_1 = arith.constant 0 : i32
    return %c0_i32, %c0_i32_0 : i32, i32
  }
  func.func @transform_5(%arg0: i32) -> (i32, i32) {
    %c0_i32 = arith.constant 0 : i32
    %c0_i32_0 = arith.constant 0 : i32
    %c0_i32_1 = arith.constant 0 : i32
    return %c0_i32, %c0_i32_0 : i32, i32
  }
  func.func @transform_6(%arg0: i32) -> (i32, i32) {
    %c0_i32 = arith.constant 0 : i32
    %c0_i32_0 = arith.constant 0 : i32
    %c0_i32_1 = arith.constant 0 : i32
    return %c0_i32, %c0_i32_0 : i32, i32
  }
  func.func @transform_7(%arg0: i32) -> (i32, i32) {
    %c0_i32 = arith.constant 0 : i32
    %c0_i32_0 = arith.constant 0 : i32
    %c0_i32_1 = arith.constant 0 : i32
    return %c0_i32, %c0_i32_0 : i32, i32
  }
  func.func @transform_8(%arg0: i32) -> (i32, i32) {
    %c0_i32 = arith.constant 0 : i32
    %c0_i32_0 = arith.constant 0 : i32
    %c0_i32_1 = arith.constant 0 : i32
    return %c0_i32, %c0_i32_0 : i32, i32
  }
  func.func @transform_9(%arg0: i32) -> (i32, i32) {
    %c0_i32 = arith.constant 0 : i32
    %c0_i32_0 = arith.constant 0 : i32
    %c0_i32_1 = arith.constant 0 : i32
    return %c0_i32, %c0_i32_0 : i32, i32
  }
  func.func @transform_10(%arg0: i32) -> (i32, i32) {
    %c0_i32 = arith.constant 0 : i32
    %c0_i32_0 = arith.constant 0 : i32
    %c0_i32_1 = arith.constant 0 : i32
    return %c0_i32, %c0_i32_0 : i32, i32
  }
  func.func @transform_11(%arg0: i32) -> (i32, i32) {
    %c0_i32 = arith.constant 0 : i32
    %c0_i32_0 = arith.constant 0 : i32
    %c0_i32_1 = arith.constant 0 : i32
    return %c0_i32, %c0_i32_0 : i32, i32
  }
  func.func @transform_12(%arg0: i32) -> (i32, i32) {
    %c0_i32 = arith.constant 0 : i32
    %c0_i32_0 = arith.constant 0 : i32
    %c0_i32_1 = arith.constant 0 : i32
    return %c0_i32, %c0_i32_0 : i32, i32
  }
  func.func @transform_13(%arg0: i32) -> (i32, i32) {
    %c0_i32 = arith.constant 0 : i32
    %c0_i32_0 = arith.constant 0 : i32
    %c0_i32_1 = arith.constant 0 : i32
    return %c0_i32, %c0_i32_0 : i32, i32
  }
  func.func @transform_14(%arg0: i32) -> (i32, i32) {
    %c0_i32 = arith.constant 0 : i32
    %c0_i32_0 = arith.constant 0 : i32
    %c0_i32_1 = arith.constant 0 : i32
    return %c0_i32, %c0_i32_0 : i32, i32
  }
  func.func @transform_15(%arg0: i32) -> (i32, i32) {
    %c0_i32 = arith.constant 0 : i32
    %c0_i32_0 = arith.constant 0 : i32
    %c0_i32_1 = arith.constant 0 : i32
    return %c0_i32, %c0_i32_0 : i32, i32
  }
  func.func @transform_16(%arg0: i32) -> (i32, i32) {
    %c0_i32 = arith.constant 0 : i32
    %c0_i32_0 = arith.constant 0 : i32
    %c0_i32_1 = arith.constant 0 : i32
    return %c0_i32, %c0_i32_0 : i32, i32
  }
  func.func @transform_17(%arg0: i32) -> (i32, i32) {
    %c0_i32 = arith.constant 0 : i32
    %c0_i32_0 = arith.constant 0 : i32
    %c0_i32_1 = arith.constant 0 : i32
    return %c0_i32, %c0_i32_0 : i32, i32
  }
  func.func @transform_18(%arg0: i32) -> (i32, i32) {
    %c0_i32 = arith.constant 0 : i32
    %c0_i32_0 = arith.constant 0 : i32
    %c0_i32_1 = arith.constant 0 : i32
    return %c0_i32, %c0_i32_0 : i32, i32
  }
  func.func @transform_19(%arg0: i32) -> (i32, i32) {
    %c0_i32 = arith.constant 0 : i32
    %c0_i32_0 = arith.constant 0 : i32
    %c0_i32_1 = arith.constant 0 : i32
    return %c0_i32, %c0_i32_0 : i32, i32
  }
  func.func @transform_20(%arg0: i32) -> (i32, i32) {
    %c0_i32 = arith.constant 0 : i32
    %c0_i32_0 = arith.constant 0 : i32
    %c0_i32_1 = arith.constant 0 : i32
    return %c0_i32, %c0_i32_0 : i32, i32
  }
  func.func @transform_21(%arg0: i32) -> (i32, i32) {
    %c0_i32 = arith.constant 0 : i32
    %c0_i32_0 = arith.constant 0 : i32
    %c0_i32_1 = arith.constant 0 : i32
    return %c0_i32, %c0_i32_0 : i32, i32
  }
}

</mosaic_0001>

<llo_original>
// kernel: tpu_custom_call.1
$region0: #{tpu_custom_call.1}
  #allocation0 [shape = 'u32[]', space=smem, size = 0x4, offset = 0x4, fixed_abs, tag = 'smem constant byte address 0x4 - core index']
  #allocation1 [shape = 'u32[144,128]{1,0:T(1,128)}', space=vmem, size = 0x12000, scoped, tag = 'internal scratch']
  #allocation2 [shape = 'f32[1,1]{1,0:T(1,128)S(1)}', space=vmem, size = 0x200, scoped, tag = 'scoped memory for tpu_custom_call.1']
  %s0 = inlined_call_operand.vmem [shape: f32[2,768], index: 0, kind: input, shape index: {}]
  %s1 = inlined_call_operand.vmem [shape: f32[2,768], index: 1, kind: input, shape index: {}]
  %s2 = inlined_call_operand.vmem [shape: f32[2,1], index: 2, kind: input, shape index: {}]
  %s3 = inlined_call_operand.vmem [shape: f32[1,2], index: 3, kind: input, shape index: {}]
  %s4 = inlined_call_operand.vmem [shape: bf16[768,64], index: 4, kind: input, shape index: {}]
  %s5 = inlined_call_operand.vmem [shape: f32[1,64], index: 5, kind: input, shape index: {}]
  %s6 = inlined_call_operand.vmem [shape: bf16[768,832], index: 6, kind: input, shape index: {}]
  %s7 = inlined_call_operand.vmem [shape: f32[1,832], index: 7, kind: input, shape index: {}]
  %s8 = inlined_call_operand.vmem [shape: f32[1,768], index: 8, kind: input, shape index: {}]
  %s9 = inlined_call_operand.<no memory space> [shape: f32[1,1], index: 9, kind: input, shape index: {}]
  %s10 = inlined_call_operand.vmem [shape: bf16[128,64], index: 10, kind: input, shape index: {}]
  %s11 = inlined_call_operand.vmem [shape: f32[1,64], index: 11, kind: input, shape index: {}]
  %s12 = inlined_call_operand.vmem [shape: bf16[64,64], index: 12, kind: input, shape index: {}]
  %s13 = inlined_call_operand.vmem [shape: f32[1,64], index: 13, kind: input, shape index: {}]
  %s14 = inlined_call_operand.vmem [shape: bf16[64,128], index: 14, kind: input, shape index: {}]
  %s15 = inlined_call_operand.vmem [shape: f32[1,128], index: 15, kind: input, shape index: {}]
  %s16 = inlined_call_operand.vmem [shape: bf16[128,384], index: 16, kind: input, shape index: {}]
  %s17 = inlined_call_operand.vmem [shape: f32[1,384], index: 17, kind: input, shape index: {}]
  %s18 = inlined_call_operand.vmem [shape: bf16[384,384], index: 18, kind: input, shape index: {}]
  %s19 = inlined_call_operand.vmem [shape: f32[1,384], index: 19, kind: input, shape index: {}]
  %s20 = inlined_call_operand.hbm [shape: f32[2,512], index: 20, kind: output, shape index: {0}]
  %s21 = inlined_call_operand.hbm [shape: f32[2,128], index: 21, kind: output, shape index: {1}]
  %22 = xla_tuple %s20, %s21
  %s23 = sld [smem:[#allocation0]]
  $region98: #{tpu_custom_call.1} parent=0
    _
  %s25 = ssub.s32 1, %s23
  %s26 = scalar_select 0, %s25, %s23
  %v27 = vstv %s9
  %28 = vst [vmem:[#allocation2] sm:$0x1] %v27
  $region1: #{tpu_custom_call.1} parent=0
    #allocation3 [shape = 'u8[4096]{0}', space=vmem, size = 0x1000, scoped, tag = 'output window, operand 0, single buffered']
    #allocation4 [shape = 's32[1]{0}', space=sflag, size = 0x4, scoped, tag = 'scoped memory for tpu_custom_call.1']
    #allocation5 [shape = 'u8[1024]{0}', space=vmem, size = 0x400, scoped, tag = 'output window, operand 1, single buffered']
    #allocation6 [shape = 's32[1]{0}', space=sflag, size = 0x4, scoped, tag = 'scoped memory for tpu_custom_call.1']
    %29 = vsyncpa [#allocation4], 0
    %30 = vsyncpa [#allocation6], 0
    // Predicated region
    $region2: #{tpu_custom_call.1} parent=1 // pred_check
      _
    $region3: #{tpu_custom_call.1} parent=1 // pred_check_branch
      %32 = sbr.rel (0) target = $region5
    $region4: #{tpu_custom_call.1} parent=1 // pred_region
      _
    $region5: #{tpu_custom_call.1} parent=1 // pred_fallthru
      _
    // Predicated region
    $region6: #{tpu_custom_call.1} parent=1 // pred_check
      _
    $region7: #{tpu_custom_call.1} parent=1 // pred_check_branch
      %34 = sbr.rel (0) target = $region9
    $region8: #{tpu_custom_call.1} parent=1 // pred_region
      _
    $region9: #{tpu_custom_call.1} parent=1 // pred_fallthru
      _
    // Predicated region
    $region10: #{tpu_custom_call.1} parent=1 // pred_check
      _
    $region11: #{tpu_custom_call.1} parent=1 // pred_check_branch
      %36 = sbr.rel (0) target = $region13
    $region12: #{tpu_custom_call.1} parent=1 // pred_region
      _
    $region13: #{tpu_custom_call.1} parent=1 // pred_fallthru
      _
    // Predicated region
    $region14: #{tpu_custom_call.1} parent=1 // pred_check
      _
    $region15: #{tpu_custom_call.1} parent=1 // pred_check_branch
      %38 = sbr.rel (0) target = $region17
    $region16: #{tpu_custom_call.1} parent=1 // pred_region
      _
    $region17: #{tpu_custom_call.1} parent=1 // pred_fallthru
      _
    // Predicated region
    $region18: #{tpu_custom_call.1} parent=1 // pred_check
      _
    $region19: #{tpu_custom_call.1} parent=1 // pred_check_branch
      %40 = sbr.rel (0) target = $region21
    $region20: #{tpu_custom_call.1} parent=1 // pred_region
      _
    $region21: #{tpu_custom_call.1} parent=1 // pred_fallthru
      _
    // Predicated region
    $region22: #{tpu_custom_call.1} parent=1 // pred_check
      _
    $region23: #{tpu_custom_call.1} parent=1 // pred_check_branch
      %42 = sbr.rel (0) target = $region25
    $region24: #{tpu_custom_call.1} parent=1 // pred_region
      _
    $region25: #{tpu_custom_call.1} parent=1 // pred_fallthru
      _
    // Predicated region
    $region26: #{tpu_custom_call.1} parent=1 // pred_check
      _
    $region27: #{tpu_custom_call.1} parent=1 // pred_check_branch
      %44 = sbr.rel (0) target = $region29
    $region28: #{tpu_custom_call.1} parent=1 // pred_region
      _
    $region29: #{tpu_custom_call.1} parent=1 // pred_fallthru
      _
    // Predicated region
    $region30: #{tpu_custom_call.1} parent=1 // pred_check
      _
    $region31: #{tpu_custom_call.1} parent=1 // pred_check_branch
      %46 = sbr.rel (0) target = $region33
    $region32: #{tpu_custom_call.1} parent=1 // pred_region
      _
    $region33: #{tpu_custom_call.1} parent=1 // pred_fallthru
      _
    // Predicated region
    $region34: #{tpu_custom_call.1} parent=1 // pred_check
      _
    $region35: #{tpu_custom_call.1} parent=1 // pred_check_branch
      %48 = sbr.rel (0) target = $region37
    $region36: #{tpu_custom_call.1} parent=1 // pred_region
      _
    $region37: #{tpu_custom_call.1} parent=1 // pred_fallthru
      _
    // Predicated region
    $region38: #{tpu_custom_call.1} parent=1 // pred_check
      _
    $region39: #{tpu_custom_call.1} parent=1 // pred_check_branch
      %50 = sbr.rel (0) target = $region41
    $region40: #{tpu_custom_call.1} parent=1 // pred_region
      _
    $region41: #{tpu_custom_call.1} parent=1 // pred_fallthru
      _
    // Predicated region
    $region42: #{tpu_custom_call.1} parent=1 // pred_check
      _
    $region43: #{tpu_custom_call.1} parent=1 // pred_check_branch
      %52 = sbr.rel (0) target = $region45
    $region44: #{tpu_custom_call.1} parent=1 // pred_region
      _
    $region45: #{tpu_custom_call.1} parent=1 // pred_fallthru
      _
    // Predicated region
    $region46: #{tpu_custom_call.1} parent=1 // pred_check
      _
    $region47: #{tpu_custom_call.1} parent=1 // pred_check_branch
      %54 = sbr.rel (0) target = $region49
    $region48: #{tpu_custom_call.1} parent=1 // pred_region
      _
    $region49: #{tpu_custom_call.1} parent=1 // pred_fallthru
      _
    // Predicated region
    $region50: #{tpu_custom_call.1} parent=1 // pred_check
      _
    $region51: #{tpu_custom_call.1} parent=1 // pred_check_branch
      %56 = sbr.rel (0) target = $region53
    $region52: #{tpu_custom_call.1} parent=1 // pred_region
      _
    $region53: #{tpu_custom_call.1} parent=1 // pred_fallthru
      _
    // Predicated region
    $region54: #{tpu_custom_call.1} parent=1 // pred_check
      _
    $region55: #{tpu_custom_call.1} parent=1 // pred_check_branch
      %58 = sbr.rel (0) target = $region57
    $region56: #{tpu_custom_call.1} parent=1 // pred_region
      _
    $region57: #{tpu_custom_call.1} parent=1 // pred_fallthru
      _
    // Predicated region
    $region58: #{tpu_custom_call.1} parent=1 // pred_check
      _
    $region59: #{tpu_custom_call.1} parent=1 // pred_check_branch
      %60 = sbr.rel (0) target = $region61
    $region60: #{tpu_custom_call.1} parent=1 // pred_region
      _
    $region61: #{tpu_custom_call.1} parent=1 // pred_fallthru
      _
    // Predicated region
    $region62: #{tpu_custom_call.1} parent=1 // pred_check
      _
    $region63: #{tpu_custom_call.1} parent=1 // pred_check_branch
      %62 = sbr.rel (0) target = $region65
    $region64: #{tpu_custom_call.1} parent=1 // pred_region
      _
    $region65: #{tpu_custom_call.1} parent=1 // pred_fallthru
      _
    // Predicated region
    $region66: #{tpu_custom_call.1} parent=1 // pred_check
      _
    $region67: #{tpu_custom_call.1} parent=1 // pred_check_branch
      %64 = sbr.rel (0) target = $region69
    $region68: #{tpu_custom_call.1} parent=1 // pred_region
      _
    $region69: #{tpu_custom_call.1} parent=1 // pred_fallthru
      _
    // Predicated region
    $region70: #{tpu_custom_call.1} parent=1 // pred_check
      _
    $region71: #{tpu_custom_call.1} parent=1 // pred_check_branch
      %66 = sbr.rel (0) target = $region73
    $region72: #{tpu_custom_call.1} parent=1 // pred_region
      _
    $region73: #{tpu_custom_call.1} parent=1 // pred_fallthru
      _
    // Predicated region
    $region74: #{tpu_custom_call.1} parent=1 // pred_check
      _
    $region75: #{tpu_custom_call.1} parent=1 // pred_check_branch
      %68 = sbr.rel (0) target = $region77
    $region76: #{tpu_custom_call.1} parent=1 // pred_region
      _
    $region77: #{tpu_custom_call.1} parent=1 // pred_fallthru
      _
    // Predicated region
    $region78: #{tpu_custom_call.1} parent=1 // pred_check
      _
    $region79: #{tpu_custom_call.1} parent=1 // pred_check_branch
      %70 = sbr.rel (0) target = $region81
    $region80: #{tpu_custom_call.1} parent=1 // pred_region
      _
    $region81: #{tpu_custom_call.1} parent=1 // pred_fallthru
      _
    %v72 = vld [vmem:[%s0] sm:$0xff]
    %v73 = vld [vmem:[%s0 + $0x8] sm:$0xf]
    %v74 = vld [vmem:[%s1] sm:$0xff]
    %v75 = vld [vmem:[%s1 + $0x8] sm:$0xf]
    %v76 = vld [vmem:[%s4] sm:$0xf]
    %v77 = vld [vmem:[%s4 + $0x4] sm:$0xf]
    %v78 = vld [vmem:[%s4 + $0x8] sm:$0xf]
    %v79 = vld [vmem:[%s4 + $0xc] sm:$0xf]
    %v80 = vld [vmem:[%s4 + $0x10] sm:$0xf]
    %v81 = vld [vmem:[%s4 + $0x14] sm:$0xf]
    %v82 = vld [vmem:[%s4 + $0x18] sm:$0xf]
    %v83 = vld [vmem:[%s4 + $0x1c] sm:$0xf]
    %v84 = vld [vmem:[%s4 + $0x20] sm:$0xf]
    %v85 = vld [vmem:[%s4 + $0x24] sm:$0xf]
    %v86 = vld [vmem:[%s4 + $0x28] sm:$0xf]
    %v87 = vld [vmem:[%s4 + $0x2c] sm:$0xf]
    %v88 = vld [vmem:[%s4 + $0x30] sm:$0xf]
    %v89 = vld [vmem:[%s4 + $0x34] sm:$0xf]
    %v90 = vld [vmem:[%s4 + $0x38] sm:$0xf]
    %v91 = vld [vmem:[%s4 + $0x3c] sm:$0xf]
    %v92 = vld [vmem:[%s4 + $0x40] sm:$0xf]
    %v93 = vld [vmem:[%s4 + $0x44] sm:$0xf]
    %v94 = vld [vmem:[%s4 + $0x48] sm:$0xf]
    %v95 = vld [vmem:[%s4 + $0x4c] sm:$0xf]
    %v96 = vld [vmem:[%s4 + $0x50] sm:$0xf]
    %v97 = vld [vmem:[%s4 + $0x54] sm:$0xf]
    %v98 = vld [vmem:[%s4 + $0x58] sm:$0xf]
    %v99 = vld [vmem:[%s4 + $0x5c] sm:$0xf]
    %v100 = vld [vmem:[%s4 + $0x60] sm:$0xf]
    %v101 = vld [vmem:[%s4 + $0x64] sm:$0xf]
    %v102 = vld [vmem:[%s4 + $0x68] sm:$0xf]
    %v103 = vld [vmem:[%s4 + $0x6c] sm:$0xf]
    %v104 = vld [vmem:[%s4 + $0x70] sm:$0xf]
    %v105 = vld [vmem:[%s4 + $0x74] sm:$0xf]
    %v106 = vld [vmem:[%s4 + $0x78] sm:$0xf]
    %v107 = vld [vmem:[%s4 + $0x7c] sm:$0xf]
    %v108 = vld [vmem:[%s4 + $0x80] sm:$0xf]
    %v109 = vld [vmem:[%s4 + $0x84] sm:$0xf]
    %v110 = vld [vmem:[%s4 + $0x88] sm:$0xf]
    %v111 = vld [vmem:[%s4 + $0x8c] sm:$0xf]
    %v112 = vld [vmem:[%s4 + $0x90] sm:$0xf]
    %v113 = vld [vmem:[%s4 + $0x94] sm:$0xf]
    %v114 = vld [vmem:[%s4 + $0x98] sm:$0xf]
    %v115 = vld [vmem:[%s4 + $0x9c] sm:$0xf]
    %v116 = vld [vmem:[%s4 + $0xa0] sm:$0xf]
    %v117 = vld [vmem:[%s4 + $0xa4] sm:$0xf]
    %v118 = vld [vmem:[%s4 + $0xa8] sm:$0xf]
    %v119 = vld [vmem:[%s4 + $0xac] sm:$0xf]
    %v120 = vld [vmem:[%s4 + $0xb0] sm:$0xf]
    %v121 = vld [vmem:[%s4 + $0xb4] sm:$0xf]
    %v122 = vld [vmem:[%s4 + $0xb8] sm:$0xf]
    %v123 = vld [vmem:[%s4 + $0xbc] sm:$0xf]
    %v124 = vld [vmem:[%s4 + $0xc0] sm:$0xf]
    %v125 = vld [vmem:[%s4 + $0xc4] sm:$0xf]
    %v126 = vld [vmem:[%s4 + $0xc8] sm:$0xf]
    %v127 = vld [vmem:[%s4 + $0xcc] sm:$0xf]
    %v128 = vld [vmem:[%s4 + $0xd0] sm:$0xf]
    %v129 = vld [vmem:[%s4 + $0xd4] sm:$0xf]
    %v130 = vld [vmem:[%s4 + $0xd8] sm:$0xf]
    %v131 = vld [vmem:[%s4 + $0xdc] sm:$0xf]
    %v132 = vld [vmem:[%s4 + $0xe0] sm:$0xf]
    %v133 = vld [vmem:[%s4 + $0xe4] sm:$0xf]
    %v134 = vld [vmem:[%s4 + $0xe8] sm:$0xf]
    %v135 = vld [vmem:[%s4 + $0xec] sm:$0xf]
    %v136 = vld [vmem:[%s4 + $0xf0] sm:$0xf]
    %v137 = vld [vmem:[%s4 + $0xf4] sm:$0xf]
    %v138 = vld [vmem:[%s4 + $0xf8] sm:$0xf]
    %v139 = vld [vmem:[%s4 + $0xfc] sm:$0xf]
    %v140 = vld [vmem:[%s4 + $0x100] sm:$0xf]
    %v141 = vld [vmem:[%s4 + $0x104] sm:$0xf]
    %v142 = vld [vmem:[%s4 + $0x108] sm:$0xf]
    %v143 = vld [vmem:[%s4 + $0x10c] sm:$0xf]
    %v144 = vld [vmem:[%s4 + $0x110] sm:$0xf]
    %v145 = vld [vmem:[%s4 + $0x114] sm:$0xf]
    %v146 = vld [vmem:[%s4 + $0x118] sm:$0xf]
    %v147 = vld [vmem:[%s4 + $0x11c] sm:$0xf]
    %v148 = vld [vmem:[%s4 + $0x120] sm:$0xf]
    %v149 = vld [vmem:[%s4 + $0x124] sm:$0xf]
    %v150 = vld [vmem:[%s4 + $0x128] sm:$0xf]
    %v151 = vld [vmem:[%s4 + $0x12c] sm:$0xf]
    %v152 = vld [vmem:[%s4 + $0x130] sm:$0xf]
    %v153 = vld [vmem:[%s4 + $0x134] sm:$0xf]
    %v154 = vld [vmem:[%s4 + $0x138] sm:$0xf]
    %v155 = vld [vmem:[%s4 + $0x13c] sm:$0xf]
    %v156 = vld [vmem:[%s4 + $0x140] sm:$0xf]
    %v157 = vld [vmem:[%s4 + $0x144] sm:$0xf]
    %v158 = vld [vmem:[%s4 + $0x148] sm:$0xf]
    %v159 = vld [vmem:[%s4 + $0x14c] sm:$0xf]
    %v160 = vld [vmem:[%s4 + $0x150] sm:$0xf]
    %v161 = vld [vmem:[%s4 + $0x154] sm:$0xf]
    %v162 = vld [vmem:[%s4 + $0x158] sm:$0xf]
    %v163 = vld [vmem:[%s4 + $0x15c] sm:$0xf]
    %v164 = vld [vmem:[%s4 + $0x160] sm:$0xf]
    %v165 = vld [vmem:[%s4 + $0x164] sm:$0xf]
    %v166 = vld [vmem:[%s4 + $0x168] sm:$0xf]
    %v167 = vld [vmem:[%s4 + $0x16c] sm:$0xf]
    %v168 = vld [vmem:[%s4 + $0x170] sm:$0xf]
    %v169 = vld [vmem:[%s4 + $0x174] sm:$0xf]
    %v170 = vld [vmem:[%s4 + $0x178] sm:$0xf]
    %v171 = vld [vmem:[%s4 + $0x17c] sm:$0xf]
    %v174 = vcombine.high %v72, %v72
    %v176 = vunpack.c.l.s4 1983009808
    %v177 = vunpack.c.0.s8 %v176
    %v178 = vlaneseq
    %v179 = vshrl.u32 %v178, 7
    %v180 = vsub.s32 %v177, %v179
    %v181 = vrot.slane %v72, %v180
    %v183 = vunpack.c.l.s4 1983009808
    %v184 = vunpack.c.0.s8 %v183
    %v185 = vlaneseq
    %v186 = vshrl.u32 %v185, 7
    %v187 = vsub.s32 %v184, %v186
    %v188 = vrot.slane %v174, %v187
    %v189 = vcombine.high %v181, %v181
    %v190 = vcombine.high %v188, %v188
    %v192 = vunpack.c.l.s4 1983009808
    %v193 = vunpack.c.0.s8 %v192
    %v194 = vlaneseq
    %v195 = vshrl.u32 %v194, 7
    %v196 = vsub.s32 %v193, %v195
    %v197 = vrot.slane %v73, %v196
    %v198 = vcombine.high %v197, %v197
    %v205 = vpack.c.bf16 %v181, %v181
    %v206 = vpack.c.bf16 %v189, %v189
    %v207 = vpack.c.bf16 %v188, %v188
    %v208 = vpack.c.bf16 %v190, %v190
    %v209 = vpack.c.bf16 %v197, %v197
    %v210 = vpack.c.bf16 %v198, %v198
    %v211 = vld [vmem:[%s5] sm:$0x1]
    %v213 = vlaneseq
    %v214 = vshrl.u32 %v213, 7
    %v215 = vsub.s32 0, %v214
    %v216 = vrot.slane %v211, %v215
    %v314 = vunpack.c.l.b16 %v76
    %v315 = vunpack.c.l.b16 %v77
    %v316 = vunpack.c.l.b16 %v78
    %v317 = vunpack.c.l.b16 %v79
    %v318 = vunpack.c.l.b16 %v80
    %v319 = vunpack.c.l.b16 %v81
    %v320 = vunpack.c.l.b16 %v82
    %v321 = vunpack.c.l.b16 %v83
    %v322 = vunpack.c.l.b16 %v84
    %v323 = vunpack.c.l.b16 %v85
    %v324 = vunpack.c.l.b16 %v86
    %v325 = vunpack.c.l.b16 %v87
    %v326 = vunpack.c.l.b16 %v88
    %v327 = vunpack.c.l.b16 %v89
    %v328 = vunpack.c.l.b16 %v90
    %v329 = vunpack.c.l.b16 %v91
    %v330 = vunpack.c.l.b16 %v92
    %v331 = vunpack.c.l.b16 %v93
    %v332 = vunpack.c.l.b16 %v94
    %v333 = vunpack.c.l.b16 %v95
    %v334 = vunpack.c.l.b16 %v96
    %v335 = vunpack.c.l.b16 %v97
    %v336 = vunpack.c.l.b16 %v98
    %v337 = vunpack.c.l.b16 %v99
    %v338 = vunpack.c.l.b16 %v100
    %v339 = vunpack.c.l.b16 %v101
    %v340 = vunpack.c.l.b16 %v102
    %v341 = vunpack.c.l.b16 %v103
    %v342 = vunpack.c.l.b16 %v104
    %v343 = vunpack.c.l.b16 %v105
    %v344 = vunpack.c.l.b16 %v106
    %v345 = vunpack.c.l.b16 %v107
    %v346 = vunpack.c.l.b16 %v108
    %v347 = vunpack.c.l.b16 %v109
    %v348 = vunpack.c.l.b16 %v110
    %v349 = vunpack.c.l.b16 %v111
    %v350 = vunpack.c.l.b16 %v112
    %v351 = vunpack.c.l.b16 %v113
    %v352 = vunpack.c.l.b16 %v114
    %v353 = vunpack.c.l.b16 %v115
    %v354 = vunpack.c.l.b16 %v116
    %v355 = vunpack.c.l.b16 %v117
    %v356 = vunpack.c.l.b16 %v118
    %v357 = vunpack.c.l.b16 %v119
    %v358 = vunpack.c.l.b16 %v120
    %v359 = vunpack.c.l.b16 %v121
    %v360 = vunpack.c.l.b16 %v122
    %v361 = vunpack.c.l.b16 %v123
    %v362 = vunpack.c.l.b16 %v124
    %v363 = vunpack.c.l.b16 %v125
    %v364 = vunpack.c.l.b16 %v126
    %v365 = vunpack.c.l.b16 %v127
    %v366 = vunpack.c.l.b16 %v128
    %v367 = vunpack.c.l.b16 %v129
    %v368 = vunpack.c.l.b16 %v130
    %v369 = vunpack.c.l.b16 %v131
    %v370 = vunpack.c.l.b16 %v132
    %v371 = vunpack.c.l.b16 %v133
    %v372 = vunpack.c.l.b16 %v134
    %v373 = vunpack.c.l.b16 %v135
    %v374 = vunpack.c.l.b16 %v136
    %v375 = vunpack.c.l.b16 %v137
    %v376 = vunpack.c.l.b16 %v138
    %v377 = vunpack.c.l.b16 %v139
    %v378 = vunpack.c.l.b16 %v140
    %v379 = vunpack.c.l.b16 %v141
    %v380 = vunpack.c.l.b16 %v142
    %v381 = vunpack.c.l.b16 %v143
    %v382 = vunpack.c.l.b16 %v144
    %v383 = vunpack.c.l.b16 %v145
    %v384 = vunpack.c.l.b16 %v146
    %v385 = vunpack.c.l.b16 %v147
    %v386 = vunpack.c.l.b16 %v148
    %v387 = vunpack.c.l.b16 %v149
    %v388 = vunpack.c.l.b16 %v150
    %v389 = vunpack.c.l.b16 %v151
    %v390 = vunpack.c.l.b16 %v152
    %v391 = vunpack.c.l.b16 %v153
    %v392 = vunpack.c.l.b16 %v154
    %v393 = vunpack.c.l.b16 %v155
    %v394 = vunpack.c.l.b16 %v156
    %v395 = vunpack.c.l.b16 %v157
    %v396 = vunpack.c.l.b16 %v158
    %v397 = vunpack.c.l.b16 %v159
    %v398 = vunpack.c.l.b16 %v160
    %v399 = vunpack.c.l.b16 %v161
    %v400 = vunpack.c.l.b16 %v162
    %v401 = vunpack.c.l.b16 %v163
    %v402 = vunpack.c.l.b16 %v164
    %v403 = vunpack.c.l.b16 %v165
    %v404 = vunpack.c.l.b16 %v166
    %v405 = vunpack.c.l.b16 %v167
    %v406 = vunpack.c.l.b16 %v168
    %v407 = vunpack.c.l.b16 %v169
    %v408 = vunpack.c.l.b16 %v170
    %v409 = vunpack.c.l.b16 %v171
    %v410 = vpack.c.b16 %v315, %v314
    %v411 = vpack.c.b16 %v317, %v316
    %v412 = vpack.c.b16 %v319, %v318
    %v413 = vpack.c.b16 %v321, %v320
    %v414 = vpack.c.b16 %v323, %v322
    %v415 = vpack.c.b16 %v325, %v324
    %v416 = vpack.c.b16 %v327, %v326
    %v417 = vpack.c.b16 %v329, %v328
    %v418 = vpack.c.b16 %v331, %v330
    %v419 = vpack.c.b16 %v333, %v332
    %v420 = vpack.c.b16 %v335, %v334
    %v421 = vpack.c.b16 %v337, %v336
    %v422 = vpack.c.b16 %v339, %v338
    %v423 = vpack.c.b16 %v341, %v340
    %v424 = vpack.c.b16 %v343, %v342
    %v425 = vpack.c.b16 %v345, %v344
    %v426 = vpack.c.b16 %v347, %v346
    %v427 = vpack.c.b16 %v349, %v348
    %v428 = vpack.c.b16 %v351, %v350
    %v429 = vpack.c.b16 %v353, %v352
    %v430 = vpack.c.b16 %v355, %v354
    %v431 = vpack.c.b16 %v357, %v356
    %v432 = vpack.c.b16 %v359, %v358
    %v433 = vpack.c.b16 %v361, %v360
    %v434 = vpack.c.b16 %v363, %v362
    %v435 = vpack.c.b16 %v365, %v364
    %v436 = vpack.c.b16 %v367, %v366
    %v437 = vpack.c.b16 %v369, %v368
    %v438 = vpack.c.b16 %v371, %v370
    %v439 = vpack.c.b16 %v373, %v372
    %v440 = vpack.c.b16 %v375, %v374
    %v441 = vpack.c.b16 %v377, %v376
    %v442 = vpack.c.b16 %v379, %v378
    %v443 = vpack.c.b16 %v381, %v380
    %v444 = vpack.c.b16 %v383, %v382
    %v445 = vpack.c.b16 %v385, %v384
    %v446 = vpack.c.b16 %v387, %v386
    %v447 = vpack.c.b16 %v389, %v388
    %v448 = vpack.c.b16 %v391, %v390
    %v449 = vpack.c.b16 %v393, %v392
    %v450 = vpack.c.b16 %v395, %v394
    %v451 = vpack.c.b16 %v397, %v396
    %v452 = vpack.c.b16 %v399, %v398
    %v453 = vpack.c.b16 %v401, %v400
    %v454 = vpack.c.b16 %v403, %v402
    %v455 = vpack.c.b16 %v405, %v404
    %v456 = vpack.c.b16 %v407, %v406
    %v457 = vpack.c.b16 %v409, %v408
    %506 = vmatprep.subr.bf16.mxu0 0
    %507 = vmatpush1.bf16.msra.mxu0 %v410
    %508 = vmatprep.subr.bf16.mxu0 0
    %509 = vmatpush1.bf16.msra.mxu0 %v411
    %510 = vmatprep.subr.bf16.mxu0 0
    %511 = vmatpush1.bf16.msra.mxu0 %v412
    %512 = vmatprep.subr.bf16.mxu0 0
    %513 = vmatpush1.bf16.msra.mxu0 %v413
    %514 = vmatprep.subr.bf16.mxu0 0
    %515 = vmatpush1.bf16.msra.mxu0 %v414
    %516 = vmatprep.subr.bf16.mxu0 0
    %517 = vmatpush1.bf16.msra.mxu0 %v415
    %518 = vmatprep.subr.bf16.mxu0 0
    %519 = vmatpush1.bf16.msra.mxu0 %v416
    %520 = vmatprep.subr.bf16.mxu0 0
    %521 = vmatpush1.bf16.msra.mxu0 %v417
    %522 = vmatprep.subr.bf16.mxu0 0
    %523 = vmatpush1.bf16.msra.mxu0 %v418
    %524 = vmatprep.subr.bf16.mxu0 0
    %525 = vmatpush1.bf16.msra.mxu0 %v419
    %526 = vmatprep.subr.bf16.mxu0 0
    %527 = vmatpush1.bf16.msra.mxu0 %v420
    %528 = vmatprep.subr.bf16.mxu0 0
    %529 = vmatpush1.bf16.msra.mxu0 %v421
    %530 = vmatprep.subr.bf16.mxu0 0
    %531 = vmatpush1.bf16.msra.mxu0 %v422
    %532 = vmatprep.subr.bf16.mxu0 0
    %533 = vmatpush1.bf16.msra.mxu0 %v423
    %534 = vmatprep.subr.bf16.mxu0 0
    %535 = vmatpush1.bf16.msra.mxu0 %v424
    %536 = vmatprep.subr.bf16.mxu0 0
    %537 = vmatpush1.bf16.msra.mxu0 %v425
    %538 = vmatprep.mubr.bf16.mxu0 %v206
    %539 = vmatmul.mubr.bf16.gmra.mrb[0].mxu0 %v205
    %v540 = vpop.f32.mrb[0].mxu0
    %v541 = vadd.f32 %v216, %v540
    %v542 = vpop.f32.mrb[0].mxu0
    %v543 = vpop.f32.mrb[0].mxu0
    %v544 = vpop.f32.mrb[0].mxu0
    %545 = vdwg.mxu0
    %546 = vmatprep.subr.bf16.mxu0 0
    %547 = vmatpush1.bf16.msra.mxu0 %v426
    %548 = vmatprep.subr.bf16.mxu0 0
    %549 = vmatpush1.bf16.msra.mxu0 %v427
    %550 = vmatprep.subr.bf16.mxu0 0
    %551 = vmatpush1.bf16.msra.mxu0 %v428
    %552 = vmatprep.subr.bf16.mxu0 0
    %553 = vmatpush1.bf16.msra.mxu0 %v429
    %554 = vmatprep.subr.bf16.mxu0 0
    %555 = vmatpush1.bf16.msra.mxu0 %v430
    %556 = vmatprep.subr.bf16.mxu0 0
    %557 = vmatpush1.bf16.msra.mxu0 %v431
    %558 = vmatprep.subr.bf16.mxu0 0
    %559 = vmatpush1.bf16.msra.mxu0 %v432
    %560 = vmatprep.subr.bf16.mxu0 0
    %561 = vmatpush1.bf16.msra.mxu0 %v433
    %562 = vmatprep.subr.bf16.mxu0 0
    %563 = vmatpush1.bf16.msra.mxu0 %v434
    %564 = vmatprep.subr.bf16.mxu0 0
    %565 = vmatpush1.bf16.msra.mxu0 %v435
    %566 = vmatprep.subr.bf16.mxu0 0
    %567 = vmatpush1.bf16.msra.mxu0 %v436
    %568 = vmatprep.subr.bf16.mxu0 0
    %569 = vmatpush1.bf16.msra.mxu0 %v437
    %570 = vmatprep.subr.bf16.mxu0 0
    %571 = vmatpush1.bf16.msra.mxu0 %v438
    %572 = vmatprep.subr.bf16.mxu0 0
    %573 = vmatpush1.bf16.msra.mxu0 %v439
    %574 = vmatprep.subr.bf16.mxu0 0
    %575 = vmatpush1.bf16.msra.mxu0 %v440
    %576 = vmatprep.subr.bf16.mxu0 0
    %577 = vmatpush1.bf16.msra.mxu0 %v441
    %578 = vmatprep.mubr.bf16.mxu0 %v208
    %579 = vmatmul.mubr.bf16.gmra.mrb[0].mxu0 %v207
    %v580 = vpop.f32.mrb[0].mxu0
    %v581 = vadd.f32 %v541, %v580
    %v582 = vpop.f32.mrb[0].mxu0
    %v583 = vpop.f32.mrb[0].mxu0
    %v584 = vpop.f32.mrb[0].mxu0
    %585 = vdwg.mxu0
    %586 = vmatprep.subr.bf16.mxu0 0
    %587 = vmatpush1.bf16.msra.mxu0 %v442
    %588 = vmatprep.subr.bf16.mxu0 0
    %589 = vmatpush1.bf16.msra.mxu0 %v443
    %590 = vmatprep.subr.bf16.mxu0 0
    %591 = vmatpush1.bf16.msra.mxu0 %v444
    %592 = vmatprep.subr.bf16.mxu0 0
    %593 = vmatpush1.bf16.msra.mxu0 %v445
    %594 = vmatprep.subr.bf16.mxu0 0
    %595 = vmatpush1.bf16.msra.mxu0 %v446
    %596 = vmatprep.subr.bf16.mxu0 0
    %597 = vmatpush1.bf16.msra.mxu0 %v447
    %598 = vmatprep.subr.bf16.mxu0 0
    %599 = vmatpush1.bf16.msra.mxu0 %v448
    %600 = vmatprep.subr.bf16.mxu0 0
    %601 = vmatpush1.bf16.msra.mxu0 %v449
    %602 = vmatprep.subr.bf16.mxu0 0
    %603 = vmatpush1.bf16.msra.mxu0 %v450
    %604 = vmatprep.subr.bf16.mxu0 0
    %605 = vmatpush1.bf16.msra.mxu0 %v451
    %606 = vmatprep.subr.bf16.mxu0 0
    %607 = vmatpush1.bf16.msra.mxu0 %v452
    %608 = vmatprep.subr.bf16.mxu0 0
    %609 = vmatpush1.bf16.msra.mxu0 %v453
    %610 = vmatprep.subr.bf16.mxu0 0
    %611 = vmatpush1.bf16.msra.mxu0 %v454
    %612 = vmatprep.subr.bf16.mxu0 0
    %613 = vmatpush1.bf16.msra.mxu0 %v455
    %614 = vmatprep.subr.bf16.mxu0 0
    %615 = vmatpush1.bf16.msra.mxu0 %v456
    %616 = vmatprep.subr.bf16.mxu0 0
    %617 = vmatpush1.bf16.msra.mxu0 %v457
    %618 = vmatprep.mubr.bf16.mxu0 %v210
    %619 = vmatmul.mubr.bf16.gmra.mrb[0].mxu0 %v209
    %v620 = vpop.f32.mrb[0].mxu0
    %v621 = vadd.f32 %v581, %v620
    %v622 = vpop.f32.mrb[0].mxu0
    %v623 = vpop.f32.mrb[0].mxu0
    %v624 = vpop.f32.mrb[0].mxu0
    %625 = vdwg.mxu0
    %v626 = vmul.f32 %v621, %v621
    %vm627 = vcmask 517120
    %v628 = vsel %vm627, %v626, 0.0
    %629 = vadd.xlane.f32.xlu0 %v628
    %v630 = vpop.xlane.xlu0 %629
    %v631 = vmax.f32 %v630, 1e-24
    %v632 = vrsqrt.pop %v631
    %v633 = vmul.f32 %v621, %v632
    %v634 = vld [vmem:[%s6] sm:$0xff]
    %v635 = vld [vmem:[%s6 + $0x8] sm:$0xff]
    %v636 = vld [vmem:[%s6 + $0x10] sm:$0xff]
    %v637 = vld [vmem:[%s6 + $0x18] sm:$0xf]
    %v638 = vld [vmem:[%s6 + $0x1c] sm:$0xff]
    %v639 = vld [vmem:[%s6 + $0x24] sm:$0xff]
    %v640 = vld [vmem:[%s6 + $0x2c] sm:$0xff]
    %v641 = vld [vmem:[%s6 + $0x34] sm:$0xf]
    %v642 = vld [vmem:[%s6 + $0x38] sm:$0xff]
    %v643 = vld [vmem:[%s6 + $0x40] sm:$0xff]
    %v644 = vld [vmem:[%s6 + $0x48] sm:$0xff]
    %v645 = vld [vmem:[%s6 + $0x50] sm:$0xf]
    %v646 = vld [vmem:[%s6 + $0x54] sm:$0xff]
    %v647 = vld [vmem:[%s6 + $0x5c] sm:$0xff]
    %v648 = vld [vmem:[%s6 + $0x64] sm:$0xff]
    %v649 = vld [vmem:[%s6 + $0x6c] sm:$0xf]
    %v650 = vld [vmem:[%s6 + $0x70] sm:$0xff]
    %v651 = vld [vmem:[%s6 + $0x78] sm:$0xff]
    %v652 = vld [vmem:[%s6 + $0x80] sm:$0xff]
    %v653 = vld [vmem:[%s6 + $0x88] sm:$0xf]
    %v654 = vld [vmem:[%s6 + $0x8c] sm:$0xff]
    %v655 = vld [vmem:[%s6 + $0x94] sm:$0xff]
    %v656 = vld [vmem:[%s6 + $0x9c] sm:$0xff]
    %v657 = vld [vmem:[%s6 + $0xa4] sm:$0xf]
    %v658 = vld [vmem:[%s6 + $0xa8] sm:$0xff]
    %v659 = vld [vmem:[%s6 + $0xb0] sm:$0xff]
    %v660 = vld [vmem:[%s6 + $0xb8] sm:$0xff]
    %v661 = vld [vmem:[%s6 + $0xc0] sm:$0xf]
    %v662 = vld [vmem:[%s6 + $0xc4] sm:$0xff]
    %v663 = vld [vmem:[%s6 + $0xcc] sm:$0xff]
    %v664 = vld [vmem:[%s6 + $0xd4] sm:$0xff]
    %v665 = vld [vmem:[%s6 + $0xdc] sm:$0xf]
    %v666 = vld [vmem:[%s6 + $0xe0] sm:$0xff]
    %v667 = vld [vmem:[%s6 + $0xe8] sm:$0xff]
    %v668 = vld [vmem:[%s6 + $0xf0] sm:$0xff]
    %v669 = vld [vmem:[%s6 + $0xf8] sm:$0xf]
    %v670 = vld [vmem:[%s6 + $0xfc] sm:$0xff]
    %v671 = vld [vmem:[%s6 + $0x104] sm:$0xff]
    %v672 = vld [vmem:[%s6 + $0x10c] sm:$0xff]
    %v673 = vld [vmem:[%s6 + $0x114] sm:$0xf]
    %v674 = vld [vmem:[%s6 + $0x118] sm:$0xff]
    %v675 = vld [vmem:[%s6 + $0x120] sm:$0xff]
    %v676 = vld [vmem:[%s6 + $0x128] sm:$0xff]
    %v677 = vld [vmem:[%s6 + $0x130] sm:$0xf]
    %v678 = vld [vmem:[%s6 + $0x134] sm:$0xff]
    %v679 = vld [vmem:[%s6 + $0x13c] sm:$0xff]
    %v680 = vld [vmem:[%s6 + $0x144] sm:$0xff]
    %v681 = vld [vmem:[%s6 + $0x14c] sm:$0xf]
    %v682 = vld [vmem:[%s6 + $0x150] sm:$0xff]
    %v683 = vld [vmem:[%s6 + $0x158] sm:$0xff]
    %v684 = vld [vmem:[%s6 + $0x160] sm:$0xff]
    %v685 = vld [vmem:[%s6 + $0x168] sm:$0xf]
    %v686 = vld [vmem:[%s6 + $0x16c] sm:$0xff]
    %v687 = vld [vmem:[%s6 + $0x174] sm:$0xff]
    %v688 = vld [vmem:[%s6 + $0x17c] sm:$0xff]
    %v689 = vld [vmem:[%s6 + $0x184] sm:$0xf]
    %v690 = vld [vmem:[%s6 + $0x188] sm:$0xff]
    %v691 = vld [vmem:[%s6 + $0x190] sm:$0xff]
    %v692 = vld [vmem:[%s6 + $0x198] sm:$0xff]
    %v693 = vld [vmem:[%s6 + $0x1a0] sm:$0xf]
    %v694 = vld [vmem:[%s6 + $0x1a4] sm:$0xff]
    %v695 = vld [vmem:[%s6 + $0x1ac] sm:$0xff]
    %v696 = vld [vmem:[%s6 + $0x1b4] sm:$0xff]
    %v697 = vld [vmem:[%s6 + $0x1bc] sm:$0xf]
    %v698 = vld [vmem:[%s6 + $0x1c0] sm:$0xff]
    %v699 = vld [vmem:[%s6 + $0x1c8] sm:$0xff]
    %v700 = vld [vmem:[%s6 + $0x1d0] sm:$0xff]
    %v701 = vld [vmem:[%s6 + $0x1d8] sm:$0xf]
    %v702 = vld [vmem:[%s6 + $0x1dc] sm:$0xff]
    %v703 = vld [vmem:[%s6 + $0x1e4] sm:$0xff]
    %v704 = vld [vmem:[%s6 + $0x1ec] sm:$0xff]
    %v705 = vld [vmem:[%s6 + $0x1f4] sm:$0xf]
    %v706 = vld [vmem:[%s6 + $0x1f8] sm:$0xff]
    %v707 = vld [vmem:[%s6 + $0x200] sm:$0xff]
    %v708 = vld [vmem:[%s6 + $0x208] sm:$0xff]
    %v709 = vld [vmem:[%s6 + $0x210] sm:$0xf]
    %v710 = vld [vmem:[%s6 + $0x214] sm:$0xff]
    %v711 = vld [vmem:[%s6 + $0x21c] sm:$0xff]
    %v712 = vld [vmem:[%s6 + $0x224] sm:$0xff]
    %v713 = vld [vmem:[%s6 + $0x22c] sm:$0xf]
    %v714 = vld [vmem:[%s6 + $0x230] sm:$0xff]
    %v715 = vld [vmem:[%s6 + $0x238] sm:$0xff]
    %v716 = vld [vmem:[%s6 + $0x240] sm:$0xff]
    %v717 = vld [vmem:[%s6 + $0x248] sm:$0xf]
    %v718 = vld [vmem:[%s6 + $0x24c] sm:$0xff]
    %v719 = vld [vmem:[%s6 + $0x254] sm:$0xff]
    %v720 = vld [vmem:[%s6 + $0x25c] sm:$0xff]
    %v721 = vld [vmem:[%s6 + $0x264] sm:$0xf]
    %v722 = vld [vmem:[%s6 + $0x268] sm:$0xff]
    %v723 = vld [vmem:[%s6 + $0x270] sm:$0xff]
    %v724 = vld [vmem:[%s6 + $0x278] sm:$0xff]
    %v725 = vld [vmem:[%s6 + $0x280] sm:$0xf]
    %v726 = vld [vmem:[%s6 + $0x284] sm:$0xff]
    %v727 = vld [vmem:[%s6 + $0x28c] sm:$0xff]
    %v728 = vld [vmem:[%s6 + $0x294] sm:$0xff]
    %v729 = vld [vmem:[%s6 + $0x29c] sm:$0xf]
    %v730 = vld [vmem:[%s6 + $0x2a0] sm:$0xff]
    %v731 = vld [vmem:[%s6 + $0x2a8] sm:$0xff]
    %v732 = vld [vmem:[%s6 + $0x2b0] sm:$0xff]
    %v733 = vld [vmem:[%s6 + $0x2b8] sm:$0xf]
    %v734 = vld [vmem:[%s6 + $0x2bc] sm:$0xff]
    %v735 = vld [vmem:[%s6 + $0x2c4] sm:$0xff]
    %v736 = vld [vmem:[%s6 + $0x2cc] sm:$0xff]
    %v737 = vld [vmem:[%s6 + $0x2d4] sm:$0xf]
    %v738 = vld [vmem:[%s6 + $0x2d8] sm:$0xff]
    %v739 = vld [vmem:[%s6 + $0x2e0] sm:$0xff]
    %v740 = vld [vmem:[%s6 + $0x2e8] sm:$0xff]
    %v741 = vld [vmem:[%s6 + $0x2f0] sm:$0xf]
    %v742 = vld [vmem:[%s6 + $0x2f4] sm:$0xff]
    %v743 = vld [vmem:[%s6 + $0x2fc] sm:$0xff]
    %v744 = vld [vmem:[%s6 + $0x304] sm:$0xff]
    %v745 = vld [vmem:[%s6 + $0x30c] sm:$0xf]
    %v746 = vld [vmem:[%s6 + $0x310] sm:$0xff]
    %v747 = vld [vmem:[%s6 + $0x318] sm:$0xff]
    %v748 = vld [vmem:[%s6 + $0x320] sm:$0xff]
    %v749 = vld [vmem:[%s6 + $0x328] sm:$0xf]
    %v750 = vld [vmem:[%s6 + $0x32c] sm:$0xff]
    %v751 = vld [vmem:[%s6 + $0x334] sm:$0xff]
    %v752 = vld [vmem:[%s6 + $0x33c] sm:$0xff]
    %v753 = vld [vmem:[%s6 + $0x344] sm:$0xf]
    %v754 = vld [vmem:[%s6 + $0x348] sm:$0xff]
    %v755 = vld [vmem:[%s6 + $0x350] sm:$0xff]
    %v756 = vld [vmem:[%s6 + $0x358] sm:$0xff]
    %v757 = vld [vmem:[%s6 + $0x360] sm:$0xf]
    %v758 = vld [vmem:[%s6 + $0x364] sm:$0xff]
    %v759 = vld [vmem:[%s6 + $0x36c] sm:$0xff]
    %v760 = vld [vmem:[%s6 + $0x374] sm:$0xff]
    %v761 = vld [vmem:[%s6 + $0x37c] sm:$0xf]
    %v762 = vld [vmem:[%s6 + $0x380] sm:$0xff]
    %v763 = vld [vmem:[%s6 + $0x388] sm:$0xff]
    %v764 = vld [vmem:[%s6 + $0x390] sm:$0xff]
    %v765 = vld [vmem:[%s6 + $0x398] sm:$0xf]
    %v766 = vld [vmem:[%s6 + $0x39c] sm:$0xff]
    %v767 = vld [vmem:[%s6 + $0x3a4] sm:$0xff]
    %v768 = vld [vmem:[%s6 + $0x3ac] sm:$0xff]
    %v769 = vld [vmem:[%s6 + $0x3b4] sm:$0xf]
    %v770 = vld [vmem:[%s6 + $0x3b8] sm:$0xff]
    %v771 = vld [vmem:[%s6 + $0x3c0] sm:$0xff]
    %v772 = vld [vmem:[%s6 + $0x3c8] sm:$0xff]
    %v773 = vld [vmem:[%s6 + $0x3d0] sm:$0xf]
    %v774 = vld [vmem:[%s6 + $0x3d4] sm:$0xff]
    %v775 = vld [vmem:[%s6 + $0x3dc] sm:$0xff]
    %v776 = vld [vmem:[%s6 + $0x3e4] sm:$0xff]
    %v777 = vld [vmem:[%s6 + $0x3ec] sm:$0xf]
    %v778 = vld [vmem:[%s6 + $0x3f0] sm:$0xff]
    %v779 = vld [vmem:[%s6 + $0x3f8] sm:$0xff]
    %v780 = vld [vmem:[%s6 + $0x400] sm:$0xff]
    %v781 = vld [vmem:[%s6 + $0x408] sm:$0xf]
    %v782 = vld [vmem:[%s6 + $0x40c] sm:$0xff]
    %v783 = vld [vmem:[%s6 + $0x414] sm:$0xff]
    %v784 = vld [vmem:[%s6 + $0x41c] sm:$0xff]
    %v785 = vld [vmem:[%s6 + $0x424] sm:$0xf]
    %v786 = vld [vmem:[%s6 + $0x428] sm:$0xff]
    %v787 = vld [vmem:[%s6 + $0x430] sm:$0xff]
    %v788 = vld [vmem:[%s6 + $0x438] sm:$0xff]
    %v789 = vld [vmem:[%s6 + $0x440] sm:$0xf]
    %v790 = vld [vmem:[%s6 + $0x444] sm:$0xff]
    %v791 = vld [vmem:[%s6 + $0x44c] sm:$0xff]
    %v792 = vld [vmem:[%s6 + $0x454] sm:$0xff]
    %v793 = vld [vmem:[%s6 + $0x45c] sm:$0xf]
    %v794 = vld [vmem:[%s6 + $0x460] sm:$0xff]
    %v795 = vld [vmem:[%s6 + $0x468] sm:$0xff]
    %v796 = vld [vmem:[%s6 + $0x470] sm:$0xff]
    %v797 = vld [vmem:[%s6 + $0x478] sm:$0xf]
    %v798 = vld [vmem:[%s6 + $0x47c] sm:$0xff]
    %v799 = vld [vmem:[%s6 + $0x484] sm:$0xff]
    %v800 = vld [vmem:[%s6 + $0x48c] sm:$0xff]
    %v801 = vld [vmem:[%s6 + $0x494] sm:$0xf]
    %v802 = vld [vmem:[%s6 + $0x498] sm:$0xff]
    %v803 = vld [vmem:[%s6 + $0x4a0] sm:$0xff]
    %v804 = vld [vmem:[%s6 + $0x4a8] sm:$0xff]
    %v805 = vld [vmem:[%s6 + $0x4b0] sm:$0xf]
    %v806 = vld [vmem:[%s6 + $0x4b4] sm:$0xff]
    %v807 = vld [vmem:[%s6 + $0x4bc] sm:$0xff]
    %v808 = vld [vmem:[%s6 + $0x4c4] sm:$0xff]
    %v809 = vld [vmem:[%s6 + $0x4cc] sm:$0xf]
    %v810 = vld [vmem:[%s6 + $0x4d0] sm:$0xff]
    %v811 = vld [vmem:[%s6 + $0x4d8] sm:$0xff]
    %v812 = vld [vmem:[%s6 + $0x4e0] sm:$0xff]
    %v813 = vld [vmem:[%s6 + $0x4e8] sm:$0xf]
    %v814 = vld [vmem:[%s6 + $0x4ec] sm:$0xff]
    %v815 = vld [vmem:[%s6 + $0x4f4] sm:$0xff]
    %v816 = vld [vmem:[%s6 + $0x4fc] sm:$0xff]
    %v817 = vld [vmem:[%s6 + $0x504] sm:$0xf]
    %v818 = vld [vmem:[%s6 + $0x508] sm:$0xff]
    %v819 = vld [vmem:[%s6 + $0x510] sm:$0xff]
    %v820 = vld [vmem:[%s6 + $0x518] sm:$0xff]
    %v821 = vld [vmem:[%s6 + $0x520] sm:$0xf]
    %v822 = vld [vmem:[%s6 + $0x524] sm:$0xff]
    %v823 = vld [vmem:[%s6 + $0x52c] sm:$0xff]
    %v824 = vld [vmem:[%s6 + $0x534] sm:$0xff]
    %v825 = vld [vmem:[%s6 + $0x53c] sm:$0xf]
    %v826 = vld [vmem:[%s6 + $0x540] sm:$0xff]
    %v827 = vld [vmem:[%s6 + $0x548] sm:$0xff]
    %v828 = vld [vmem:[%s6 + $0x550] sm:$0xff]
    %v829 = vld [vmem:[%s6 + $0x558] sm:$0xf]
    %v830 = vld [vmem:[%s6 + $0x55c] sm:$0xff]
    %v831 = vld [vmem:[%s6 + $0x564] sm:$0xff]
    %v832 = vld [vmem:[%s6 + $0x56c] sm:$0xff]
    %v833 = vld [vmem:[%s6 + $0x574] sm:$0xf]
    %v834 = vld [vmem:[%s6 + $0x578] sm:$0xff]
    %v835 = vld [vmem:[%s6 + $0x580] sm:$0xff]
    %v836 = vld [vmem:[%s6 + $0x588] sm:$0xff]
    %v837 = vld [vmem:[%s6 + $0x590] sm:$0xf]
    %v838 = vld [vmem:[%s6 + $0x594] sm:$0xff]
    %v839 = vld [vmem:[%s6 + $0x59c] sm:$0xff]
    %v840 = vld [vmem:[%s6 + $0x5a4] sm:$0xff]
    %v841 = vld [vmem:[%s6 + $0x5ac] sm:$0xf]
    %v842 = vld [vmem:[%s6 + $0x5b0] sm:$0xff]
    %v843 = vld [vmem:[%s6 + $0x5b8] sm:$0xff]
    %v844 = vld [vmem:[%s6 + $0x5c0] sm:$0xff]
    %v845 = vld [vmem:[%s6 + $0x5c8] sm:$0xf]
    %v846 = vld [vmem:[%s6 + $0x5cc] sm:$0xff]
    %v847 = vld [vmem:[%s6 + $0x5d4] sm:$0xff]
    %v848 = vld [vmem:[%s6 + $0x5dc] sm:$0xff]
    %v849 = vld [vmem:[%s6 + $0x5e4] sm:$0xf]
    %v850 = vld [vmem:[%s6 + $0x5e8] sm:$0xff]
    %v851 = vld [vmem:[%s6 + $0x5f0] sm:$0xff]
    %v852 = vld [vmem:[%s6 + $0x5f8] sm:$0xff]
    %v853 = vld [vmem:[%s6 + $0x600] sm:$0xf]
    %v854 = vld [vmem:[%s6 + $0x604] sm:$0xff]
    %v855 = vld [vmem:[%s6 + $0x60c] sm:$0xff]
    %v856 = vld [vmem:[%s6 + $0x614] sm:$0xff]
    %v857 = vld [vmem:[%s6 + $0x61c] sm:$0xf]
    %v858 = vld [vmem:[%s6 + $0x620] sm:$0xff]
    %v859 = vld [vmem:[%s6 + $0x628] sm:$0xff]
    %v860 = vld [vmem:[%s6 + $0x630] sm:$0xff]
    %v861 = vld [vmem:[%s6 + $0x638] sm:$0xf]
    %v862 = vld [vmem:[%s6 + $0x63c] sm:$0xff]
    %v863 = vld [vmem:[%s6 + $0x644] sm:$0xff]
    %v864 = vld [vmem:[%s6 + $0x64c] sm:$0xff]
    %v865 = vld [vmem:[%s6 + $0x654] sm:$0xf]
    %v866 = vld [vmem:[%s6 + $0x658] sm:$0xff]
    %v867 = vld [vmem:[%s6 + $0x660] sm:$0xff]
    %v868 = vld [vmem:[%s6 + $0x668] sm:$0xff]
    %v869 = vld [vmem:[%s6 + $0x670] sm:$0xf]
    %v870 = vld [vmem:[%s6 + $0x674] sm:$0xff]
    %v871 = vld [vmem:[%s6 + $0x67c] sm:$0xff]
    %v872 = vld [vmem:[%s6 + $0x684] sm:$0xff]
    %v873 = vld [vmem:[%s6 + $0x68c] sm:$0xf]
    %v874 = vld [vmem:[%s6 + $0x690] sm:$0xff]
    %v875 = vld [vmem:[%s6 + $0x698] sm:$0xff]
    %v876 = vld [vmem:[%s6 + $0x6a0] sm:$0xff]
    %v877 = vld [vmem:[%s6 + $0x6a8] sm:$0xf]
    %v878 = vld [vmem:[%s6 + $0x6ac] sm:$0xff]
    %v879 = vld [vmem:[%s6 + $0x6b4] sm:$0xff]
    %v880 = vld [vmem:[%s6 + $0x6bc] sm:$0xff]
    %v881 = vld [vmem:[%s6 + $0x6c4] sm:$0xf]
    %v882 = vld [vmem:[%s6 + $0x6c8] sm:$0xff]
    %v883 = vld [vmem:[%s6 + $0x6d0] sm:$0xff]
    %v884 = vld [vmem:[%s6 + $0x6d8] sm:$0xff]
    %v885 = vld [vmem:[%s6 + $0x6e0] sm:$0xf]
    %v886 = vld [vmem:[%s6 + $0x6e4] sm:$0xff]
    %v887 = vld [vmem:[%s6 + $0x6ec] sm:$0xff]
    %v888 = vld [vmem:[%s6 + $0x6f4] sm:$0xff]
    %v889 = vld [vmem:[%s6 + $0x6fc] sm:$0xf]
    %v890 = vld [vmem:[%s6 + $0x700] sm:$0xff]
    %v891 = vld [vmem:[%s6 + $0x708] sm:$0xff]
    %v892 = vld [vmem:[%s6 + $0x710] sm:$0xff]
    %v893 = vld [vmem:[%s6 + $0x718] sm:$0xf]
    %v894 = vld [vmem:[%s6 + $0x71c] sm:$0xff]
    %v895 = vld [vmem:[%s6 + $0x724] sm:$0xff]
    %v896 = vld [vmem:[%s6 + $0x72c] sm:$0xff]
    %v897 = vld [vmem:[%s6 + $0x734] sm:$0xf]
    %v898 = vld [vmem:[%s6 + $0x738] sm:$0xff]
    %v899 = vld [vmem:[%s6 + $0x740] sm:$0xff]
    %v900 = vld [vmem:[%s6 + $0x748] sm:$0xff]
    %v901 = vld [vmem:[%s6 + $0x750] sm:$0xf]
    %v902 = vld [vmem:[%s6 + $0x754] sm:$0xff]
    %v903 = vld [vmem:[%s6 + $0x75c] sm:$0xff]
    %v904 = vld [vmem:[%s6 + $0x764] sm:$0xff]
    %v905 = vld [vmem:[%s6 + $0x76c] sm:$0xf]
    %v906 = vld [vmem:[%s6 + $0x770] sm:$0xff]
    %v907 = vld [vmem:[%s6 + $0x778] sm:$0xff]
    %v908 = vld [vmem:[%s6 + $0x780] sm:$0xff]
    %v909 = vld [vmem:[%s6 + $0x788] sm:$0xf]
    %v910 = vld [vmem:[%s6 + $0x78c] sm:$0xff]
    %v911 = vld [vmem:[%s6 + $0x794] sm:$0xff]
    %v912 = vld [vmem:[%s6 + $0x79c] sm:$0xff]
    %v913 = vld [vmem:[%s6 + $0x7a4] sm:$0xf]
    %v914 = vld [vmem:[%s6 + $0x7a8] sm:$0xff]
    %v915 = vld [vmem:[%s6 + $0x7b0] sm:$0xff]
    %v916 = vld [vmem:[%s6 + $0x7b8] sm:$0xff]
    %v917 = vld [vmem:[%s6 + $0x7c0] sm:$0xf]
    %v918 = vld [vmem:[%s6 + $0x7c4] sm:$0xff]
    %v919 = vld [vmem:[%s6 + $0x7cc] sm:$0xff]
    %v920 = vld [vmem:[%s6 + $0x7d4] sm:$0xff]
    %v921 = vld [vmem:[%s6 + $0x7dc] sm:$0xf]
    %v922 = vld [vmem:[%s6 + $0x7e0] sm:$0xff]
    %v923 = vld [vmem:[%s6 + $0x7e8] sm:$0xff]
    %v924 = vld [vmem:[%s6 + $0x7f0] sm:$0xff]
    %v925 = vld [vmem:[%s6 + $0x7f8] sm:$0xf]
    %v926 = vld [vmem:[%s6 + $0x7fc] sm:$0xff]
    %v927 = vld [vmem:[%s6 + $0x804] sm:$0xff]
    %v928 = vld [vmem:[%s6 + $0x80c] sm:$0xff]
    %v929 = vld [vmem:[%s6 + $0x814] sm:$0xf]
    %v930 = vld [vmem:[%s6 + $0x818] sm:$0xff]
    %v931 = vld [vmem:[%s6 + $0x820] sm:$0xff]
    %v932 = vld [vmem:[%s6 + $0x828] sm:$0xff]
    %v933 = vld [vmem:[%s6 + $0x830] sm:$0xf]
    %v934 = vld [vmem:[%s6 + $0x834] sm:$0xff]
    %v935 = vld [vmem:[%s6 + $0x83c] sm:$0xff]
    %v936 = vld [vmem:[%s6 + $0x844] sm:$0xff]
    %v937 = vld [vmem:[%s6 + $0x84c] sm:$0xf]
    %v938 = vld [vmem:[%s6 + $0x850] sm:$0xff]
    %v939 = vld [vmem:[%s6 + $0x858] sm:$0xff]
    %v940 = vld [vmem:[%s6 + $0x860] sm:$0xff]
    %v941 = vld [vmem:[%s6 + $0x868] sm:$0xf]
    %v942 = vld [vmem:[%s6 + $0x86c] sm:$0xff]
    %v943 = vld [vmem:[%s6 + $0x874] sm:$0xff]
    %v944 = vld [vmem:[%s6 + $0x87c] sm:$0xff]
    %v945 = vld [vmem:[%s6 + $0x884] sm:$0xf]
    %v946 = vld [vmem:[%s6 + $0x888] sm:$0xff]
    %v947 = vld [vmem:[%s6 + $0x890] sm:$0xff]
    %v948 = vld [vmem:[%s6 + $0x898] sm:$0xff]
    %v949 = vld [vmem:[%s6 + $0x8a0] sm:$0xf]
    %v950 = vld [vmem:[%s6 + $0x8a4] sm:$0xff]
    %v951 = vld [vmem:[%s6 + $0x8ac] sm:$0xff]
    %v952 = vld [vmem:[%s6 + $0x8b4] sm:$0xff]
    %v953 = vld [vmem:[%s6 + $0x8bc] sm:$0xf]
    %v954 = vld [vmem:[%s6 + $0x8c0] sm:$0xff]
    %v955 = vld [vmem:[%s6 + $0x8c8] sm:$0xff]
    %v956 = vld [vmem:[%s6 + $0x8d0] sm:$0xff]
    %v957 = vld [vmem:[%s6 + $0x8d8] sm:$0xf]
    %v958 = vld [vmem:[%s6 + $0x8dc] sm:$0xff]
    %v959 = vld [vmem:[%s6 + $0x8e4] sm:$0xff]
    %v960 = vld [vmem:[%s6 + $0x8ec] sm:$0xff]
    %v961 = vld [vmem:[%s6 + $0x8f4] sm:$0xf]
    %v962 = vld [vmem:[%s6 + $0x8f8] sm:$0xff]
    %v963 = vld [vmem:[%s6 + $0x900] sm:$0xff]
    %v964 = vld [vmem:[%s6 + $0x908] sm:$0xff]
    %v965 = vld [vmem:[%s6 + $0x910] sm:$0xf]
    %v966 = vld [vmem:[%s6 + $0x914] sm:$0xff]
    %v967 = vld [vmem:[%s6 + $0x91c] sm:$0xff]
    %v968 = vld [vmem:[%s6 + $0x924] sm:$0xff]
    %v969 = vld [vmem:[%s6 + $0x92c] sm:$0xf]
    %v970 = vld [vmem:[%s6 + $0x930] sm:$0xff]
    %v971 = vld [vmem:[%s6 + $0x938] sm:$0xff]
    %v972 = vld [vmem:[%s6 + $0x940] sm:$0xff]
    %v973 = vld [vmem:[%s6 + $0x948] sm:$0xf]
    %v974 = vld [vmem:[%s6 + $0x94c] sm:$0xff]
    %v975 = vld [vmem:[%s6 + $0x954] sm:$0xff]
    %v976 = vld [vmem:[%s6 + $0x95c] sm:$0xff]
    %v977 = vld [vmem:[%s6 + $0x964] sm:$0xf]
    %v978 = vld [vmem:[%s6 + $0x968] sm:$0xff]
    %v979 = vld [vmem:[%s6 + $0x970] sm:$0xff]
    %v980 = vld [vmem:[%s6 + $0x978] sm:$0xff]
    %v981 = vld [vmem:[%s6 + $0x980] sm:$0xf]
    %v982 = vld [vmem:[%s6 + $0x984] sm:$0xff]
    %v983 = vld [vmem:[%s6 + $0x98c] sm:$0xff]
    %v984 = vld [vmem:[%s6 + $0x994] sm:$0xff]
    %v985 = vld [vmem:[%s6 + $0x99c] sm:$0xf]
    %v986 = vld [vmem:[%s6 + $0x9a0] sm:$0xff]
    %v987 = vld [vmem:[%s6 + $0x9a8] sm:$0xff]
    %v988 = vld [vmem:[%s6 + $0x9b0] sm:$0xff]
    %v989 = vld [vmem:[%s6 + $0x9b8] sm:$0xf]
    %v990 = vld [vmem:[%s6 + $0x9bc] sm:$0xff]
    %v991 = vld [vmem:[%s6 + $0x9c4] sm:$0xff]
    %v992 = vld [vmem:[%s6 + $0x9cc] sm:$0xff]
    %v993 = vld [vmem:[%s6 + $0x9d4] sm:$0xf]
    %v994 = vld [vmem:[%s6 + $0x9d8] sm:$0xff]
    %v995 = vld [vmem:[%s6 + $0x9e0] sm:$0xff]
    %v996 = vld [vmem:[%s6 + $0x9e8] sm:$0xff]
    %v997 = vld [vmem:[%s6 + $0x9f0] sm:$0xf]
    %v998 = vld [vmem:[%s6 + $0x9f4] sm:$0xff]
    %v999 = vld [vmem:[%s6 + $0x9fc] sm:$0xff]
    %v1000 = vld [vmem:[%s6 + $0xa04] sm:$0xff]
    %v1001 = vld [vmem:[%s6 + $0xa0c] sm:$0xf]
    %v1002 = vld [vmem:[%s6 + $0xa10] sm:$0xff]
    %v1003 = vld [vmem:[%s6 + $0xa18] sm:$0xff]
    %v1004 = vld [vmem:[%s6 + $0xa20] sm:$0xff]
    %v1005 = vld [vmem:[%s6 + $0xa28] sm:$0xf]
    %v1006 = vld [vmem:[%s6 + $0xa2c] sm:$0xff]
    %v1007 = vld [vmem:[%s6 + $0xa34] sm:$0xff]
    %v1008 = vld [vmem:[%s6 + $0xa3c] sm:$0xff]
    %v1009 = vld [vmem:[%s6 + $0xa44] sm:$0xf]
    %v1010 = vld [vmem:[%s6 + $0xa48] sm:$0xff]
    %v1011 = vld [vmem:[%s6 + $0xa50] sm:$0xff]
    %v1012 = vld [vmem:[%s6 + $0xa58] sm:$0xff]
    %v1013 = vld [vmem:[%s6 + $0xa60] sm:$0xf]
    %v1014 = vld [vmem:[%s6 + $0xa64] sm:$0xff]
    %v1015 = vld [vmem:[%s6 + $0xa6c] sm:$0xff]
    %v1016 = vld [vmem:[%s6 + $0xa74] sm:$0xff]
    %v1017 = vld [vmem:[%s6 + $0xa7c] sm:$0xf]
    %v1020 = vcombine.high %v74, %v74
    %v1022 = vunpack.c.l.s4 1983009808
    %v1023 = vunpack.c.0.s8 %v1022
    %v1024 = vlaneseq
    %v1025 = vshrl.u32 %v1024, 7
    %v1026 = vsub.s32 %v1023, %v1025
    %v1027 = vrot.slane %v74, %v1026
    %v1029 = vunpack.c.l.s4 1983009808
    %v1030 = vunpack.c.0.s8 %v1029
    %v1031 = vlaneseq
    %v1032 = vshrl.u32 %v1031, 7
    %v1033 = vsub.s32 %v1030, %v1032
    %v1034 = vrot.slane %v1020, %v1033
    %v1035 = vcombine.high %v1027, %v1027
    %v1036 = vcombine.high %v1034, %v1034
    %v1038 = vunpack.c.l.s4 1983009808
    %v1039 = vunpack.c.0.s8 %v1038
    %v1040 = vlaneseq
    %v1041 = vshrl.u32 %v1040, 7
    %v1042 = vsub.s32 %v1039, %v1041
    %v1043 = vrot.slane %v75, %v1042
    %v1044 = vcombine.high %v1043, %v1043
    %v1051 = vpack.c.bf16 %v1027, %v1027
    %v1052 = vpack.c.bf16 %v1035, %v1035
    %v1053 = vpack.c.bf16 %v1034, %v1034
    %v1054 = vpack.c.bf16 %v1036, %v1036
    %v1055 = vpack.c.bf16 %v1043, %v1043
    %v1056 = vpack.c.bf16 %v1044, %v1044
    %v1057 = vld [vmem:[%s7] sm:$0x7f]
    %v1059 = vlaneseq
    %v1060 = vshrl.u32 %v1059, 7
    %v1061 = vsub.s32 0, %v1060
    %v1062 = vrot.slane %v1057, %v1061
    %v1063 = vlaneseq
    %v1064 = vshrl.u32 %v1063, 7
    %v1065 = vsub.s32 1, %v1064
    %v1066 = vrot.slane %v1057, %v1065
    %v1067 = vlaneseq
    %v1068 = vshrl.u32 %v1067, 7
    %v1069 = vsub.s32 2, %v1068
    %v1070 = vrot.slane %v1057, %v1069
    %v1071 = vlaneseq
    %v1072 = vshrl.u32 %v1071, 7
    %v1073 = vsub.s32 3, %v1072
    %v1074 = vrot.slane %v1057, %v1073
    %v1075 = vlaneseq
    %v1076 = vshrl.u32 %v1075, 7
    %v1077 = vsub.s32 4, %v1076
    %v1078 = vrot.slane %v1057, %v1077
    %v1079 = vlaneseq
    %v1080 = vshrl.u32 %v1079, 7
    %v1081 = vsub.s32 5, %v1080
    %v1082 = vrot.slane %v1057, %v1081
    %v1083 = vlaneseq
    %v1084 = vshrl.u32 %v1083, 7
    %v1085 = vsub.s32 6, %v1084
    %v1086 = vrot.slane %v1057, %v1085
    %v1478 = vunpack.c.l.b16 %v634
    %v1479 = vunpack.c.h.b16 %v634
    %v1480 = vunpack.c.l.b16 %v635
    %v1481 = vunpack.c.h.b16 %v635
    %v1482 = vunpack.c.l.b16 %v636
    %v1483 = vunpack.c.h.b16 %v636
    %v1484 = vunpack.c.l.b16 %v637
    %v1485 = vunpack.c.l.b16 %v638
    %v1486 = vunpack.c.h.b16 %v638
    %v1487 = vunpack.c.l.b16 %v639
    %v1488 = vunpack.c.h.b16 %v639
    %v1489 = vunpack.c.l.b16 %v640
    %v1490 = vunpack.c.h.b16 %v640
    %v1491 = vunpack.c.l.b16 %v641
    %v1492 = vunpack.c.l.b16 %v642
    %v1493 = vunpack.c.h.b16 %v642
    %v1494 = vunpack.c.l.b16 %v643
    %v1495 = vunpack.c.h.b16 %v643
    %v1496 = vunpack.c.l.b16 %v644
    %v1497 = vunpack.c.h.b16 %v644
    %v1498 = vunpack.c.l.b16 %v645
    %v1499 = vunpack.c.l.b16 %v646
    %v1500 = vunpack.c.h.b16 %v646
    %v1501 = vunpack.c.l.b16 %v647
    %v1502 = vunpack.c.h.b16 %v647
    %v1503 = vunpack.c.l.b16 %v648
    %v1504 = vunpack.c.h.b16 %v648
    %v1505 = vunpack.c.l.b16 %v649
    %v1506 = vunpack.c.l.b16 %v650
    %v1507 = vunpack.c.h.b16 %v650
    %v1508 = vunpack.c.l.b16 %v651
    %v1509 = vunpack.c.h.b16 %v651
    %v1510 = vunpack.c.l.b16 %v652
    %v1511 = vunpack.c.h.b16 %v652
    %v1512 = vunpack.c.l.b16 %v653
    %v1513 = vunpack.c.l.b16 %v654
    %v1514 = vunpack.c.h.b16 %v654
    %v1515 = vunpack.c.l.b16 %v655
    %v1516 = vunpack.c.h.b16 %v655
    %v1517 = vunpack.c.l.b16 %v656
    %v1518 = vunpack.c.h.b16 %v656
    %v1519 = vunpack.c.l.b16 %v657
    %v1520 = vunpack.c.l.b16 %v658
    %v1521 = vunpack.c.h.b16 %v658
    %v1522 = vunpack.c.l.b16 %v659
    %v1523 = vunpack.c.h.b16 %v659
    %v1524 = vunpack.c.l.b16 %v660
    %v1525 = vunpack.c.h.b16 %v660
    %v1526 = vunpack.c.l.b16 %v661
    %v1527 = vunpack.c.l.b16 %v662
    %v1528 = vunpack.c.h.b16 %v662
    %v1529 = vunpack.c.l.b16 %v663
    %v1530 = vunpack.c.h.b16 %v663
    %v1531 = vunpack.c.l.b16 %v664
    %v1532 = vunpack.c.h.b16 %v664
    %v1533 = vunpack.c.l.b16 %v665
    %v1534 = vunpack.c.l.b16 %v666
    %v1535 = vunpack.c.h.b16 %v666
    %v1536 = vunpack.c.l.b16 %v667
    %v1537 = vunpack.c.h.b16 %v667
    %v1538 = vunpack.c.l.b16 %v668
    %v1539 = vunpack.c.h.b16 %v668
    %v1540 = vunpack.c.l.b16 %v669
    %v1541 = vunpack.c.l.b16 %v670
    %v1542 = vunpack.c.h.b16 %v670
    %v1543 = vunpack.c.l.b16 %v671
    %v1544 = vunpack.c.h.b16 %v671
    %v1545 = vunpack.c.l.b16 %v672
    %v1546 = vunpack.c.h.b16 %v672
    %v1547 = vunpack.c.l.b16 %v673
    %v1548 = vunpack.c.l.b16 %v674
    %v1549 = vunpack.c.h.b16 %v674
    %v1550 = vunpack.c.l.b16 %v675
    %v1551 = vunpack.c.h.b16 %v675
    %v1552 = vunpack.c.l.b16 %v676
    %v1553 = vunpack.c.h.b16 %v676
    %v1554 = vunpack.c.l.b16 %v677
    %v1555 = vunpack.c.l.b16 %v678
    %v1556 = vunpack.c.h.b16 %v678
    %v1557 = vunpack.c.l.b16 %v679
    %v1558 = vunpack.c.h.b16 %v679
    %v1559 = vunpack.c.l.b16 %v680
    %v1560 = vunpack.c.h.b16 %v680
    %v1561 = vunpack.c.l.b16 %v681
    %v1562 = vunpack.c.l.b16 %v682
    %v1563 = vunpack.c.h.b16 %v682
    %v1564 = vunpack.c.l.b16 %v683
    %v1565 = vunpack.c.h.b16 %v683
    %v1566 = vunpack.c.l.b16 %v684
    %v1567 = vunpack.c.h.b16 %v684
    %v1568 = vunpack.c.l.b16 %v685
    %v1569 = vunpack.c.l.b16 %v686
    %v1570 = vunpack.c.h.b16 %v686
    %v1571 = vunpack.c.l.b16 %v687
    %v1572 = vunpack.c.h.b16 %v687
    %v1573 = vunpack.c.l.b16 %v688
    %v1574 = vunpack.c.h.b16 %v688
    %v1575 = vunpack.c.l.b16 %v689
    %v1576 = vunpack.c.l.b16 %v690
    %v1577 = vunpack.c.h.b16 %v690
    %v1578 = vunpack.c.l.b16 %v691
    %v1579 = vunpack.c.h.b16 %v691
    %v1580 = vunpack.c.l.b16 %v692
    %v1581 = vunpack.c.h.b16 %v692
    %v1582 = vunpack.c.l.b16 %v693
    %v1583 = vunpack.c.l.b16 %v694
    %v1584 = vunpack.c.h.b16 %v694
    %v1585 = vunpack.c.l.b16 %v695
    %v1586 = vunpack.c.h.b16 %v695
    %v1587 = vunpack.c.l.b16 %v696
    %v1588 = vunpack.c.h.b16 %v696
    %v1589 = vunpack.c.l.b16 %v697
    %v1590 = vunpack.c.l.b16 %v698
    %v1591 = vunpack.c.h.b16 %v698
    %v1592 = vunpack.c.l.b16 %v699
    %v1593 = vunpack.c.h.b16 %v699
    %v1594 = vunpack.c.l.b16 %v700
    %v1595 = vunpack.c.h.b16 %v700
    %v1596 = vunpack.c.l.b16 %v701
    %v1597 = vunpack.c.l.b16 %v702
    %v1598 = vunpack.c.h.b16 %v702
    %v1599 = vunpack.c.l.b16 %v703
    %v1600 = vunpack.c.h.b16 %v703
    %v1601 = vunpack.c.l.b16 %v704
    %v1602 = vunpack.c.h.b16 %v704
    %v1603 = vunpack.c.l.b16 %v705
    %v1604 = vunpack.c.l.b16 %v706
    %v1605 = vunpack.c.h.b16 %v706
    %v1606 = vunpack.c.l.b16 %v707
    %v1607 = vunpack.c.h.b16 %v707
    %v1608 = vunpack.c.l.b16 %v708
    %v1609 = vunpack.c.h.b16 %v708
    %v1610 = vunpack.c.l.b16 %v709
    %v1611 = vunpack.c.l.b16 %v710
    %v1612 = vunpack.c.h.b16 %v710
    %v1613 = vunpack.c.l.b16 %v711
    %v1614 = vunpack.c.h.b16 %v711
    %v1615 = vunpack.c.l.b16 %v712
    %v1616 = vunpack.c.h.b16 %v712
    %v1617 = vunpack.c.l.b16 %v713
    %v1618 = vunpack.c.l.b16 %v714
    %v1619 = vunpack.c.h.b16 %v714
    %v1620 = vunpack.c.l.b16 %v715
    %v1621 = vunpack.c.h.b16 %v715
    %v1622 = vunpack.c.l.b16 %v716
    %v1623 = vunpack.c.h.b16 %v716
    %v1624 = vunpack.c.l.b16 %v717
    %v1625 = vunpack.c.l.b16 %v718
    %v1626 = vunpack.c.h.b16 %v718
    %v1627 = vunpack.c.l.b16 %v719
    %v1628 = vunpack.c.h.b16 %v719
    %v1629 = vunpack.c.l.b16 %v720
    %v1630 = vunpack.c.h.b16 %v720
    %v1631 = vunpack.c.l.b16 %v721
    %v1632 = vunpack.c.l.b16 %v722
    %v1633 = vunpack.c.h.b16 %v722
    %v1634 = vunpack.c.l.b16 %v723
    %v1635 = vunpack.c.h.b16 %v723
    %v1636 = vunpack.c.l.b16 %v724
    %v1637 = vunpack.c.h.b16 %v724
    %v1638 = vunpack.c.l.b16 %v725
    %v1639 = vunpack.c.l.b16 %v726
    %v1640 = vunpack.c.h.b16 %v726
    %v1641 = vunpack.c.l.b16 %v727
    %v1642 = vunpack.c.h.b16 %v727
    %v1643 = vunpack.c.l.b16 %v728
    %v1644 = vunpack.c.h.b16 %v728
    %v1645 = vunpack.c.l.b16 %v729
    %v1646 = vunpack.c.l.b16 %v730
    %v1647 = vunpack.c.h.b16 %v730
    %v1648 = vunpack.c.l.b16 %v731
    %v1649 = vunpack.c.h.b16 %v731
    %v1650 = vunpack.c.l.b16 %v732
    %v1651 = vunpack.c.h.b16 %v732
    %v1652 = vunpack.c.l.b16 %v733
    %v1653 = vunpack.c.l.b16 %v734
    %v1654 = vunpack.c.h.b16 %v734
    %v1655 = vunpack.c.l.b16 %v735
    %v1656 = vunpack.c.h.b16 %v735
    %v1657 = vunpack.c.l.b16 %v736
    %v1658 = vunpack.c.h.b16 %v736
    %v1659 = vunpack.c.l.b16 %v737
    %v1660 = vunpack.c.l.b16 %v738
    %v1661 = vunpack.c.h.b16 %v738
    %v1662 = vunpack.c.l.b16 %v739
    %v1663 = vunpack.c.h.b16 %v739
    %v1664 = vunpack.c.l.b16 %v740
    %v1665 = vunpack.c.h.b16 %v740
    %v1666 = vunpack.c.l.b16 %v741
    %v1667 = vunpack.c.l.b16 %v742
    %v1668 = vunpack.c.h.b16 %v742
    %v1669 = vunpack.c.l.b16 %v743
    %v1670 = vunpack.c.h.b16 %v743
    %v1671 = vunpack.c.l.b16 %v744
    %v1672 = vunpack.c.h.b16 %v744
    %v1673 = vunpack.c.l.b16 %v745
    %v1674 = vunpack.c.l.b16 %v746
    %v1675 = vunpack.c.h.b16 %v746
    %v1676 = vunpack.c.l.b16 %v747
    %v1677 = vunpack.c.h.b16 %v747
    %v1678 = vunpack.c.l.b16 %v748
    %v1679 = vunpack.c.h.b16 %v748
    %v1680 = vunpack.c.l.b16 %v749
    %v1681 = vunpack.c.l.b16 %v750
    %v1682 = vunpack.c.h.b16 %v750
    %v1683 = vunpack.c.l.b16 %v751
    %v1684 = vunpack.c.h.b16 %v751
    %v1685 = vunpack.c.l.b16 %v752
    %v1686 = vunpack.c.h.b16 %v752
    %v1687 = vunpack.c.l.b16 %v753
    %v1688 = vunpack.c.l.b16 %v754
    %v1689 = vunpack.c.h.b16 %v754
    %v1690 = vunpack.c.l.b16 %v755
    %v1691 = vunpack.c.h.b16 %v755
    %v1692 = vunpack.c.l.b16 %v756
    %v1693 = vunpack.c.h.b16 %v756
    %v1694 = vunpack.c.l.b16 %v757
    %v1695 = vunpack.c.l.b16 %v758
    %v1696 = vunpack.c.h.b16 %v758
    %v1697 = vunpack.c.l.b16 %v759
    %v1698 = vunpack.c.h.b16 %v759
    %v1699 = vunpack.c.l.b16 %v760
    %v1700 = vunpack.c.h.b16 %v760
    %v1701 = vunpack.c.l.b16 %v761
    %v1702 = vunpack.c.l.b16 %v762
    %v1703 = vunpack.c.h.b16 %v762
    %v1704 = vunpack.c.l.b16 %v763
    %v1705 = vunpack.c.h.b16 %v763
    %v1706 = vunpack.c.l.b16 %v764
    %v1707 = vunpack.c.h.b16 %v764
    %v1708 = vunpack.c.l.b16 %v765
    %v1709 = vunpack.c.l.b16 %v766
    %v1710 = vunpack.c.h.b16 %v766
    %v1711 = vunpack.c.l.b16 %v767
    %v1712 = vunpack.c.h.b16 %v767
    %v1713 = vunpack.c.l.b16 %v768
    %v1714 = vunpack.c.h.b16 %v768
    %v1715 = vunpack.c.l.b16 %v769
    %v1716 = vunpack.c.l.b16 %v770
    %v1717 = vunpack.c.h.b16 %v770
    %v1718 = vunpack.c.l.b16 %v771
    %v1719 = vunpack.c.h.b16 %v771
    %v1720 = vunpack.c.l.b16 %v772
    %v1721 = vunpack.c.h.b16 %v772
    %v1722 = vunpack.c.l.b16 %v773
    %v1723 = vunpack.c.l.b16 %v774
    %v1724 = vunpack.c.h.b16 %v774
    %v1725 = vunpack.c.l.b16 %v775
    %v1726 = vunpack.c.h.b16 %v775
    %v1727 = vunpack.c.l.b16 %v776
    %v1728 = vunpack.c.h.b16 %v776
    %v1729 = vunpack.c.l.b16 %v777
    %v1730 = vunpack.c.l.b16 %v778
    %v1731 = vunpack.c.h.b16 %v778
    %v1732 = vunpack.c.l.b16 %v779
    %v1733 = vunpack.c.h.b16 %v779
    %v1734 = vunpack.c.l.b16 %v780
    %v1735 = vunpack.c.h.b16 %v780
    %v1736 = vunpack.c.l.b16 %v781
    %v1737 = vunpack.c.l.b16 %v782
    %v1738 = vunpack.c.h.b16 %v782
    %v1739 = vunpack.c.l.b16 %v783
    %v1740 = vunpack.c.h.b16 %v783
    %v1741 = vunpack.c.l.b16 %v784
    %v1742 = vunpack.c.h.b16 %v784
    %v1743 = vunpack.c.l.b16 %v785
    %v1744 = vunpack.c.l.b16 %v786
    %v1745 = vunpack.c.h.b16 %v786
    %v1746 = vunpack.c.l.b16 %v787
    %v1747 = vunpack.c.h.b16 %v787
    %v1748 = vunpack.c.l.b16 %v788
    %v1749 = vunpack.c.h.b16 %v788
    %v1750 = vunpack.c.l.b16 %v789
    %v1751 = vunpack.c.l.b16 %v790
    %v1752 = vunpack.c.h.b16 %v790
    %v1753 = vunpack.c.l.b16 %v791
    %v1754 = vunpack.c.h.b16 %v791
    %v1755 = vunpack.c.l.b16 %v792
    %v1756 = vunpack.c.h.b16 %v792
    %v1757 = vunpack.c.l.b16 %v793
    %v1758 = vunpack.c.l.b16 %v794
    %v1759 = vunpack.c.h.b16 %v794
    %v1760 = vunpack.c.l.b16 %v795
    %v1761 = vunpack.c.h.b16 %v795
    %v1762 = vunpack.c.l.b16 %v796
    %v1763 = vunpack.c.h.b16 %v796
    %v1764 = vunpack.c.l.b16 %v797
    %v1765 = vunpack.c.l.b16 %v798
    %v1766 = vunpack.c.h.b16 %v798
    %v1767 = vunpack.c.l.b16 %v799
    %v1768 = vunpack.c.h.b16 %v799
    %v1769 = vunpack.c.l.b16 %v800
    %v1770 = vunpack.c.h.b16 %v800
    %v1771 = vunpack.c.l.b16 %v801
    %v1772 = vunpack.c.l.b16 %v802
    %v1773 = vunpack.c.h.b16 %v802
    %v1774 = vunpack.c.l.b16 %v803
    %v1775 = vunpack.c.h.b16 %v803
    %v1776 = vunpack.c.l.b16 %v804
    %v1777 = vunpack.c.h.b16 %v804
    %v1778 = vunpack.c.l.b16 %v805
    %v1779 = vunpack.c.l.b16 %v806
    %v1780 = vunpack.c.h.b16 %v806
    %v1781 = vunpack.c.l.b16 %v807
    %v1782 = vunpack.c.h.b16 %v807
    %v1783 = vunpack.c.l.b16 %v808
    %v1784 = vunpack.c.h.b16 %v808
    %v1785 = vunpack.c.l.b16 %v809
    %v1786 = vunpack.c.l.b16 %v810
    %v1787 = vunpack.c.h.b16 %v810
    %v1788 = vunpack.c.l.b16 %v811
    %v1789 = vunpack.c.h.b16 %v811
    %v1790 = vunpack.c.l.b16 %v812
    %v1791 = vunpack.c.h.b16 %v812
    %v1792 = vunpack.c.l.b16 %v813
    %v1793 = vunpack.c.l.b16 %v814
    %v1794 = vunpack.c.h.b16 %v814
    %v1795 = vunpack.c.l.b16 %v815
    %v1796 = vunpack.c.h.b16 %v815
    %v1797 = vunpack.c.l.b16 %v816
    %v1798 = vunpack.c.h.b16 %v816
    %v1799 = vunpack.c.l.b16 %v817
    %v1800 = vunpack.c.l.b16 %v818
    %v1801 = vunpack.c.h.b16 %v818
    %v1802 = vunpack.c.l.b16 %v819
    %v1803 = vunpack.c.h.b16 %v819
    %v1804 = vunpack.c.l.b16 %v820
    %v1805 = vunpack.c.h.b16 %v820
    %v1806 = vunpack.c.l.b16 %v821
    %v1807 = vunpack.c.l.b16 %v822
    %v1808 = vunpack.c.h.b16 %v822
    %v1809 = vunpack.c.l.b16 %v823
    %v1810 = vunpack.c.h.b16 %v823
    %v1811 = vunpack.c.l.b16 %v824
    %v1812 = vunpack.c.h.b16 %v824
    %v1813 = vunpack.c.l.b16 %v825
    %v1814 = vunpack.c.l.b16 %v826
    %v1815 = vunpack.c.h.b16 %v826
    %v1816 = vunpack.c.l.b16 %v827
    %v1817 = vunpack.c.h.b16 %v827
    %v1818 = vunpack.c.l.b16 %v828
    %v1819 = vunpack.c.h.b16 %v828
    %v1820 = vunpack.c.l.b16 %v829
    %v1821 = vunpack.c.l.b16 %v830
    %v1822 = vunpack.c.h.b16 %v830
    %v1823 = vunpack.c.l.b16 %v831
    %v1824 = vunpack.c.h.b16 %v831
    %v1825 = vunpack.c.l.b16 %v832
    %v1826 = vunpack.c.h.b16 %v832
    %v1827 = vunpack.c.l.b16 %v833
    %v1828 = vunpack.c.l.b16 %v834
    %v1829 = vunpack.c.h.b16 %v834
    %v1830 = vunpack.c.l.b16 %v835
    %v1831 = vunpack.c.h.b16 %v835
    %v1832 = vunpack.c.l.b16 %v836
    %v1833 = vunpack.c.h.b16 %v836
    %v1834 = vunpack.c.l.b16 %v837
    %v1835 = vunpack.c.l.b16 %v838
    %v1836 = vunpack.c.h.b16 %v838
    %v1837 = vunpack.c.l.b16 %v839
    %v1838 = vunpack.c.h.b16 %v839
    %v1839 = vunpack.c.l.b16 %v840
    %v1840 = vunpack.c.h.b16 %v840
    %v1841 = vunpack.c.l.b16 %v841
    %v1842 = vunpack.c.l.b16 %v842
    %v1843 = vunpack.c.h.b16 %v842
    %v1844 = vunpack.c.l.b16 %v843
    %v1845 = vunpack.c.h.b16 %v843
    %v1846 = vunpack.c.l.b16 %v844
    %v1847 = vunpack.c.h.b16 %v844
    %v1848 = vunpack.c.l.b16 %v845
    %v1849 = vunpack.c.l.b16 %v846
    %v1850 = vunpack.c.h.b16 %v846
    %v1851 = vunpack.c.l.b16 %v847
    %v1852 = vunpack.c.h.b16 %v847
    %v1853 = vunpack.c.l.b16 %v848
    %v1854 = vunpack.c.h.b16 %v848
    %v1855 = vunpack.c.l.b16 %v849
    %v1856 = vunpack.c.l.b16 %v850
    %v1857 = vunpack.c.h.b16 %v850
    %v1858 = vunpack.c.l.b16 %v851
    %v1859 = vunpack.c.h.b16 %v851
    %v1860 = vunpack.c.l.b16 %v852
    %v1861 = vunpack.c.h.b16 %v852
    %v1862 = vunpack.c.l.b16 %v853
    %v1863 = vunpack.c.l.b16 %v854
    %v1864 = vunpack.c.h.b16 %v854
    %v1865 = vunpack.c.l.b16 %v855
    %v1866 = vunpack.c.h.b16 %v855
    %v1867 = vunpack.c.l.b16 %v856
    %v1868 = vunpack.c.h.b16 %v856
    %v1869 = vunpack.c.l.b16 %v857
    %v1870 = vunpack.c.l.b16 %v858
    %v1871 = vunpack.c.h.b16 %v858
    %v1872 = vunpack.c.l.b16 %v859
    %v1873 = vunpack.c.h.b16 %v859
    %v1874 = vunpack.c.l.b16 %v860
    %v1875 = vunpack.c.h.b16 %v860
    %v1876 = vunpack.c.l.b16 %v861
    %v1877 = vunpack.c.l.b16 %v862
    %v1878 = vunpack.c.h.b16 %v862
    %v1879 = vunpack.c.l.b16 %v863
    %v1880 = vunpack.c.h.b16 %v863
    %v1881 = vunpack.c.l.b16 %v864
    %v1882 = vunpack.c.h.b16 %v864
    %v1883 = vunpack.c.l.b16 %v865
    %v1884 = vunpack.c.l.b16 %v866
    %v1885 = vunpack.c.h.b16 %v866
    %v1886 = vunpack.c.l.b16 %v867
    %v1887 = vunpack.c.h.b16 %v867
    %v1888 = vunpack.c.l.b16 %v868
    %v1889 = vunpack.c.h.b16 %v868
    %v1890 = vunpack.c.l.b16 %v869
    %v1891 = vunpack.c.l.b16 %v870
    %v1892 = vunpack.c.h.b16 %v870
    %v1893 = vunpack.c.l.b16 %v871
    %v1894 = vunpack.c.h.b16 %v871
    %v1895 = vunpack.c.l.b16 %v872
    %v1896 = vunpack.c.h.b16 %v872
    %v1897 = vunpack.c.l.b16 %v873
    %v1898 = vunpack.c.l.b16 %v874
    %v1899 = vunpack.c.h.b16 %v874
    %v1900 = vunpack.c.l.b16 %v875
    %v1901 = vunpack.c.h.b16 %v875
    %v1902 = vunpack.c.l.b16 %v876
    %v1903 = vunpack.c.h.b16 %v876
    %v1904 = vunpack.c.l.b16 %v877
    %v1905 = vunpack.c.l.b16 %v878
    %v1906 = vunpack.c.h.b16 %v878
    %v1907 = vunpack.c.l.b16 %v879
    %v1908 = vunpack.c.h.b16 %v879
    %v1909 = vunpack.c.l.b16 %v880
    %v1910 = vunpack.c.h.b16 %v880
    %v1911 = vunpack.c.l.b16 %v881
    %v1912 = vunpack.c.l.b16 %v882
    %v1913 = vunpack.c.h.b16 %v882
    %v1914 = vunpack.c.l.b16 %v883
    %v1915 = vunpack.c.h.b16 %v883
    %v1916 = vunpack.c.l.b16 %v884
    %v1917 = vunpack.c.h.b16 %v884
    %v1918 = vunpack.c.l.b16 %v885
    %v1919 = vunpack.c.l.b16 %v886
    %v1920 = vunpack.c.h.b16 %v886
    %v1921 = vunpack.c.l.b16 %v887
    %v1922 = vunpack.c.h.b16 %v887
    %v1923 = vunpack.c.l.b16 %v888
    %v1924 = vunpack.c.h.b16 %v888
    %v1925 = vunpack.c.l.b16 %v889
    %v1926 = vunpack.c.l.b16 %v890
    %v1927 = vunpack.c.h.b16 %v890
    %v1928 = vunpack.c.l.b16 %v891
    %v1929 = vunpack.c.h.b16 %v891
    %v1930 = vunpack.c.l.b16 %v892
    %v1931 = vunpack.c.h.b16 %v892
    %v1932 = vunpack.c.l.b16 %v893
    %v1933 = vunpack.c.l.b16 %v894
    %v1934 = vunpack.c.h.b16 %v894
    %v1935 = vunpack.c.l.b16 %v895
    %v1936 = vunpack.c.h.b16 %v895
    %v1937 = vunpack.c.l.b16 %v896
    %v1938 = vunpack.c.h.b16 %v896
    %v1939 = vunpack.c.l.b16 %v897
    %v1940 = vunpack.c.l.b16 %v898
    %v1941 = vunpack.c.h.b16 %v898
    %v1942 = vunpack.c.l.b16 %v899
    %v1943 = vunpack.c.h.b16 %v899
    %v1944 = vunpack.c.l.b16 %v900
    %v1945 = vunpack.c.h.b16 %v900
    %v1946 = vunpack.c.l.b16 %v901
    %v1947 = vunpack.c.l.b16 %v902
    %v1948 = vunpack.c.h.b16 %v902
    %v1949 = vunpack.c.l.b16 %v903
    %v1950 = vunpack.c.h.b16 %v903
    %v1951 = vunpack.c.l.b16 %v904
    %v1952 = vunpack.c.h.b16 %v904
    %v1953 = vunpack.c.l.b16 %v905
    %v1954 = vunpack.c.l.b16 %v906
    %v1955 = vunpack.c.h.b16 %v906
    %v1956 = vunpack.c.l.b16 %v907
    %v1957 = vunpack.c.h.b16 %v907
    %v1958 = vunpack.c.l.b16 %v908
    %v1959 = vunpack.c.h.b16 %v908
    %v1960 = vunpack.c.l.b16 %v909
    %v1961 = vunpack.c.l.b16 %v910
    %v1962 = vunpack.c.h.b16 %v910
    %v1963 = vunpack.c.l.b16 %v911
    %v1964 = vunpack.c.h.b16 %v911
    %v1965 = vunpack.c.l.b16 %v912
    %v1966 = vunpack.c.h.b16 %v912
    %v1967 = vunpack.c.l.b16 %v913
    %v1968 = vunpack.c.l.b16 %v914
    %v1969 = vunpack.c.h.b16 %v914
    %v1970 = vunpack.c.l.b16 %v915
    %v1971 = vunpack.c.h.b16 %v915
    %v1972 = vunpack.c.l.b16 %v916
    %v1973 = vunpack.c.h.b16 %v916
    %v1974 = vunpack.c.l.b16 %v917
    %v1975 = vunpack.c.l.b16 %v918
    %v1976 = vunpack.c.h.b16 %v918
    %v1977 = vunpack.c.l.b16 %v919
    %v1978 = vunpack.c.h.b16 %v919
    %v1979 = vunpack.c.l.b16 %v920
    %v1980 = vunpack.c.h.b16 %v920
    %v1981 = vunpack.c.l.b16 %v921
    %v1982 = vunpack.c.l.b16 %v922
    %v1983 = vunpack.c.h.b16 %v922
    %v1984 = vunpack.c.l.b16 %v923
    %v1985 = vunpack.c.h.b16 %v923
    %v1986 = vunpack.c.l.b16 %v924
    %v1987 = vunpack.c.h.b16 %v924
    %v1988 = vunpack.c.l.b16 %v925
    %v1989 = vunpack.c.l.b16 %v926
    %v1990 = vunpack.c.h.b16 %v926
    %v1991 = vunpack.c.l.b16 %v927
    %v1992 = vunpack.c.h.b16 %v927
    %v1993 = vunpack.c.l.b16 %v928
    %v1994 = vunpack.c.h.b16 %v928
    %v1995 = vunpack.c.l.b16 %v929
    %v1996 = vunpack.c.l.b16 %v930
    %v1997 = vunpack.c.h.b16 %v930
    %v1998 = vunpack.c.l.b16 %v931
    %v1999 = vunpack.c.h.b16 %v931
    %v2000 = vunpack.c.l.b16 %v932
    %v2001 = vunpack.c.h.b16 %v932
    %v2002 = vunpack.c.l.b16 %v933
    %v2003 = vunpack.c.l.b16 %v934
    %v2004 = vunpack.c.h.b16 %v934
    %v2005 = vunpack.c.l.b16 %v935
    %v2006 = vunpack.c.h.b16 %v935
    %v2007 = vunpack.c.l.b16 %v936
    %v2008 = vunpack.c.h.b16 %v936
    %v2009 = vunpack.c.l.b16 %v937
    %v2010 = vunpack.c.l.b16 %v938
    %v2011 = vunpack.c.h.b16 %v938
    %v2012 = vunpack.c.l.b16 %v939
    %v2013 = vunpack.c.h.b16 %v939
    %v2014 = vunpack.c.l.b16 %v940
    %v2015 = vunpack.c.h.b16 %v940
    %v2016 = vunpack.c.l.b16 %v941
    %v2017 = vunpack.c.l.b16 %v942
    %v2018 = vunpack.c.h.b16 %v942
    %v2019 = vunpack.c.l.b16 %v943
    %v2020 = vunpack.c.h.b16 %v943
    %v2021 = vunpack.c.l.b16 %v944
    %v2022 = vunpack.c.h.b16 %v944
    %v2023 = vunpack.c.l.b16 %v945
    %v2024 = vunpack.c.l.b16 %v946
    %v2025 = vunpack.c.h.b16 %v946
    %v2026 = vunpack.c.l.b16 %v947
    %v2027 = vunpack.c.h.b16 %v947
    %v2028 = vunpack.c.l.b16 %v948
    %v2029 = vunpack.c.h.b16 %v948
    %v2030 = vunpack.c.l.b16 %v949
    %v2031 = vunpack.c.l.b16 %v950
    %v2032 = vunpack.c.h.b16 %v950
    %v2033 = vunpack.c.l.b16 %v951
    %v2034 = vunpack.c.h.b16 %v951
    %v2035 = vunpack.c.l.b16 %v952
    %v2036 = vunpack.c.h.b16 %v952
    %v2037 = vunpack.c.l.b16 %v953
    %v2038 = vunpack.c.l.b16 %v954
    %v2039 = vunpack.c.h.b16 %v954
    %v2040 = vunpack.c.l.b16 %v955
    %v2041 = vunpack.c.h.b16 %v955
    %v2042 = vunpack.c.l.b16 %v956
    %v2043 = vunpack.c.h.b16 %v956
    %v2044 = vunpack.c.l.b16 %v957
    %v2045 = vunpack.c.l.b16 %v958
    %v2046 = vunpack.c.h.b16 %v958
    %v2047 = vunpack.c.l.b16 %v959
    %v2048 = vunpack.c.h.b16 %v959
    %v2049 = vunpack.c.l.b16 %v960
    %v2050 = vunpack.c.h.b16 %v960
    %v2051 = vunpack.c.l.b16 %v961
    %v2052 = vunpack.c.l.b16 %v962
    %v2053 = vunpack.c.h.b16 %v962
    %v2054 = vunpack.c.l.b16 %v963
    %v2055 = vunpack.c.h.b16 %v963
    %v2056 = vunpack.c.l.b16 %v964
    %v2057 = vunpack.c.h.b16 %v964
    %v2058 = vunpack.c.l.b16 %v965
    %v2059 = vunpack.c.l.b16 %v966
    %v2060 = vunpack.c.h.b16 %v966
    %v2061 = vunpack.c.l.b16 %v967
    %v2062 = vunpack.c.h.b16 %v967
    %v2063 = vunpack.c.l.b16 %v968
    %v2064 = vunpack.c.h.b16 %v968
    %v2065 = vunpack.c.l.b16 %v969
    %v2066 = vunpack.c.l.b16 %v970
    %v2067 = vunpack.c.h.b16 %v970
    %v2068 = vunpack.c.l.b16 %v971
    %v2069 = vunpack.c.h.b16 %v971
    %v2070 = vunpack.c.l.b16 %v972
    %v2071 = vunpack.c.h.b16 %v972
    %v2072 = vunpack.c.l.b16 %v973
    %v2073 = vunpack.c.l.b16 %v974
    %v2074 = vunpack.c.h.b16 %v974
    %v2075 = vunpack.c.l.b16 %v975
    %v2076 = vunpack.c.h.b16 %v975
    %v2077 = vunpack.c.l.b16 %v976
    %v2078 = vunpack.c.h.b16 %v976
    %v2079 = vunpack.c.l.b16 %v977
    %v2080 = vunpack.c.l.b16 %v978
    %v2081 = vunpack.c.h.b16 %v978
    %v2082 = vunpack.c.l.b16 %v979
    %v2083 = vunpack.c.h.b16 %v979
    %v2084 = vunpack.c.l.b16 %v980
    %v2085 = vunpack.c.h.b16 %v980
    %v2086 = vunpack.c.l.b16 %v981
    %v2087 = vunpack.c.l.b16 %v982
    %v2088 = vunpack.c.h.b16 %v982
    %v2089 = vunpack.c.l.b16 %v983
    %v2090 = vunpack.c.h.b16 %v983
    %v2091 = vunpack.c.l.b16 %v984
    %v2092 = vunpack.c.h.b16 %v984
    %v2093 = vunpack.c.l.b16 %v985
    %v2094 = vunpack.c.l.b16 %v986
    %v2095 = vunpack.c.h.b16 %v986
    %v2096 = vunpack.c.l.b16 %v987
    %v2097 = vunpack.c.h.b16 %v987
    %v2098 = vunpack.c.l.b16 %v988
    %v2099 = vunpack.c.h.b16 %v988
    %v2100 = vunpack.c.l.b16 %v989
    %v2101 = vunpack.c.l.b16 %v990
    %v2102 = vunpack.c.h.b16 %v990
    %v2103 = vunpack.c.l.b16 %v991
    %v2104 = vunpack.c.h.b16 %v991
    %v2105 = vunpack.c.l.b16 %v992
    %v2106 = vunpack.c.h.b16 %v992
    %v2107 = vunpack.c.l.b16 %v993
    %v2108 = vunpack.c.l.b16 %v994
    %v2109 = vunpack.c.h.b16 %v994
    %v2110 = vunpack.c.l.b16 %v995
    %v2111 = vunpack.c.h.b16 %v995
    %v2112 = vunpack.c.l.b16 %v996
    %v2113 = vunpack.c.h.b16 %v996
    %v2114 = vunpack.c.l.b16 %v997
    %v2115 = vunpack.c.l.b16 %v998
    %v2116 = vunpack.c.h.b16 %v998
    %v2117 = vunpack.c.l.b16 %v999
    %v2118 = vunpack.c.h.b16 %v999
    %v2119 = vunpack.c.l.b16 %v1000
    %v2120 = vunpack.c.h.b16 %v1000
    %v2121 = vunpack.c.l.b16 %v1001
    %v2122 = vunpack.c.l.b16 %v1002
    %v2123 = vunpack.c.h.b16 %v1002
    %v2124 = vunpack.c.l.b16 %v1003
    %v2125 = vunpack.c.h.b16 %v1003
    %v2126 = vunpack.c.l.b16 %v1004
    %v2127 = vunpack.c.h.b16 %v1004
    %v2128 = vunpack.c.l.b16 %v1005
    %v2129 = vunpack.c.l.b16 %v1006
    %v2130 = vunpack.c.h.b16 %v1006
    %v2131 = vunpack.c.l.b16 %v1007
    %v2132 = vunpack.c.h.b16 %v1007
    %v2133 = vunpack.c.l.b16 %v1008
    %v2134 = vunpack.c.h.b16 %v1008
    %v2135 = vunpack.c.l.b16 %v1009
    %v2136 = vunpack.c.l.b16 %v1010
    %v2137 = vunpack.c.h.b16 %v1010
    %v2138 = vunpack.c.l.b16 %v1011
    %v2139 = vunpack.c.h.b16 %v1011
    %v2140 = vunpack.c.l.b16 %v1012
    %v2141 = vunpack.c.h.b16 %v1012
    %v2142 = vunpack.c.l.b16 %v1013
    %v2143 = vunpack.c.l.b16 %v1014
    %v2144 = vunpack.c.h.b16 %v1014
    %v2145 = vunpack.c.l.b16 %v1015
    %v2146 = vunpack.c.h.b16 %v1015
    %v2147 = vunpack.c.l.b16 %v1016
    %v2148 = vunpack.c.h.b16 %v1016
    %v2149 = vunpack.c.l.b16 %v1017
    %v2150 = vpack.c.b16 %v1485, %v1478
    %v2151 = vpack.c.b16 %v1486, %v1479
    %v2152 = vpack.c.b16 %v1487, %v1480
    %v2153 = vpack.c.b16 %v1488, %v1481
    %v2154 = vpack.c.b16 %v1489, %v1482
    %v2155 = vpack.c.b16 %v1490, %v1483
    %v2156 = vpack.c.b16 %v1491, %v1484
    %v2157 = vpack.c.b16 %v1499, %v1492
    %v2158 = vpack.c.b16 %v1500, %v1493
    %v2159 = vpack.c.b16 %v1501, %v1494
    %v2160 = vpack.c.b16 %v1502, %v1495
    %v2161 = vpack.c.b16 %v1503, %v1496
    %v2162 = vpack.c.b16 %v1504, %v1497
    %v2163 = vpack.c.b16 %v1505, %v1498
    %v2164 = vpack.c.b16 %v1513, %v1506
    %v2165 = vpack.c.b16 %v1514, %v1507
    %v2166 = vpack.c.b16 %v1515, %v1508
    %v2167 = vpack.c.b16 %v1516, %v1509
    %v2168 = vpack.c.b16 %v1517, %v1510
    %v2169 = vpack.c.b16 %v1518, %v1511
    %v2170 = vpack.c.b16 %v1519, %v1512
    %v2171 = vpack.c.b16 %v1527, %v1520
    %v2172 = vpack.c.b16 %v1528, %v1521
    %v2173 = vpack.c.b16 %v1529, %v1522
    %v2174 = vpack.c.b16 %v1530, %v1523
    %v2175 = vpack.c.b16 %v1531, %v1524
    %v2176 = vpack.c.b16 %v1532, %v1525
    %v2177 = vpack.c.b16 %v1533, %v1526
    %v2178 = vpack.c.b16 %v1541, %v1534
    %v2179 = vpack.c.b16 %v1542, %v1535
    %v2180 = vpack.c.b16 %v1543, %v1536
    %v2181 = vpack.c.b16 %v1544, %v1537
    %v2182 = vpack.c.b16 %v1545, %v1538
    %v2183 = vpack.c.b16 %v1546, %v1539
    %v2184 = vpack.c.b16 %v1547, %v1540
    %v2185 = vpack.c.b16 %v1555, %v1548
    %v2186 = vpack.c.b16 %v1556, %v1549
    %v2187 = vpack.c.b16 %v1557, %v1550
    %v2188 = vpack.c.b16 %v1558, %v1551
    %v2189 = vpack.c.b16 %v1559, %v1552
    %v2190 = vpack.c.b16 %v1560, %v1553
    %v2191 = vpack.c.b16 %v1561, %v1554
    %v2192 = vpack.c.b16 %v1569, %v1562
    %v2193 = vpack.c.b16 %v1570, %v1563
    %v2194 = vpack.c.b16 %v1571, %v1564
    %v2195 = vpack.c.b16 %v1572, %v1565
    %v2196 = vpack.c.b16 %v1573, %v1566
    %v2197 = vpack.c.b16 %v1574, %v1567
    %v2198 = vpack.c.b16 %v1575, %v1568
    %v2199 = vpack.c.b16 %v1583, %v1576
    %v2200 = vpack.c.b16 %v1584, %v1577
    %v2201 = vpack.c.b16 %v1585, %v1578
    %v2202 = vpack.c.b16 %v1586, %v1579
    %v2203 = vpack.c.b16 %v1587, %v1580
    %v2204 = vpack.c.b16 %v1588, %v1581
    %v2205 = vpack.c.b16 %v1589, %v1582
    %v2206 = vpack.c.b16 %v1597, %v1590
    %v2207 = vpack.c.b16 %v1598, %v1591
    %v2208 = vpack.c.b16 %v1599, %v1592
    %v2209 = vpack.c.b16 %v1600, %v1593
    %v2210 = vpack.c.b16 %v1601, %v1594
    %v2211 = vpack.c.b16 %v1602, %v1595
    %v2212 = vpack.c.b16 %v1603, %v1596
    %v2213 = vpack.c.b16 %v1611, %v1604
    %v2214 = vpack.c.b16 %v1612, %v1605
    %v2215 = vpack.c.b16 %v1613, %v1606
    %v2216 = vpack.c.b16 %v1614, %v1607
    %v2217 = vpack.c.b16 %v1615, %v1608
    %v2218 = vpack.c.b16 %v1616, %v1609
    %v2219 = vpack.c.b16 %v1617, %v1610
    %v2220 = vpack.c.b16 %v1625, %v1618
    %v2221 = vpack.c.b16 %v1626, %v1619
    %v2222 = vpack.c.b16 %v1627, %v1620
    %v2223 = vpack.c.b16 %v1628, %v1621
    %v2224 = vpack.c.b16 %v1629, %v1622
    %v2225 = vpack.c.b16 %v1630, %v1623
    %v2226 = vpack.c.b16 %v1631, %v1624
    %v2227 = vpack.c.b16 %v1639, %v1632
    %v2228 = vpack.c.b16 %v1640, %v1633
    %v2229 = vpack.c.b16 %v1641, %v1634
    %v2230 = vpack.c.b16 %v1642, %v1635
    %v2231 = vpack.c.b16 %v1643, %v1636
    %v2232 = vpack.c.b16 %v1644, %v1637
    %v2233 = vpack.c.b16 %v1645, %v1638
    %v2234 = vpack.c.b16 %v1653, %v1646
    %v2235 = vpack.c.b16 %v1654, %v1647
    %v2236 = vpack.c.b16 %v1655, %v1648
    %v2237 = vpack.c.b16 %v1656, %v1649
    %v2238 = vpack.c.b16 %v1657, %v1650
    %v2239 = vpack.c.b16 %v1658, %v1651
    %v2240 = vpack.c.b16 %v1659, %v1652
    %v2241 = vpack.c.b16 %v1667, %v1660
    %v2242 = vpack.c.b16 %v1668, %v1661
    %v2243 = vpack.c.b16 %v1669, %v1662
    %v2244 = vpack.c.b16 %v1670, %v1663
    %v2245 = vpack.c.b16 %v1671, %v1664
    %v2246 = vpack.c.b16 %v1672, %v1665
    %v2247 = vpack.c.b16 %v1673, %v1666
    %v2248 = vpack.c.b16 %v1681, %v1674
    %v2249 = vpack.c.b16 %v1682, %v1675
    %v2250 = vpack.c.b16 %v1683, %v1676
    %v2251 = vpack.c.b16 %v1684, %v1677
    %v2252 = vpack.c.b16 %v1685, %v1678
    %v2253 = vpack.c.b16 %v1686, %v1679
    %v2254 = vpack.c.b16 %v1687, %v1680
    %v2255 = vpack.c.b16 %v1695, %v1688
    %v2256 = vpack.c.b16 %v1696, %v1689
    %v2257 = vpack.c.b16 %v1697, %v1690
    %v2258 = vpack.c.b16 %v1698, %v1691
    %v2259 = vpack.c.b16 %v1699, %v1692
    %v2260 = vpack.c.b16 %v1700, %v1693
    %v2261 = vpack.c.b16 %v1701, %v1694
    %v2262 = vpack.c.b16 %v1709, %v1702
    %v2263 = vpack.c.b16 %v1710, %v1703
    %v2264 = vpack.c.b16 %v1711, %v1704
    %v2265 = vpack.c.b16 %v1712, %v1705
    %v2266 = vpack.c.b16 %v1713, %v1706
    %v2267 = vpack.c.b16 %v1714, %v1707
    %v2268 = vpack.c.b16 %v1715, %v1708
    %v2269 = vpack.c.b16 %v1723, %v1716
    %v2270 = vpack.c.b16 %v1724, %v1717
    %v2271 = vpack.c.b16 %v1725, %v1718
    %v2272 = vpack.c.b16 %v1726, %v1719
    %v2273 = vpack.c.b16 %v1727, %v1720
    %v2274 = vpack.c.b16 %v1728, %v1721
    %v2275 = vpack.c.b16 %v1729, %v1722
    %v2276 = vpack.c.b16 %v1737, %v1730
    %v2277 = vpack.c.b16 %v1738, %v1731
    %v2278 = vpack.c.b16 %v1739, %v1732
    %v2279 = vpack.c.b16 %v1740, %v1733
    %v2280 = vpack.c.b16 %v1741, %v1734
    %v2281 = vpack.c.b16 %v1742, %v1735
    %v2282 = vpack.c.b16 %v1743, %v1736
    %v2283 = vpack.c.b16 %v1751, %v1744
    %v2284 = vpack.c.b16 %v1752, %v1745
    %v2285 = vpack.c.b16 %v1753, %v1746
    %v2286 = vpack.c.b16 %v1754, %v1747
    %v2287 = vpack.c.b16 %v1755, %v1748
    %v2288 = vpack.c.b16 %v1756, %v1749
    %v2289 = vpack.c.b16 %v1757, %v1750
    %v2290 = vpack.c.b16 %v1765, %v1758
    %v2291 = vpack.c.b16 %v1766, %v1759
    %v2292 = vpack.c.b16 %v1767, %v1760
    %v2293 = vpack.c.b16 %v1768, %v1761
    %v2294 = vpack.c.b16 %v1769, %v1762
    %v2295 = vpack.c.b16 %v1770, %v1763
    %v2296 = vpack.c.b16 %v1771, %v1764
    %v2297 = vpack.c.b16 %v1779, %v1772
    %v2298 = vpack.c.b16 %v1780, %v1773
    %v2299 = vpack.c.b16 %v1781, %v1774
    %v2300 = vpack.c.b16 %v1782, %v1775
    %v2301 = vpack.c.b16 %v1783, %v1776
    %v2302 = vpack.c.b16 %v1784, %v1777
    %v2303 = vpack.c.b16 %v1785, %v1778
    %v2304 = vpack.c.b16 %v1793, %v1786
    %v2305 = vpack.c.b16 %v1794, %v1787
    %v2306 = vpack.c.b16 %v1795, %v1788
    %v2307 = vpack.c.b16 %v1796, %v1789
    %v2308 = vpack.c.b16 %v1797, %v1790
    %v2309 = vpack.c.b16 %v1798, %v1791
    %v2310 = vpack.c.b16 %v1799, %v1792
    %v2311 = vpack.c.b16 %v1807, %v1800
    %v2312 = vpack.c.b16 %v1808, %v1801
    %v2313 = vpack.c.b16 %v1809, %v1802
    %v2314 = vpack.c.b16 %v1810, %v1803
    %v2315 = vpack.c.b16 %v1811, %v1804
    %v2316 = vpack.c.b16 %v1812, %v1805
    %v2317 = vpack.c.b16 %v1813, %v1806
    %v2318 = vpack.c.b16 %v1821, %v1814
    %v2319 = vpack.c.b16 %v1822, %v1815
    %v2320 = vpack.c.b16 %v1823, %v1816
    %v2321 = vpack.c.b16 %v1824, %v1817
    %v2322 = vpack.c.b16 %v1825, %v1818
    %v2323 = vpack.c.b16 %v1826, %v1819
    %v2324 = vpack.c.b16 %v1827, %v1820
    %v2325 = vpack.c.b16 %v1835, %v1828
    %v2326 = vpack.c.b16 %v1836, %v1829
    %v2327 = vpack.c.b16 %v1837, %v1830
    %v2328 = vpack.c.b16 %v1838, %v1831
    %v2329 = vpack.c.b16 %v1839, %v1832
    %v2330 = vpack.c.b16 %v1840, %v1833
    %v2331 = vpack.c.b16 %v1841, %v1834
    %v2332 = vpack.c.b16 %v1849, %v1842
    %v2333 = vpack.c.b16 %v1850, %v1843
    %v2334 = vpack.c.b16 %v1851, %v1844
    %v2335 = vpack.c.b16 %v1852, %v1845
    %v2336 = vpack.c.b16 %v1853, %v1846
    %v2337 = vpack.c.b16 %v1854, %v1847
    %v2338 = vpack.c.b16 %v1855, %v1848
    %v2339 = vpack.c.b16 %v1863, %v1856
    %v2340 = vpack.c.b16 %v1864, %v1857
    %v2341 = vpack.c.b16 %v1865, %v1858
    %v2342 = vpack.c.b16 %v1866, %v1859
    %v2343 = vpack.c.b16 %v1867, %v1860
    %v2344 = vpack.c.b16 %v1868, %v1861
    %v2345 = vpack.c.b16 %v1869, %v1862
    %v2346 = vpack.c.b16 %v1877, %v1870
    %v2347 = vpack.c.b16 %v1878, %v1871
    %v2348 = vpack.c.b16 %v1879, %v1872
    %v2349 = vpack.c.b16 %v1880, %v1873
    %v2350 = vpack.c.b16 %v1881, %v1874
    %v2351 = vpack.c.b16 %v1882, %v1875
    %v2352 = vpack.c.b16 %v1883, %v1876
    %v2353 = vpack.c.b16 %v1891, %v1884
    %v2354 = vpack.c.b16 %v1892, %v1885
    %v2355 = vpack.c.b16 %v1893, %v1886
    %v2356 = vpack.c.b16 %v1894, %v1887
    %v2357 = vpack.c.b16 %v1895, %v1888
    %v2358 = vpack.c.b16 %v1896, %v1889
    %v2359 = vpack.c.b16 %v1897, %v1890
    %v2360 = vpack.c.b16 %v1905, %v1898
    %v2361 = vpack.c.b16 %v1906, %v1899
    %v2362 = vpack.c.b16 %v1907, %v1900
    %v2363 = vpack.c.b16 %v1908, %v1901
    %v2364 = vpack.c.b16 %v1909, %v1902
    %v2365 = vpack.c.b16 %v1910, %v1903
    %v2366 = vpack.c.b16 %v1911, %v1904
    %v2367 = vpack.c.b16 %v1919, %v1912
    %v2368 = vpack.c.b16 %v1920, %v1913
    %v2369 = vpack.c.b16 %v1921, %v1914
    %v2370 = vpack.c.b16 %v1922, %v1915
    %v2371 = vpack.c.b16 %v1923, %v1916
    %v2372 = vpack.c.b16 %v1924, %v1917
    %v2373 = vpack.c.b16 %v1925, %v1918
    %v2374 = vpack.c.b16 %v1933, %v1926
    %v2375 = vpack.c.b16 %v1934, %v1927
    %v2376 = vpack.c.b16 %v1935, %v1928
    %v2377 = vpack.c.b16 %v1936, %v1929
    %v2378 = vpack.c.b16 %v1937, %v1930
    %v2379 = vpack.c.b16 %v1938, %v1931
    %v2380 = vpack.c.b16 %v1939, %v1932
    %v2381 = vpack.c.b16 %v1947, %v1940
    %v2382 = vpack.c.b16 %v1948, %v1941
    %v2383 = vpack.c.b16 %v1949, %v1942
    %v2384 = vpack.c.b16 %v1950, %v1943
    %v2385 = vpack.c.b16 %v1951, %v1944
    %v2386 = vpack.c.b16 %v1952, %v1945
    %v2387 = vpack.c.b16 %v1953, %v1946
    %v2388 = vpack.c.b16 %v1961, %v1954
    %v2389 = vpack.c.b16 %v1962, %v1955
    %v2390 = vpack.c.b16 %v1963, %v1956
    %v2391 = vpack.c.b16 %v1964, %v1957
    %v2392 = vpack.c.b16 %v1965, %v1958
    %v2393 = vpack.c.b16 %v1966, %v1959
    %v2394 = vpack.c.b16 %v1967, %v1960
    %v2395 = vpack.c.b16 %v1975, %v1968
    %v2396 = vpack.c.b16 %v1976, %v1969
    %v2397 = vpack.c.b16 %v1977, %v1970
    %v2398 = vpack.c.b16 %v1978, %v1971
    %v2399 = vpack.c.b16 %v1979, %v1972
    %v2400 = vpack.c.b16 %v1980, %v1973
    %v2401 = vpack.c.b16 %v1981, %v1974
    %v2402 = vpack.c.b16 %v1989, %v1982
    %v2403 = vpack.c.b16 %v1990, %v1983
    %v2404 = vpack.c.b16 %v1991, %v1984
    %v2405 = vpack.c.b16 %v1992, %v1985
    %v2406 = vpack.c.b16 %v1993, %v1986
    %v2407 = vpack.c.b16 %v1994, %v1987
    %v2408 = vpack.c.b16 %v1995, %v1988
    %v2409 = vpack.c.b16 %v2003, %v1996
    %v2410 = vpack.c.b16 %v2004, %v1997
    %v2411 = vpack.c.b16 %v2005, %v1998
    %v2412 = vpack.c.b16 %v2006, %v1999
    %v2413 = vpack.c.b16 %v2007, %v2000
    %v2414 = vpack.c.b16 %v2008, %v2001
    %v2415 = vpack.c.b16 %v2009, %v2002
    %v2416 = vpack.c.b16 %v2017, %v2010
    %v2417 = vpack.c.b16 %v2018, %v2011
    %v2418 = vpack.c.b16 %v2019, %v2012
    %v2419 = vpack.c.b16 %v2020, %v2013
    %v2420 = vpack.c.b16 %v2021, %v2014
    %v2421 = vpack.c.b16 %v2022, %v2015
    %v2422 = vpack.c.b16 %v2023, %v2016
    %v2423 = vpack.c.b16 %v2031, %v2024
    %v2424 = vpack.c.b16 %v2032, %v2025
    %v2425 = vpack.c.b16 %v2033, %v2026
    %v2426 = vpack.c.b16 %v2034, %v2027
    %v2427 = vpack.c.b16 %v2035, %v2028
    %v2428 = vpack.c.b16 %v2036, %v2029
    %v2429 = vpack.c.b16 %v2037, %v2030
    %v2430 = vpack.c.b16 %v2045, %v2038
    %v2431 = vpack.c.b16 %v2046, %v2039
    %v2432 = vpack.c.b16 %v2047, %v2040
    %v2433 = vpack.c.b16 %v2048, %v2041
    %v2434 = vpack.c.b16 %v2049, %v2042
    %v2435 = vpack.c.b16 %v2050, %v2043
    %v2436 = vpack.c.b16 %v2051, %v2044
    %v2437 = vpack.c.b16 %v2059, %v2052
    %v2438 = vpack.c.b16 %v2060, %v2053
    %v2439 = vpack.c.b16 %v2061, %v2054
    %v2440 = vpack.c.b16 %v2062, %v2055
    %v2441 = vpack.c.b16 %v2063, %v2056
    %v2442 = vpack.c.b16 %v2064, %v2057
    %v2443 = vpack.c.b16 %v2065, %v2058
    %v2444 = vpack.c.b16 %v2073, %v2066
    %v2445 = vpack.c.b16 %v2074, %v2067
    %v2446 = vpack.c.b16 %v2075, %v2068
    %v2447 = vpack.c.b16 %v2076, %v2069
    %v2448 = vpack.c.b16 %v2077, %v2070
    %v2449 = vpack.c.b16 %v2078, %v2071
    %v2450 = vpack.c.b16 %v2079, %v2072
    %v2451 = vpack.c.b16 %v2087, %v2080
    %v2452 = vpack.c.b16 %v2088, %v2081
    %v2453 = vpack.c.b16 %v2089, %v2082
    %v2454 = vpack.c.b16 %v2090, %v2083
    %v2455 = vpack.c.b16 %v2091, %v2084
    %v2456 = vpack.c.b16 %v2092, %v2085
    %v2457 = vpack.c.b16 %v2093, %v2086
    %v2458 = vpack.c.b16 %v2101, %v2094
    %v2459 = vpack.c.b16 %v2102, %v2095
    %v2460 = vpack.c.b16 %v2103, %v2096
    %v2461 = vpack.c.b16 %v2104, %v2097
    %v2462 = vpack.c.b16 %v2105, %v2098
    %v2463 = vpack.c.b16 %v2106, %v2099
    %v2464 = vpack.c.b16 %v2107, %v2100
    %v2465 = vpack.c.b16 %v2115, %v2108
    %v2466 = vpack.c.b16 %v2116, %v2109
    %v2467 = vpack.c.b16 %v2117, %v2110
    %v2468 = vpack.c.b16 %v2118, %v2111
    %v2469 = vpack.c.b16 %v2119, %v2112
    %v2470 = vpack.c.b16 %v2120, %v2113
    %v2471 = vpack.c.b16 %v2121, %v2114
    %v2472 = vpack.c.b16 %v2129, %v2122
    %v2473 = vpack.c.b16 %v2130, %v2123
    %v2474 = vpack.c.b16 %v2131, %v2124
    %v2475 = vpack.c.b16 %v2132, %v2125
    %v2476 = vpack.c.b16 %v2133, %v2126
    %v2477 = vpack.c.b16 %v2134, %v2127
    %v2478 = vpack.c.b16 %v2135, %v2128
    %v2479 = vpack.c.b16 %v2143, %v2136
    %v2480 = vpack.c.b16 %v2144, %v2137
    %v2481 = vpack.c.b16 %v2145, %v2138
    %v2482 = vpack.c.b16 %v2146, %v2139
    %v2483 = vpack.c.b16 %v2147, %v2140
    %v2484 = vpack.c.b16 %v2148, %v2141
    %v2485 = vpack.c.b16 %v2149, %v2142
    %2822 = vmatprep.subr.bf16.mxu0 %v2151
    %2823 = vmatpush1.bf16.msra.mxu0 %v2150
    %2824 = vmatprep.subr.bf16.mxu0 %v2158
    %2825 = vmatpush1.bf16.msra.mxu0 %v2157
    %2826 = vmatprep.subr.bf16.mxu0 %v2165
    %2827 = vmatpush1.bf16.msra.mxu0 %v2164
    %2828 = vmatprep.subr.bf16.mxu0 %v2172
    %2829 = vmatpush1.bf16.msra.mxu0 %v2171
    %2830 = vmatprep.subr.bf16.mxu0 %v2179
    %2831 = vmatpush1.bf16.msra.mxu0 %v2178
    %2832 = vmatprep.subr.bf16.mxu0 %v2186
    %2833 = vmatpush1.bf16.msra.mxu0 %v2185
    %2834 = vmatprep.subr.bf16.mxu0 %v2193
    %2835 = vmatpush1.bf16.msra.mxu0 %v2192
    %2836 = vmatprep.subr.bf16.mxu0 %v2200
    %2837 = vmatpush1.bf16.msra.mxu0 %v2199
    %2838 = vmatprep.subr.bf16.mxu0 %v2207
    %2839 = vmatpush1.bf16.msra.mxu0 %v2206
    %2840 = vmatprep.subr.bf16.mxu0 %v2214
    %2841 = vmatpush1.bf16.msra.mxu0 %v2213
    %2842 = vmatprep.subr.bf16.mxu0 %v2221
    %2843 = vmatpush1.bf16.msra.mxu0 %v2220
    %2844 = vmatprep.subr.bf16.mxu0 %v2228
    %2845 = vmatpush1.bf16.msra.mxu0 %v2227
    %2846 = vmatprep.subr.bf16.mxu0 %v2235
    %2847 = vmatpush1.bf16.msra.mxu0 %v2234
    %2848 = vmatprep.subr.bf16.mxu0 %v2242
    %2849 = vmatpush1.bf16.msra.mxu0 %v2241
    %2850 = vmatprep.subr.bf16.mxu0 %v2249
    %2851 = vmatpush1.bf16.msra.mxu0 %v2248
    %2852 = vmatprep.subr.bf16.mxu0 %v2256
    %2853 = vmatpush1.bf16.msra.mxu0 %v2255
    %2854 = vmatprep.mubr.bf16.mxu0 %v1052
    %2855 = vmatmul.mubr.bf16.gmra.mrb[0].mxu0 %v1051
    %v2856 = vpop.f32.mrb[0].mxu0
    %v2857 = vadd.f32 %v1062, %v2856
    %v2858 = vpop.f32.mrb[0].mxu0
    %v2859 = vadd.f32 %v1066, %v2858
    %v2860 = vpop.f32.mrb[0].mxu0
    %v2861 = vpop.f32.mrb[0].mxu0
    %2862 = vdwg.mxu0
    %2863 = vmatprep.subr.bf16.mxu0 %v2263
    %2864 = vmatpush1.bf16.msra.mxu0 %v2262
    %2865 = vmatprep.subr.bf16.mxu0 %v2270
    %2866 = vmatpush1.bf16.msra.mxu0 %v2269
    %2867 = vmatprep.subr.bf16.mxu0 %v2277
    %2868 = vmatpush1.bf16.msra.mxu0 %v2276
    %2869 = vmatprep.subr.bf16.mxu0 %v2284
    %2870 = vmatpush1.bf16.msra.mxu0 %v2283
    %2871 = vmatprep.subr.bf16.mxu0 %v2291
    %2872 = vmatpush1.bf16.msra.mxu0 %v2290
    %2873 = vmatprep.subr.bf16.mxu0 %v2298
    %2874 = vmatpush1.bf16.msra.mxu0 %v2297
    %2875 = vmatprep.subr.bf16.mxu0 %v2305
    %2876 = vmatpush1.bf16.msra.mxu0 %v2304
    %2877 = vmatprep.subr.bf16.mxu0 %v2312
    %2878 = vmatpush1.bf16.msra.mxu0 %v2311
    %2879 = vmatprep.subr.bf16.mxu0 %v2319
    %2880 = vmatpush1.bf16.msra.mxu0 %v2318
    %2881 = vmatprep.subr.bf16.mxu0 %v2326
    %2882 = vmatpush1.bf16.msra.mxu0 %v2325
    %2883 = vmatprep.subr.bf16.mxu0 %v2333
    %2884 = vmatpush1.bf16.msra.mxu0 %v2332
    %2885 = vmatprep.subr.bf16.mxu0 %v2340
    %2886 = vmatpush1.bf16.msra.mxu0 %v2339
    %2887 = vmatprep.subr.bf16.mxu0 %v2347
    %2888 = vmatpush1.bf16.msra.mxu0 %v2346
    %2889 = vmatprep.subr.bf16.mxu0 %v2354
    %2890 = vmatpush1.bf16.msra.mxu0 %v2353
    %2891 = vmatprep.subr.bf16.mxu0 %v2361
    %2892 = vmatpush1.bf16.msra.mxu0 %v2360
    %2893 = vmatprep.subr.bf16.mxu0 %v2368
    %2894 = vmatpush1.bf16.msra.mxu0 %v2367
    %2895 = vmatprep.mubr.bf16.mxu0 %v1054
    %2896 = vmatmul.mubr.bf16.gmra.mrb[0].mxu0 %v1053
    %v2897 = vpop.f32.mrb[0].mxu0
    %v2898 = vadd.f32 %v2857, %v2897
    %v2899 = vpop.f32.mrb[0].mxu0
    %v2900 = vadd.f32 %v2859, %v2899
    %v2901 = vpop.f32.mrb[0].mxu0
    %v2902 = vpop.f32.mrb[0].mxu0
    %2903 = vdwg.mxu0
    %2904 = vmatprep.subr.bf16.mxu0 %v2375
    %2905 = vmatpush1.bf16.msra.mxu0 %v2374
    %2906 = vmatprep.subr.bf16.mxu0 %v2382
    %2907 = vmatpush1.bf16.msra.mxu0 %v2381
    %2908 = vmatprep.subr.bf16.mxu0 %v2389
    %2909 = vmatpush1.bf16.msra.mxu0 %v2388
    %2910 = vmatprep.subr.bf16.mxu0 %v2396
    %2911 = vmatpush1.bf16.msra.mxu0 %v2395
    %2912 = vmatprep.subr.bf16.mxu0 %v2403
    %2913 = vmatpush1.bf16.msra.mxu0 %v2402
    %2914 = vmatprep.subr.bf16.mxu0 %v2410
    %2915 = vmatpush1.bf16.msra.mxu0 %v2409
    %2916 = vmatprep.subr.bf16.mxu0 %v2417
    %2917 = vmatpush1.bf16.msra.mxu0 %v2416
    %2918 = vmatprep.subr.bf16.mxu0 %v2424
    %2919 = vmatpush1.bf16.msra.mxu0 %v2423
    %2920 = vmatprep.subr.bf16.mxu0 %v2431
    %2921 = vmatpush1.bf16.msra.mxu0 %v2430
    %2922 = vmatprep.subr.bf16.mxu0 %v2438
    %2923 = vmatpush1.bf16.msra.mxu0 %v2437
    %2924 = vmatprep.subr.bf16.mxu0 %v2445
    %2925 = vmatpush1.bf16.msra.mxu0 %v2444
    %2926 = vmatprep.subr.bf16.mxu0 %v2452
    %2927 = vmatpush1.bf16.msra.mxu0 %v2451
    %2928 = vmatprep.subr.bf16.mxu0 %v2459
    %2929 = vmatpush1.bf16.msra.mxu0 %v2458
    %2930 = vmatprep.subr.bf16.mxu0 %v2466
    %2931 = vmatpush1.bf16.msra.mxu0 %v2465
    %2932 = vmatprep.subr.bf16.mxu0 %v2473
    %2933 = vmatpush1.bf16.msra.mxu0 %v2472
    %2934 = vmatprep.subr.bf16.mxu0 %v2480
    %2935 = vmatpush1.bf16.msra.mxu0 %v2479
    %2936 = vmatprep.mubr.bf16.mxu0 %v1056
    %2937 = vmatmul.mubr.bf16.gmra.mrb[0].mxu0 %v1055
    %v2938 = vpop.f32.mrb[0].mxu0
    %v2939 = vadd.f32 %v2898, %v2938
    %v2940 = vpop.f32.mrb[0].mxu0
    %v2941 = vadd.f32 %v2900, %v2940
    %v2942 = vpop.f32.mrb[0].mxu0
    %v2943 = vpop.f32.mrb[0].mxu0
    %2944 = vdwg.mxu0
    %2945 = vmatprep.subr.bf16.mxu0 %v2153
    %2946 = vmatpush1.bf16.msra.mxu0 %v2152
    %2947 = vmatprep.subr.bf16.mxu0 %v2160
    %2948 = vmatpush1.bf16.msra.mxu0 %v2159
    %2949 = vmatprep.subr.bf16.mxu0 %v2167
    %2950 = vmatpush1.bf16.msra.mxu0 %v2166
    %2951 = vmatprep.subr.bf16.mxu0 %v2174
    %2952 = vmatpush1.bf16.msra.mxu0 %v2173
    %2953 = vmatprep.subr.bf16.mxu0 %v2181
    %2954 = vmatpush1.bf16.msra.mxu0 %v2180
    %2955 = vmatprep.subr.bf16.mxu0 %v2188
    %2956 = vmatpush1.bf16.msra.mxu0 %v2187
    %2957 = vmatprep.subr.bf16.mxu0 %v2195
    %2958 = vmatpush1.bf16.msra.mxu0 %v2194
    %2959 = vmatprep.subr.bf16.mxu0 %v2202
    %2960 = vmatpush1.bf16.msra.mxu0 %v2201
    %2961 = vmatprep.subr.bf16.mxu0 %v2209
    %2962 = vmatpush1.bf16.msra.mxu0 %v2208
    %2963 = vmatprep.subr.bf16.mxu0 %v2216
    %2964 = vmatpush1.bf16.msra.mxu0 %v2215
    %2965 = vmatprep.subr.bf16.mxu0 %v2223
    %2966 = vmatpush1.bf16.msra.mxu0 %v2222
    %2967 = vmatprep.subr.bf16.mxu0 %v2230
    %2968 = vmatpush1.bf16.msra.mxu0 %v2229
    %2969 = vmatprep.subr.bf16.mxu0 %v2237
    %2970 = vmatpush1.bf16.msra.mxu0 %v2236
    %2971 = vmatprep.subr.bf16.mxu0 %v2244
    %2972 = vmatpush1.bf16.msra.mxu0 %v2243
    %2973 = vmatprep.subr.bf16.mxu0 %v2251
    %2974 = vmatpush1.bf16.msra.mxu0 %v2250
    %2975 = vmatprep.subr.bf16.mxu0 %v2258
    %2976 = vmatpush1.bf16.msra.mxu0 %v2257
    %2977 = vmatprep.mubr.bf16.mxu0 %v1052
    %2978 = vmatmul.mubr.bf16.gmra.mrb[0].mxu0 %v1051
    %v2979 = vpop.f32.mrb[0].mxu0
    %v2980 = vadd.f32 %v1070, %v2979
    %v2981 = vpop.f32.mrb[0].mxu0
    %v2982 = vadd.f32 %v1074, %v2981
    %v2983 = vpop.f32.mrb[0].mxu0
    %v2984 = vpop.f32.mrb[0].mxu0
    %2985 = vdwg.mxu0
    %2986 = vmatprep.subr.bf16.mxu0 %v2265
    %2987 = vmatpush1.bf16.msra.mxu0 %v2264
    %2988 = vmatprep.subr.bf16.mxu0 %v2272
    %2989 = vmatpush1.bf16.msra.mxu0 %v2271
    %2990 = vmatprep.subr.bf16.mxu0 %v2279
    %2991 = vmatpush1.bf16.msra.mxu0 %v2278
    %2992 = vmatprep.subr.bf16.mxu0 %v2286
    %2993 = vmatpush1.bf16.msra.mxu0 %v2285
    %2994 = vmatprep.subr.bf16.mxu0 %v2293
    %2995 = vmatpush1.bf16.msra.mxu0 %v2292
    %2996 = vmatprep.subr.bf16.mxu0 %v2300
    %2997 = vmatpush1.bf16.msra.mxu0 %v2299
    %2998 = vmatprep.subr.bf16.mxu0 %v2307
    %2999 = vmatpush1.bf16.msra.mxu0 %v2306
    %3000 = vmatprep.subr.bf16.mxu0 %v2314
    %3001 = vmatpush1.bf16.msra.mxu0 %v2313
    %3002 = vmatprep.subr.bf16.mxu0 %v2321
    %3003 = vmatpush1.bf16.msra.mxu0 %v2320
    %3004 = vmatprep.subr.bf16.mxu0 %v2328
    %3005 = vmatpush1.bf16.msra.mxu0 %v2327
    %3006 = vmatprep.subr.bf16.mxu0 %v2335
    %3007 = vmatpush1.bf16.msra.mxu0 %v2334
    %3008 = vmatprep.subr.bf16.mxu0 %v2342
    %3009 = vmatpush1.bf16.msra.mxu0 %v2341
    %3010 = vmatprep.subr.bf16.mxu0 %v2349
    %3011 = vmatpush1.bf16.msra.mxu0 %v2348
    %3012 = vmatprep.subr.bf16.mxu0 %v2356
    %3013 = vmatpush1.bf16.msra.mxu0 %v2355
    %3014 = vmatprep.subr.bf16.mxu0 %v2363
    %3015 = vmatpush1.bf16.msra.mxu0 %v2362
    %3016 = vmatprep.subr.bf16.mxu0 %v2370
    %3017 = vmatpush1.bf16.msra.mxu0 %v2369
    %3018 = vmatprep.mubr.bf16.mxu0 %v1054
    %3019 = vmatmul.mubr.bf16.gmra.mrb[0].mxu0 %v1053
    %v3020 = vpop.f32.mrb[0].mxu0
    %v3021 = vadd.f32 %v2980, %v3020
    %v3022 = vpop.f32.mrb[0].mxu0
    %v3023 = vadd.f32 %v2982, %v3022
    %v3024 = vpop.f32.mrb[0].mxu0
    %v3025 = vpop.f32.mrb[0].mxu0
    %3026 = vdwg.mxu0
    %3027 = vmatprep.subr.bf16.mxu0 %v2377
    %3028 = vmatpush1.bf16.msra.mxu0 %v2376
    %3029 = vmatprep.subr.bf16.mxu0 %v2384
    %3030 = vmatpush1.bf16.msra.mxu0 %v2383
    %3031 = vmatprep.subr.bf16.mxu0 %v2391
    %3032 = vmatpush1.bf16.msra.mxu0 %v2390
    %3033 = vmatprep.subr.bf16.mxu0 %v2398
    %3034 = vmatpush1.bf16.msra.mxu0 %v2397
    %3035 = vmatprep.subr.bf16.mxu0 %v2405
    %3036 = vmatpush1.bf16.msra.mxu0 %v2404
    %3037 = vmatprep.subr.bf16.mxu0 %v2412
    %3038 = vmatpush1.bf16.msra.mxu0 %v2411
    %3039 = vmatprep.subr.bf16.mxu0 %v2419
    %3040 = vmatpush1.bf16.msra.mxu0 %v2418
    %3041 = vmatprep.subr.bf16.mxu0 %v2426
    %3042 = vmatpush1.bf16.msra.mxu0 %v2425
    %3043 = vmatprep.subr.bf16.mxu0 %v2433
    %3044 = vmatpush1.bf16.msra.mxu0 %v2432
    %3045 = vmatprep.subr.bf16.mxu0 %v2440
    %3046 = vmatpush1.bf16.msra.mxu0 %v2439
    %3047 = vmatprep.subr.bf16.mxu0 %v2447
    %3048 = vmatpush1.bf16.msra.mxu0 %v2446
    %3049 = vmatprep.subr.bf16.mxu0 %v2454
    %3050 = vmatpush1.bf16.msra.mxu0 %v2453
    %3051 = vmatprep.subr.bf16.mxu0 %v2461
    %3052 = vmatpush1.bf16.msra.mxu0 %v2460
    %3053 = vmatprep.subr.bf16.mxu0 %v2468
    %3054 = vmatpush1.bf16.msra.mxu0 %v2467
    %3055 = vmatprep.subr.bf16.mxu0 %v2475
    %3056 = vmatpush1.bf16.msra.mxu0 %v2474
    %3057 = vmatprep.subr.bf16.mxu0 %v2482
    %3058 = vmatpush1.bf16.msra.mxu0 %v2481
    %3059 = vmatprep.mubr.bf16.mxu0 %v1056
    %3060 = vmatmul.mubr.bf16.gmra.mrb[0].mxu0 %v1055
    %v3061 = vpop.f32.mrb[0].mxu0
    %v3062 = vadd.f32 %v3021, %v3061
    %v3063 = vpop.f32.mrb[0].mxu0
    %v3064 = vadd.f32 %v3023, %v3063
    %v3065 = vpop.f32.mrb[0].mxu0
    %v3066 = vpop.f32.mrb[0].mxu0
    %3067 = vdwg.mxu0
    %3068 = vmatprep.subr.bf16.mxu0 %v2155
    %3069 = vmatpush1.bf16.msra.mxu0 %v2154
    %3070 = vmatprep.subr.bf16.mxu0 %v2162
    %3071 = vmatpush1.bf16.msra.mxu0 %v2161
    %3072 = vmatprep.subr.bf16.mxu0 %v2169
    %3073 = vmatpush1.bf16.msra.mxu0 %v2168
    %3074 = vmatprep.subr.bf16.mxu0 %v2176
    %3075 = vmatpush1.bf16.msra.mxu0 %v2175
    %3076 = vmatprep.subr.bf16.mxu0 %v2183
    %3077 = vmatpush1.bf16.msra.mxu0 %v2182
    %3078 = vmatprep.subr.bf16.mxu0 %v2190
    %3079 = vmatpush1.bf16.msra.mxu0 %v2189
    %3080 = vmatprep.subr.bf16.mxu0 %v2197
    %3081 = vmatpush1.bf16.msra.mxu0 %v2196
    %3082 = vmatprep.subr.bf16.mxu0 %v2204
    %3083 = vmatpush1.bf16.msra.mxu0 %v2203
    %3084 = vmatprep.subr.bf16.mxu0 %v2211
    %3085 = vmatpush1.bf16.msra.mxu0 %v2210
    %3086 = vmatprep.subr.bf16.mxu0 %v2218
    %3087 = vmatpush1.bf16.msra.mxu0 %v2217
    %3088 = vmatprep.subr.bf16.mxu0 %v2225
    %3089 = vmatpush1.bf16.msra.mxu0 %v2224
    %3090 = vmatprep.subr.bf16.mxu0 %v2232
    %3091 = vmatpush1.bf16.msra.mxu0 %v2231
    %3092 = vmatprep.subr.bf16.mxu0 %v2239
    %3093 = vmatpush1.bf16.msra.mxu0 %v2238
    %3094 = vmatprep.subr.bf16.mxu0 %v2246
    %3095 = vmatpush1.bf16.msra.mxu0 %v2245
    %3096 = vmatprep.subr.bf16.mxu0 %v2253
    %3097 = vmatpush1.bf16.msra.mxu0 %v2252
    %3098 = vmatprep.subr.bf16.mxu0 %v2260
    %3099 = vmatpush1.bf16.msra.mxu0 %v2259
    %3100 = vmatprep.mubr.bf16.mxu0 %v1052
    %3101 = vmatmul.mubr.bf16.gmra.mrb[0].mxu0 %v1051
    %v3102 = vpop.f32.mrb[0].mxu0
    %v3103 = vadd.f32 %v1078, %v3102
    %v3104 = vpop.f32.mrb[0].mxu0
    %v3105 = vadd.f32 %v1082, %v3104
    %v3106 = vpop.f32.mrb[0].mxu0
    %v3107 = vpop.f32.mrb[0].mxu0
    %3108 = vdwg.mxu0
    %3109 = vmatprep.subr.bf16.mxu0 %v2267
    %3110 = vmatpush1.bf16.msra.mxu0 %v2266
    %3111 = vmatprep.subr.bf16.mxu0 %v2274
    %3112 = vmatpush1.bf16.msra.mxu0 %v2273
    %3113 = vmatprep.subr.bf16.mxu0 %v2281
    %3114 = vmatpush1.bf16.msra.mxu0 %v2280
    %3115 = vmatprep.subr.bf16.mxu0 %v2288
    %3116 = vmatpush1.bf16.msra.mxu0 %v2287
    %3117 = vmatprep.subr.bf16.mxu0 %v2295
    %3118 = vmatpush1.bf16.msra.mxu0 %v2294
    %3119 = vmatprep.subr.bf16.mxu0 %v2302
    %3120 = vmatpush1.bf16.msra.mxu0 %v2301
    %3121 = vmatprep.subr.bf16.mxu0 %v2309
    %3122 = vmatpush1.bf16.msra.mxu0 %v2308
    %3123 = vmatprep.subr.bf16.mxu0 %v2316
    %3124 = vmatpush1.bf16.msra.mxu0 %v2315
    %3125 = vmatprep.subr.bf16.mxu0 %v2323
    %3126 = vmatpush1.bf16.msra.mxu0 %v2322
    %3127 = vmatprep.subr.bf16.mxu0 %v2330
    %3128 = vmatpush1.bf16.msra.mxu0 %v2329
    %3129 = vmatprep.subr.bf16.mxu0 %v2337
    %3130 = vmatpush1.bf16.msra.mxu0 %v2336
    %3131 = vmatprep.subr.bf16.mxu0 %v2344
    %3132 = vmatpush1.bf16.msra.mxu0 %v2343
    %3133 = vmatprep.subr.bf16.mxu0 %v2351
    %3134 = vmatpush1.bf16.msra.mxu0 %v2350
    %3135 = vmatprep.subr.bf16.mxu0 %v2358
    %3136 = vmatpush1.bf16.msra.mxu0 %v2357
    %3137 = vmatprep.subr.bf16.mxu0 %v2365
    %3138 = vmatpush1.bf16.msra.mxu0 %v2364
    %3139 = vmatprep.subr.bf16.mxu0 %v2372
    %3140 = vmatpush1.bf16.msra.mxu0 %v2371
    %3141 = vmatprep.mubr.bf16.mxu0 %v1054
    %3142 = vmatmul.mubr.bf16.gmra.mrb[0].mxu0 %v1053
    %v3143 = vpop.f32.mrb[0].mxu0
    %v3144 = vadd.f32 %v3103, %v3143
    %v3145 = vpop.f32.mrb[0].mxu0
    %v3146 = vadd.f32 %v3105, %v3145
    %v3147 = vpop.f32.mrb[0].mxu0
    %v3148 = vpop.f32.mrb[0].mxu0
    %3149 = vdwg.mxu0
    %3150 = vmatprep.subr.bf16.mxu0 %v2379
    %3151 = vmatpush1.bf16.msra.mxu0 %v2378
    %3152 = vmatprep.subr.bf16.mxu0 %v2386
    %3153 = vmatpush1.bf16.msra.mxu0 %v2385
    %3154 = vmatprep.subr.bf16.mxu0 %v2393
    %3155 = vmatpush1.bf16.msra.mxu0 %v2392
    %3156 = vmatprep.subr.bf16.mxu0 %v2400
    %3157 = vmatpush1.bf16.msra.mxu0 %v2399
    %3158 = vmatprep.subr.bf16.mxu0 %v2407
    %3159 = vmatpush1.bf16.msra.mxu0 %v2406
    %3160 = vmatprep.subr.bf16.mxu0 %v2414
    %3161 = vmatpush1.bf16.msra.mxu0 %v2413
    %3162 = vmatprep.subr.bf16.mxu0 %v2421
    %3163 = vmatpush1.bf16.msra.mxu0 %v2420
    %3164 = vmatprep.subr.bf16.mxu0 %v2428
    %3165 = vmatpush1.bf16.msra.mxu0 %v2427
    %3166 = vmatprep.subr.bf16.mxu0 %v2435
    %3167 = vmatpush1.bf16.msra.mxu0 %v2434
    %3168 = vmatprep.subr.bf16.mxu0 %v2442
    %3169 = vmatpush1.bf16.msra.mxu0 %v2441
    %3170 = vmatprep.subr.bf16.mxu0 %v2449
    %3171 = vmatpush1.bf16.msra.mxu0 %v2448
    %3172 = vmatprep.subr.bf16.mxu0 %v2456
    %3173 = vmatpush1.bf16.msra.mxu0 %v2455
    %3174 = vmatprep.subr.bf16.mxu0 %v2463
    %3175 = vmatpush1.bf16.msra.mxu0 %v2462
    %3176 = vmatprep.subr.bf16.mxu0 %v2470
    %3177 = vmatpush1.bf16.msra.mxu0 %v2469
    %3178 = vmatprep.subr.bf16.mxu0 %v2477
    %3179 = vmatpush1.bf16.msra.mxu0 %v2476
    %3180 = vmatprep.subr.bf16.mxu0 %v2484
    %3181 = vmatpush1.bf16.msra.mxu0 %v2483
    %3182 = vmatprep.mubr.bf16.mxu0 %v1056
    %3183 = vmatmul.mubr.bf16.gmra.mrb[0].mxu0 %v1055
    %v3184 = vpop.f32.mrb[0].mxu0
    %v3185 = vadd.f32 %v3144, %v3184
    %v3186 = vpop.f32.mrb[0].mxu0
    %v3187 = vadd.f32 %v3146, %v3186
    %v3188 = vpop.f32.mrb[0].mxu0
    %v3189 = vpop.f32.mrb[0].mxu0
    %3190 = vdwg.mxu0
    %3191 = vmatprep.subr.bf16.mxu0 0
    %3192 = vmatpush1.bf16.msra.mxu0 %v2156
    %3193 = vmatprep.subr.bf16.mxu0 0
    %3194 = vmatpush1.bf16.msra.mxu0 %v2163
    %3195 = vmatprep.subr.bf16.mxu0 0
    %3196 = vmatpush1.bf16.msra.mxu0 %v2170
    %3197 = vmatprep.subr.bf16.mxu0 0
    %3198 = vmatpush1.bf16.msra.mxu0 %v2177
    %3199 = vmatprep.subr.bf16.mxu0 0
    %3200 = vmatpush1.bf16.msra.mxu0 %v2184
    %3201 = vmatprep.subr.bf16.mxu0 0
    %3202 = vmatpush1.bf16.msra.mxu0 %v2191
    %3203 = vmatprep.subr.bf16.mxu0 0
    %3204 = vmatpush1.bf16.msra.mxu0 %v2198
    %3205 = vmatprep.subr.bf16.mxu0 0
    %3206 = vmatpush1.bf16.msra.mxu0 %v2205
    %3207 = vmatprep.subr.bf16.mxu0 0
    %3208 = vmatpush1.bf16.msra.mxu0 %v2212
    %3209 = vmatprep.subr.bf16.mxu0 0
    %3210 = vmatpush1.bf16.msra.mxu0 %v2219
    %3211 = vmatprep.subr.bf16.mxu0 0
    %3212 = vmatpush1.bf16.msra.mxu0 %v2226
    %3213 = vmatprep.subr.bf16.mxu0 0
    %3214 = vmatpush1.bf16.msra.mxu0 %v2233
    %3215 = vmatprep.subr.bf16.mxu0 0
    %3216 = vmatpush1.bf16.msra.mxu0 %v2240
    %3217 = vmatprep.subr.bf16.mxu0 0
    %3218 = vmatpush1.bf16.msra.mxu0 %v2247
    %3219 = vmatprep.subr.bf16.mxu0 0
    %3220 = vmatpush1.bf16.msra.mxu0 %v2254
    %3221 = vmatprep.subr.bf16.mxu0 0
    %3222 = vmatpush1.bf16.msra.mxu0 %v2261
    %3223 = vmatprep.mubr.bf16.mxu0 %v1052
    %3224 = vmatmul.mubr.bf16.gmra.mrb[0].mxu0 %v1051
    %v3225 = vpop.f32.mrb[0].mxu0
    %v3226 = vadd.f32 %v1086, %v3225
    %v3227 = vpop.f32.mrb[0].mxu0
    %v3228 = vpop.f32.mrb[0].mxu0
    %v3229 = vpop.f32.mrb[0].mxu0
    %3230 = vdwg.mxu0
    %3231 = vmatprep.subr.bf16.mxu0 0
    %3232 = vmatpush1.bf16.msra.mxu0 %v2268
    %3233 = vmatprep.subr.bf16.mxu0 0
    %3234 = vmatpush1.bf16.msra.mxu0 %v2275
    %3235 = vmatprep.subr.bf16.mxu0 0
    %3236 = vmatpush1.bf16.msra.mxu0 %v2282
    %3237 = vmatprep.subr.bf16.mxu0 0
    %3238 = vmatpush1.bf16.msra.mxu0 %v2289
    %3239 = vmatprep.subr.bf16.mxu0 0
    %3240 = vmatpush1.bf16.msra.mxu0 %v2296
    %3241 = vmatprep.subr.bf16.mxu0 0
    %3242 = vmatpush1.bf16.msra.mxu0 %v2303
    %3243 = vmatprep.subr.bf16.mxu0 0
    %3244 = vmatpush1.bf16.msra.mxu0 %v2310
    %3245 = vmatprep.subr.bf16.mxu0 0
    %3246 = vmatpush1.bf16.msra.mxu0 %v2317
    %3247 = vmatprep.subr.bf16.mxu0 0
    %3248 = vmatpush1.bf16.msra.mxu0 %v2324
    %3249 = vmatprep.subr.bf16.mxu0 0
    %3250 = vmatpush1.bf16.msra.mxu0 %v2331
    %3251 = vmatprep.subr.bf16.mxu0 0
    %3252 = vmatpush1.bf16.msra.mxu0 %v2338
    %3253 = vmatprep.subr.bf16.mxu0 0
    %3254 = vmatpush1.bf16.msra.mxu0 %v2345
    %3255 = vmatprep.subr.bf16.mxu0 0
    %3256 = vmatpush1.bf16.msra.mxu0 %v2352
    %3257 = vmatprep.subr.bf16.mxu0 0
    %3258 = vmatpush1.bf16.msra.mxu0 %v2359
    %3259 = vmatprep.subr.bf16.mxu0 0
    %3260 = vmatpush1.bf16.msra.mxu0 %v2366
    %3261 = vmatprep.subr.bf16.mxu0 0
    %3262 = vmatpush1.bf16.msra.mxu0 %v2373
    %3263 = vmatprep.mubr.bf16.mxu0 %v1054
    %3264 = vmatmul.mubr.bf16.gmra.mrb[0].mxu0 %v1053
    %v3265 = vpop.f32.mrb[0].mxu0
    %v3266 = vadd.f32 %v3226, %v3265
    %v3267 = vpop.f32.mrb[0].mxu0
    %v3268 = vpop.f32.mrb[0].mxu0
    %v3269 = vpop.f32.mrb[0].mxu0
    %3270 = vdwg.mxu0
    %3271 = vmatprep.subr.bf16.mxu0 0
    %3272 = vmatpush1.bf16.msra.mxu0 %v2380
    %3273 = vmatprep.subr.bf16.mxu0 0
    %3274 = vmatpush1.bf16.msra.mxu0 %v2387
    %3275 = vmatprep.subr.bf16.mxu0 0
    %3276 = vmatpush1.bf16.msra.mxu0 %v2394
    %3277 = vmatprep.subr.bf16.mxu0 0
    %3278 = vmatpush1.bf16.msra.mxu0 %v2401
    %3279 = vmatprep.subr.bf16.mxu0 0
    %3280 = vmatpush1.bf16.msra.mxu0 %v2408
    %3281 = vmatprep.subr.bf16.mxu0 0
    %3282 = vmatpush1.bf16.msra.mxu0 %v2415
    %3283 = vmatprep.subr.bf16.mxu0 0
    %3284 = vmatpush1.bf16.msra.mxu0 %v2422
    %3285 = vmatprep.subr.bf16.mxu0 0
    %3286 = vmatpush1.bf16.msra.mxu0 %v2429
    %3287 = vmatprep.subr.bf16.mxu0 0
    %3288 = vmatpush1.bf16.msra.mxu0 %v2436
    %3289 = vmatprep.subr.bf16.mxu0 0
    %3290 = vmatpush1.bf16.msra.mxu0 %v2443
    %3291 = vmatprep.subr.bf16.mxu0 0
    %3292 = vmatpush1.bf16.msra.mxu0 %v2450
    %3293 = vmatprep.subr.bf16.mxu0 0
    %3294 = vmatpush1.bf16.msra.mxu0 %v2457
    %3295 = vmatprep.subr.bf16.mxu0 0
    %3296 = vmatpush1.bf16.msra.mxu0 %v2464
    %3297 = vmatprep.subr.bf16.mxu0 0
    %3298 = vmatpush1.bf16.msra.mxu0 %v2471
    %3299 = vmatprep.subr.bf16.mxu0 0
    %3300 = vmatpush1.bf16.msra.mxu0 %v2478
    %3301 = vmatprep.subr.bf16.mxu0 0
    %3302 = vmatpush1.bf16.msra.mxu0 %v2485
    %3303 = vmatprep.mubr.bf16.mxu0 %v1056
    %3304 = vmatmul.mubr.bf16.gmra.mrb[0].mxu0 %v1055
    %v3305 = vpop.f32.mrb[0].mxu0
    %v3306 = vadd.f32 %v3266, %v3305
    %v3307 = vpop.f32.mrb[0].mxu0
    %v3308 = vpop.f32.mrb[0].mxu0
    %v3309 = vpop.f32.mrb[0].mxu0
    %3310 = vdwg.mxu0
    %v3311 = vmax.f32 %v2939, 0.0
    %v3312 = vmax.f32 %v2941, 0.0
    %v3313 = vmax.f32 %v3062, 0.0
    %v3314 = vmax.f32 %v3064, 0.0
    %v3315 = vmax.f32 %v3185, 0.0
    %v3316 = vmax.f32 %v3187, 0.0
    %v3317 = vmul.f32 %v3306, %v3306
    %v3318 = vsel %vm627, %v3317, 0.0
    %3319 = vadd.xlane.f32.xlu0 %v3318
    %v3320 = vpop.xlane.xlu0 %3319
    %v3321 = vmax.f32 %v3320, 1e-24
    %v3322 = vrsqrt.pop %v3321
    %v3323 = vmul.f32 %v3306, %v3322
    %v3324 = vld [vmem:[%s8] sm:$0x3f]
    %v3326 = vlaneseq
    %v3327 = vshrl.u32 %v3326, 7
    %v3328 = vsub.s32 0, %v3327
    %v3329 = vrot.slane %v3324, %v3328
    %v3330 = vlaneseq
    %v3331 = vshrl.u32 %v3330, 7
    %v3332 = vsub.s32 1, %v3331
    %v3333 = vrot.slane %v3324, %v3332
    %v3334 = vlaneseq
    %v3335 = vshrl.u32 %v3334, 7
    %v3336 = vsub.s32 2, %v3335
    %v3337 = vrot.slane %v3324, %v3336
    %v3338 = vlaneseq
    %v3339 = vshrl.u32 %v3338, 7
    %v3340 = vsub.s32 3, %v3339
    %v3341 = vrot.slane %v3324, %v3340
    %v3342 = vlaneseq
    %v3343 = vshrl.u32 %v3342, 7
    %v3344 = vsub.s32 4, %v3343
    %v3345 = vrot.slane %v3324, %v3344
    %v3346 = vlaneseq
    %v3347 = vshrl.u32 %v3346, 7
    %v3348 = vsub.s32 5, %v3347
    %v3349 = vrot.slane %v3324, %v3348
    %v3356 = vmul.f32 %v3311, %v3329
    %v3357 = vmul.f32 %v3312, %v3333
    %v3358 = vmul.f32 %v3313, %v3337
    %v3359 = vmul.f32 %v3314, %v3341
    %v3360 = vmul.f32 %v3315, %v3345
    %v3361 = vmul.f32 %v3316, %v3349
    %vm3362 = vcmask 1041408
    %v3363 = vsel %vm3362, %v3356, 0.0
    %v3364 = vsel %vm3362, %v3357, 0.0
    %v3365 = vadd.f32 %v3363, %v3364
    %v3366 = vsel %vm3362, %v3358, 0.0
    %v3367 = vadd.f32 %v3365, %v3366
    %v3368 = vsel %vm3362, %v3359, 0.0
    %v3369 = vadd.f32 %v3367, %v3368
    %v3370 = vsel %vm3362, %v3360, 0.0
    %v3371 = vadd.f32 %v3369, %v3370
    %v3372 = vsel %vm3362, %v3361, 0.0
    %v3373 = vadd.f32 %v3371, %v3372
    %3374 = vadd.xlane.f32.xlu0 %v3373
    %v3375 = vpop.xlane.xlu0 %3374
    %v3376 = vld [vmem:[#allocation2] sm:$0x1]
    %v3378 = vlaneseq
    %v3379 = vshrl.u32 %v3378, 7
    %v3380 = vsub.s32 0, %v3379
    %v3381 = vrot.slane %v3376, %v3380
    %v3383 = vadd.f32 %v3375, %v3381
    %v3384 = vsub.f32 0.0, %v3383
    %v3385 = vmul.f32 %v3384, 1.442695
    %v3386 = vpow.pop %v3385
    %v3387 = vadd.f32 %v3386, 1.0
    %v3388 = vrcp.pop %v3387
    %v3389 = vmul.f32 1.0, %v3388
    %3391 = vrot.lane.b32.xlu0 %v3323, 64
    %v3392 = vpop.permute.xlu0 %3391
    %vm3394 = vcmask 523264
    %v3395 = vsel %vm3394, %v633, %v3392
    %v3396 = vld [vmem:[%s10] sm:$0xf]
    %v3397 = vld [vmem:[%s10 + $0x4] sm:$0xf]
    %v3398 = vld [vmem:[%s10 + $0x8] sm:$0xf]
    %v3399 = vld [vmem:[%s10 + $0xc] sm:$0xf]
    %v3400 = vld [vmem:[%s10 + $0x10] sm:$0xf]
    %v3401 = vld [vmem:[%s10 + $0x14] sm:$0xf]
    %v3402 = vld [vmem:[%s10 + $0x18] sm:$0xf]
    %v3403 = vld [vmem:[%s10 + $0x1c] sm:$0xf]
    %v3404 = vld [vmem:[%s10 + $0x20] sm:$0xf]
    %v3405 = vld [vmem:[%s10 + $0x24] sm:$0xf]
    %v3406 = vld [vmem:[%s10 + $0x28] sm:$0xf]
    %v3407 = vld [vmem:[%s10 + $0x2c] sm:$0xf]
    %v3408 = vld [vmem:[%s10 + $0x30] sm:$0xf]
    %v3409 = vld [vmem:[%s10 + $0x34] sm:$0xf]
    %v3410 = vld [vmem:[%s10 + $0x38] sm:$0xf]
    %v3411 = vld [vmem:[%s10 + $0x3c] sm:$0xf]
    %v3412 = vpack.c.bf16 %v3395, %v3395
    %v3413 = vld [vmem:[%s11] sm:$0x1]
    %v3415 = vlaneseq
    %v3416 = vshrl.u32 %v3415, 7
    %v3417 = vsub.s32 0, %v3416
    %v3418 = vrot.slane %v3413, %v3417
    %v3436 = vunpack.c.l.b16 %v3396
    %v3437 = vunpack.c.l.b16 %v3397
    %v3438 = vunpack.c.l.b16 %v3398
    %v3439 = vunpack.c.l.b16 %v3399
    %v3440 = vunpack.c.l.b16 %v3400
    %v3441 = vunpack.c.l.b16 %v3401
    %v3442 = vunpack.c.l.b16 %v3402
    %v3443 = vunpack.c.l.b16 %v3403
    %v3444 = vunpack.c.l.b16 %v3404
    %v3445 = vunpack.c.l.b16 %v3405
    %v3446 = vunpack.c.l.b16 %v3406
    %v3447 = vunpack.c.l.b16 %v3407
    %v3448 = vunpack.c.l.b16 %v3408
    %v3449 = vunpack.c.l.b16 %v3409
    %v3450 = vunpack.c.l.b16 %v3410
    %v3451 = vunpack.c.l.b16 %v3411
    %v3452 = vpack.c.b16 %v3437, %v3436
    %v3453 = vpack.c.b16 %v3439, %v3438
    %v3454 = vpack.c.b16 %v3441, %v3440
    %v3455 = vpack.c.b16 %v3443, %v3442
    %v3456 = vpack.c.b16 %v3445, %v3444
    %v3457 = vpack.c.b16 %v3447, %v3446
    %v3458 = vpack.c.b16 %v3449, %v3448
    %v3459 = vpack.c.b16 %v3451, %v3450
    %3468 = vmatprep.subr.bf16.mxu0 0
    %3469 = vmatpush1.bf16.msra.mxu0 %v3452
    %3470 = vmatprep.subr.bf16.mxu0 0
    %3471 = vmatpush1.bf16.msra.mxu0 %v3453
    %3472 = vmatprep.subr.bf16.mxu0 0
    %3473 = vmatpush1.bf16.msra.mxu0 %v3454
    %3474 = vmatprep.subr.bf16.mxu0 0
    %3475 = vmatpush1.bf16.msra.mxu0 %v3455
    %3476 = vmatprep.subr.bf16.mxu0 0
    %3477 = vmatpush1.bf16.msra.mxu0 %v3456
    %3478 = vmatprep.subr.bf16.mxu0 0
    %3479 = vmatpush1.bf16.msra.mxu0 %v3457
    %3480 = vmatprep.subr.bf16.mxu0 0
    %3481 = vmatpush1.bf16.msra.mxu0 %v3458
    %3482 = vmatprep.subr.bf16.mxu0 0
    %3483 = vmatpush1.bf16.msra.mxu0 %v3459
    %3484 = vmatprep.subr.bf16.mxu0 0
    %3485 = vmatpush1.bf16.msra.mxu0 0
    %3486 = vmatprep.subr.bf16.mxu0 0
    %3487 = vmatpush1.bf16.msra.mxu0 0
    %3488 = vmatprep.subr.bf16.mxu0 0
    %3489 = vmatpush1.bf16.msra.mxu0 0
    %3490 = vmatprep.subr.bf16.mxu0 0
    %3491 = vmatpush1.bf16.msra.mxu0 0
    %3492 = vmatprep.subr.bf16.mxu0 0
    %3493 = vmatpush1.bf16.msra.mxu0 0
    %3494 = vmatprep.subr.bf16.mxu0 0
    %3495 = vmatpush1.bf16.msra.mxu0 0
    %3496 = vmatprep.subr.bf16.mxu0 0
    %3497 = vmatpush1.bf16.msra.mxu0 0
    %3498 = vmatprep.subr.bf16.mxu0 0
    %3499 = vmatpush1.bf16.msra.mxu0 0
    %3500 = vmatprep.mubr.bf16.mxu0 0
    %3501 = vmatmul.mubr.bf16.gmra.mrb[0].mxu0 %v3412
    %v3502 = vpop.f32.mrb[0].mxu0
    %v3503 = vadd.f32 %v3418, %v3502
    %v3504 = vpop.f32.mrb[0].mxu0
    %v3505 = vpop.f32.mrb[0].mxu0
    %v3506 = vpop.f32.mrb[0].mxu0
    %3507 = vdwg.mxu0
    %v3508 = vmax.f32 %v3503, 0.0
    %v3509 = vld [vmem:[%s12] sm:$0xf]
    %v3510 = vld [vmem:[%s12 + $0x4] sm:$0xf]
    %v3511 = vld [vmem:[%s12 + $0x8] sm:$0xf]
    %v3512 = vld [vmem:[%s12 + $0xc] sm:$0xf]
    %v3513 = vld [vmem:[%s12 + $0x10] sm:$0xf]
    %v3514 = vld [vmem:[%s12 + $0x14] sm:$0xf]
    %v3515 = vld [vmem:[%s12 + $0x18] sm:$0xf]
    %v3516 = vld [vmem:[%s12 + $0x1c] sm:$0xf]
    %v3517 = vpack.c.bf16 %v3508, %v3508
    %v3518 = vld [vmem:[%s13] sm:$0x1]
    %v3520 = vlaneseq
    %v3521 = vshrl.u32 %v3520, 7
    %v3522 = vsub.s32 0, %v3521
    %v3523 = vrot.slane %v3518, %v3522
    %v3533 = vunpack.c.l.b16 %v3509
    %v3534 = vunpack.c.l.b16 %v3510
    %v3535 = vunpack.c.l.b16 %v3511
    %v3536 = vunpack.c.l.b16 %v3512
    %v3537 = vunpack.c.l.b16 %v3513
    %v3538 = vunpack.c.l.b16 %v3514
    %v3539 = vunpack.c.l.b16 %v3515
    %v3540 = vunpack.c.l.b16 %v3516
    %v3541 = vpack.c.b16 %v3534, %v3533
    %v3542 = vpack.c.b16 %v3536, %v3535
    %v3543 = vpack.c.b16 %v3538, %v3537
    %v3544 = vpack.c.b16 %v3540, %v3539
    %v3550 = vsel %vm3394, %v3517, 0
    %3552 = vmatprep.subr.bf16.mxu0 0
    %3553 = vmatpush1.bf16.msra.mxu0 %v3541
    %3554 = vmatprep.subr.bf16.mxu0 0
    %3555 = vmatpush1.bf16.msra.mxu0 %v3542
    %3556 = vmatprep.subr.bf16.mxu0 0
    %3557 = vmatpush1.bf16.msra.mxu0 %v3543
    %3558 = vmatprep.subr.bf16.mxu0 0
    %3559 = vmatpush1.bf16.msra.mxu0 %v3544
    %3560 = vmatprep.subr.bf16.mxu0 0
    %3561 = vmatpush1.bf16.msra.mxu0 0
    %3562 = vmatprep.subr.bf16.mxu0 0
    %3563 = vmatpush1.bf16.msra.mxu0 0
    %3564 = vmatprep.subr.bf16.mxu0 0
    %3565 = vmatpush1.bf16.msra.mxu0 0
    %3566 = vmatprep.subr.bf16.mxu0 0
    %3567 = vmatpush1.bf16.msra.mxu0 0
    %3568 = vmatprep.subr.bf16.mxu0 0
    %3569 = vmatpush1.bf16.msra.mxu0 0
    %3570 = vmatprep.subr.bf16.mxu0 0
    %3571 = vmatpush1.bf16.msra.mxu0 0
    %3572 = vmatprep.subr.bf16.mxu0 0
    %3573 = vmatpush1.bf16.msra.mxu0 0
    %3574 = vmatprep.subr.bf16.mxu0 0
    %3575 = vmatpush1.bf16.msra.mxu0 0
    %3576 = vmatprep.subr.bf16.mxu0 0
    %3577 = vmatpush1.bf16.msra.mxu0 0
    %3578 = vmatprep.subr.bf16.mxu0 0
    %3579 = vmatpush1.bf16.msra.mxu0 0
    %3580 = vmatprep.subr.bf16.mxu0 0
    %3581 = vmatpush1.bf16.msra.mxu0 0
    %3582 = vmatprep.subr.bf16.mxu0 0
    %3583 = vmatpush1.bf16.msra.mxu0 0
    %3584 = vmatprep.mubr.bf16.mxu0 0
    %3585 = vmatmul.mubr.bf16.gmra.mrb[0].mxu0 %v3550
    %v3586 = vpop.f32.mrb[0].mxu0
    %v3587 = vadd.f32 %v3523, %v3586
    %v3588 = vpop.f32.mrb[0].mxu0
    %v3589 = vpop.f32.mrb[0].mxu0
    %v3590 = vpop.f32.mrb[0].mxu0
    %3591 = vdwg.mxu0
    %v3592 = vmax.f32 %v3587, 0.0
    %v3593 = vld [vmem:[%s14] sm:$0xf]
    %v3594 = vld [vmem:[%s14 + $0x4] sm:$0xf]
    %v3595 = vld [vmem:[%s14 + $0x8] sm:$0xf]
    %v3596 = vld [vmem:[%s14 + $0xc] sm:$0xf]
    %v3597 = vld [vmem:[%s14 + $0x10] sm:$0xf]
    %v3598 = vld [vmem:[%s14 + $0x14] sm:$0xf]
    %v3599 = vld [vmem:[%s14 + $0x18] sm:$0xf]
    %v3600 = vld [vmem:[%s14 + $0x1c] sm:$0xf]
    %v3601 = vpack.c.bf16 %v3592, %v3592
    %v3602 = vld [vmem:[%s15] sm:$0x1]
    %v3604 = vlaneseq
    %v3605 = vshrl.u32 %v3604, 7
    %v3606 = vsub.s32 0, %v3605
    %v3607 = vrot.slane %v3602, %v3606
    %v3617 = vunpack.c.l.b16 %v3593
    %v3618 = vunpack.c.l.b16 %v3594
    %v3619 = vunpack.c.l.b16 %v3595
    %v3620 = vunpack.c.l.b16 %v3596
    %v3621 = vunpack.c.l.b16 %v3597
    %v3622 = vunpack.c.l.b16 %v3598
    %v3623 = vunpack.c.l.b16 %v3599
    %v3624 = vunpack.c.l.b16 %v3600
    %v3625 = vpack.c.b16 %v3618, %v3617
    %v3626 = vpack.c.b16 %v3620, %v3619
    %v3627 = vpack.c.b16 %v3622, %v3621
    %v3628 = vpack.c.b16 %v3624, %v3623
    %v3634 = vsel %vm3394, %v3601, 0
    %3636 = vmatprep.subr.bf16.mxu0 0
    %3637 = vmatpush1.bf16.msra.mxu0 %v3625
    %3638 = vmatprep.subr.bf16.mxu0 0
    %3639 = vmatpush1.bf16.msra.mxu0 %v3626
    %3640 = vmatprep.subr.bf16.mxu0 0
    %3641 = vmatpush1.bf16.msra.mxu0 %v3627
    %3642 = vmatprep.subr.bf16.mxu0 0
    %3643 = vmatpush1.bf16.msra.mxu0 %v3628
    %3644 = vmatprep.subr.bf16.mxu0 0
    %3645 = vmatpush1.bf16.msra.mxu0 0
    %3646 = vmatprep.subr.bf16.mxu0 0
    %3647 = vmatpush1.bf16.msra.mxu0 0
    %3648 = vmatprep.subr.bf16.mxu0 0
    %3649 = vmatpush1.bf16.msra.mxu0 0
    %3650 = vmatprep.subr.bf16.mxu0 0
    %3651 = vmatpush1.bf16.msra.mxu0 0
    %3652 = vmatprep.subr.bf16.mxu0 0
    %3653 = vmatpush1.bf16.msra.mxu0 0
    %3654 = vmatprep.subr.bf16.mxu0 0
    %3655 = vmatpush1.bf16.msra.mxu0 0
    %3656 = vmatprep.subr.bf16.mxu0 0
    %3657 = vmatpush1.bf16.msra.mxu0 0
    %3658 = vmatprep.subr.bf16.mxu0 0
    %3659 = vmatpush1.bf16.msra.mxu0 0
    %3660 = vmatprep.subr.bf16.mxu0 0
    %3661 = vmatpush1.bf16.msra.mxu0 0
    %3662 = vmatprep.subr.bf16.mxu0 0
    %3663 = vmatpush1.bf16.msra.mxu0 0
    %3664 = vmatprep.subr.bf16.mxu0 0
    %3665 = vmatpush1.bf16.msra.mxu0 0
    %3666 = vmatprep.subr.bf16.mxu0 0
    %3667 = vmatpush1.bf16.msra.mxu0 0
    %3668 = vmatprep.mubr.bf16.mxu0 0
    %3669 = vmatmul.mubr.bf16.gmra.mrb[0].mxu0 %v3634
    %v3670 = vpop.f32.mrb[0].mxu0
    %v3671 = vadd.f32 %v3607, %v3670
    %v3672 = vpop.f32.mrb[0].mxu0
    %v3673 = vpop.f32.mrb[0].mxu0
    %v3674 = vpop.f32.mrb[0].mxu0
    %3675 = vdwg.mxu0
    %v3676 = vadd.f32 %v3671, %v3395
    %v3677 = vld [vmem:[%s16] sm:$0xff]
    %v3678 = vld [vmem:[%s16 + $0x8] sm:$0xf]
    %v3679 = vld [vmem:[%s16 + $0xc] sm:$0xff]
    %v3680 = vld [vmem:[%s16 + $0x14] sm:$0xf]
    %v3681 = vld [vmem:[%s16 + $0x18] sm:$0xff]
    %v3682 = vld [vmem:[%s16 + $0x20] sm:$0xf]
    %v3683 = vld [vmem:[%s16 + $0x24] sm:$0xff]
    %v3684 = vld [vmem:[%s16 + $0x2c] sm:$0xf]
    %v3685 = vld [vmem:[%s16 + $0x30] sm:$0xff]
    %v3686 = vld [vmem:[%s16 + $0x38] sm:$0xf]
    %v3687 = vld [vmem:[%s16 + $0x3c] sm:$0xff]
    %v3688 = vld [vmem:[%s16 + $0x44] sm:$0xf]
    %v3689 = vld [vmem:[%s16 + $0x48] sm:$0xff]
    %v3690 = vld [vmem:[%s16 + $0x50] sm:$0xf]
    %v3691 = vld [vmem:[%s16 + $0x54] sm:$0xff]
    %v3692 = vld [vmem:[%s16 + $0x5c] sm:$0xf]
    %v3693 = vld [vmem:[%s16 + $0x60] sm:$0xff]
    %v3694 = vld [vmem:[%s16 + $0x68] sm:$0xf]
    %v3695 = vld [vmem:[%s16 + $0x6c] sm:$0xff]
    %v3696 = vld [vmem:[%s16 + $0x74] sm:$0xf]
    %v3697 = vld [vmem:[%s16 + $0x78] sm:$0xff]
    %v3698 = vld [vmem:[%s16 + $0x80] sm:$0xf]
    %v3699 = vld [vmem:[%s16 + $0x84] sm:$0xff]
    %v3700 = vld [vmem:[%s16 + $0x8c] sm:$0xf]
    %v3701 = vld [vmem:[%s16 + $0x90] sm:$0xff]
    %v3702 = vld [vmem:[%s16 + $0x98] sm:$0xf]
    %v3703 = vld [vmem:[%s16 + $0x9c] sm:$0xff]
    %v3704 = vld [vmem:[%s16 + $0xa4] sm:$0xf]
    %v3705 = vld [vmem:[%s16 + $0xa8] sm:$0xff]
    %v3706 = vld [vmem:[%s16 + $0xb0] sm:$0xf]
    %v3707 = vld [vmem:[%s16 + $0xb4] sm:$0xff]
    %v3708 = vld [vmem:[%s16 + $0xbc] sm:$0xf]
    %v3709 = vpack.c.bf16 %v3676, %v3676
    %v3710 = vld [vmem:[%s17] sm:$0x7]
    %v3712 = vlaneseq
    %v3713 = vshrl.u32 %v3712, 7
    %v3714 = vsub.s32 0, %v3713
    %v3715 = vrot.slane %v3710, %v3714
    %v3716 = vlaneseq
    %v3717 = vshrl.u32 %v3716, 7
    %v3718 = vsub.s32 1, %v3717
    %v3719 = vrot.slane %v3710, %v3718
    %v3720 = vlaneseq
    %v3721 = vshrl.u32 %v3720, 7
    %v3722 = vsub.s32 2, %v3721
    %v3723 = vrot.slane %v3710, %v3722
    %v3759 = vunpack.c.l.b16 %v3677
    %v3760 = vunpack.c.h.b16 %v3677
    %v3761 = vunpack.c.l.b16 %v3678
    %v3762 = vunpack.c.l.b16 %v3679
    %v3763 = vunpack.c.h.b16 %v3679
    %v3764 = vunpack.c.l.b16 %v3680
    %v3765 = vunpack.c.l.b16 %v3681
    %v3766 = vunpack.c.h.b16 %v3681
    %v3767 = vunpack.c.l.b16 %v3682
    %v3768 = vunpack.c.l.b16 %v3683
    %v3769 = vunpack.c.h.b16 %v3683
    %v3770 = vunpack.c.l.b16 %v3684
    %v3771 = vunpack.c.l.b16 %v3685
    %v3772 = vunpack.c.h.b16 %v3685
    %v3773 = vunpack.c.l.b16 %v3686
    %v3774 = vunpack.c.l.b16 %v3687
    %v3775 = vunpack.c.h.b16 %v3687
    %v3776 = vunpack.c.l.b16 %v3688
    %v3777 = vunpack.c.l.b16 %v3689
    %v3778 = vunpack.c.h.b16 %v3689
    %v3779 = vunpack.c.l.b16 %v3690
    %v3780 = vunpack.c.l.b16 %v3691
    %v3781 = vunpack.c.h.b16 %v3691
    %v3782 = vunpack.c.l.b16 %v3692
    %v3783 = vunpack.c.l.b16 %v3693
    %v3784 = vunpack.c.h.b16 %v3693
    %v3785 = vunpack.c.l.b16 %v3694
    %v3786 = vunpack.c.l.b16 %v3695
    %v3787 = vunpack.c.h.b16 %v3695
    %v3788 = vunpack.c.l.b16 %v3696
    %v3789 = vunpack.c.l.b16 %v3697
    %v3790 = vunpack.c.h.b16 %v3697
    %v3791 = vunpack.c.l.b16 %v3698
    %v3792 = vunpack.c.l.b16 %v3699
    %v3793 = vunpack.c.h.b16 %v3699
    %v3794 = vunpack.c.l.b16 %v3700
    %v3795 = vunpack.c.l.b16 %v3701
    %v3796 = vunpack.c.h.b16 %v3701
    %v3797 = vunpack.c.l.b16 %v3702
    %v3798 = vunpack.c.l.b16 %v3703
    %v3799 = vunpack.c.h.b16 %v3703
    %v3800 = vunpack.c.l.b16 %v3704
    %v3801 = vunpack.c.l.b16 %v3705
    %v3802 = vunpack.c.h.b16 %v3705
    %v3803 = vunpack.c.l.b16 %v3706
    %v3804 = vunpack.c.l.b16 %v3707
    %v3805 = vunpack.c.h.b16 %v3707
    %v3806 = vunpack.c.l.b16 %v3708
    %v3807 = vpack.c.b16 %v3762, %v3759
    %v3808 = vpack.c.b16 %v3763, %v3760
    %v3809 = vpack.c.b16 %v3764, %v3761
    %v3810 = vpack.c.b16 %v3768, %v3765
    %v3811 = vpack.c.b16 %v3769, %v3766
    %v3812 = vpack.c.b16 %v3770, %v3767
    %v3813 = vpack.c.b16 %v3774, %v3771
    %v3814 = vpack.c.b16 %v3775, %v3772
    %v3815 = vpack.c.b16 %v3776, %v3773
    %v3816 = vpack.c.b16 %v3780, %v3777
    %v3817 = vpack.c.b16 %v3781, %v3778
    %v3818 = vpack.c.b16 %v3782, %v3779
    %v3819 = vpack.c.b16 %v3786, %v3783
    %v3820 = vpack.c.b16 %v3787, %v3784
    %v3821 = vpack.c.b16 %v3788, %v3785
    %v3822 = vpack.c.b16 %v3792, %v3789
    %v3823 = vpack.c.b16 %v3793, %v3790
    %v3824 = vpack.c.b16 %v3794, %v3791
    %v3825 = vpack.c.b16 %v3798, %v3795
    %v3826 = vpack.c.b16 %v3799, %v3796
    %v3827 = vpack.c.b16 %v3800, %v3797
    %v3828 = vpack.c.b16 %v3804, %v3801
    %v3829 = vpack.c.b16 %v3805, %v3802
    %v3830 = vpack.c.b16 %v3806, %v3803
    %3855 = vmatprep.subr.bf16.mxu0 %v3808
    %3856 = vmatpush1.bf16.msra.mxu0 %v3807
    %3857 = vmatprep.subr.bf16.mxu0 %v3811
    %3858 = vmatpush1.bf16.msra.mxu0 %v3810
    %3859 = vmatprep.subr.bf16.mxu0 %v3814
    %3860 = vmatpush1.bf16.msra.mxu0 %v3813
    %3861 = vmatprep.subr.bf16.mxu0 %v3817
    %3862 = vmatpush1.bf16.msra.mxu0 %v3816
    %3863 = vmatprep.subr.bf16.mxu0 %v3820
    %3864 = vmatpush1.bf16.msra.mxu0 %v3819
    %3865 = vmatprep.subr.bf16.mxu0 %v3823
    %3866 = vmatpush1.bf16.msra.mxu0 %v3822
    %3867 = vmatprep.subr.bf16.mxu0 %v3826
    %3868 = vmatpush1.bf16.msra.mxu0 %v3825
    %3869 = vmatprep.subr.bf16.mxu0 %v3829
    %3870 = vmatpush1.bf16.msra.mxu0 %v3828
    %3871 = vmatprep.subr.bf16.mxu0 0
    %3872 = vmatpush1.bf16.msra.mxu0 0
    %3873 = vmatprep.subr.bf16.mxu0 0
    %3874 = vmatpush1.bf16.msra.mxu0 0
    %3875 = vmatprep.subr.bf16.mxu0 0
    %3876 = vmatpush1.bf16.msra.mxu0 0
    %3877 = vmatprep.subr.bf16.mxu0 0
    %3878 = vmatpush1.bf16.msra.mxu0 0
    %3879 = vmatprep.subr.bf16.mxu0 0
    %3880 = vmatpush1.bf16.msra.mxu0 0
    %3881 = vmatprep.subr.bf16.mxu0 0
    %3882 = vmatpush1.bf16.msra.mxu0 0
    %3883 = vmatprep.subr.bf16.mxu0 0
    %3884 = vmatpush1.bf16.msra.mxu0 0
    %3885 = vmatprep.subr.bf16.mxu0 0
    %3886 = vmatpush1.bf16.msra.mxu0 0
    %3887 = vmatprep.mubr.bf16.mxu0 0
    %3888 = vmatmul.mubr.bf16.gmra.mrb[0].mxu0 %v3709
    %v3889 = vpop.f32.mrb[0].mxu0
    %v3890 = vadd.f32 %v3715, %v3889
    %v3891 = vpop.f32.mrb[0].mxu0
    %v3892 = vadd.f32 %v3719, %v3891
    %v3893 = vpop.f32.mrb[0].mxu0
    %v3894 = vpop.f32.mrb[0].mxu0
    %3895 = vdwg.mxu0
    %3896 = vmatprep.subr.bf16.mxu0 0
    %3897 = vmatpush1.bf16.msra.mxu0 %v3809
    %3898 = vmatprep.subr.bf16.mxu0 0
    %3899 = vmatpush1.bf16.msra.mxu0 %v3812
    %3900 = vmatprep.subr.bf16.mxu0 0
    %3901 = vmatpush1.bf16.msra.mxu0 %v3815
    %3902 = vmatprep.subr.bf16.mxu0 0
    %3903 = vmatpush1.bf16.msra.mxu0 %v3818
    %3904 = vmatprep.subr.bf16.mxu0 0
    %3905 = vmatpush1.bf16.msra.mxu0 %v3821
    %3906 = vmatprep.subr.bf16.mxu0 0
    %3907 = vmatpush1.bf16.msra.mxu0 %v3824
    %3908 = vmatprep.subr.bf16.mxu0 0
    %3909 = vmatpush1.bf16.msra.mxu0 %v3827
    %3910 = vmatprep.subr.bf16.mxu0 0
    %3911 = vmatpush1.bf16.msra.mxu0 %v3830
    %3912 = vmatprep.subr.bf16.mxu0 0
    %3913 = vmatpush1.bf16.msra.mxu0 0
    %3914 = vmatprep.subr.bf16.mxu0 0
    %3915 = vmatpush1.bf16.msra.mxu0 0
    %3916 = vmatprep.subr.bf16.mxu0 0
    %3917 = vmatpush1.bf16.msra.mxu0 0
    %3918 = vmatprep.subr.bf16.mxu0 0
    %3919 = vmatpush1.bf16.msra.mxu0 0
    %3920 = vmatprep.subr.bf16.mxu0 0
    %3921 = vmatpush1.bf16.msra.mxu0 0
    %3922 = vmatprep.subr.bf16.mxu0 0
    %3923 = vmatpush1.bf16.msra.mxu0 0
    %3924 = vmatprep.subr.bf16.mxu0 0
    %3925 = vmatpush1.bf16.msra.mxu0 0
    %3926 = vmatprep.subr.bf16.mxu0 0
    %3927 = vmatpush1.bf16.msra.mxu0 0
    %3928 = vmatprep.mubr.bf16.mxu0 0
    %3929 = vmatmul.mubr.bf16.gmra.mrb[0].mxu0 %v3709
    %v3930 = vpop.f32.mrb[0].mxu0
    %v3931 = vadd.f32 %v3723, %v3930
    %v3932 = vpop.f32.mrb[0].mxu0
    %v3933 = vpop.f32.mrb[0].mxu0
    %v3934 = vpop.f32.mrb[0].mxu0
    %3935 = vdwg.mxu0
    %v3936 = vmax.f32 %v3890, 0.0
    %v3937 = vmax.f32 %v3892, 0.0
    %v3938 = vmax.f32 %v3931, 0.0
    %v3939 = vld [vmem:[%s18] sm:$0xff]
    %v3940 = vld [vmem:[%s18 + $0x8] sm:$0xf]
    %v3941 = vld [vmem:[%s18 + $0xc] sm:$0xff]
    %v3942 = vld [vmem:[%s18 + $0x14] sm:$0xf]
    %v3943 = vld [vmem:[%s18 + $0x18] sm:$0xff]
    %v3944 = vld [vmem:[%s18 + $0x20] sm:$0xf]
    %v3945 = vld [vmem:[%s18 + $0x24] sm:$0xff]
    %v3946 = vld [vmem:[%s18 + $0x2c] sm:$0xf]
    %v3947 = vld [vmem:[%s18 + $0x30] sm:$0xff]
    %v3948 = vld [vmem:[%s18 + $0x38] sm:$0xf]
    %v3949 = vld [vmem:[%s18 + $0x3c] sm:$0xff]
    %v3950 = vld [vmem:[%s18 + $0x44] sm:$0xf]
    %v3951 = vld [vmem:[%s18 + $0x48] sm:$0xff]
    %v3952 = vld [vmem:[%s18 + $0x50] sm:$0xf]
    %v3953 = vld [vmem:[%s18 + $0x54] sm:$0xff]
    %v3954 = vld [vmem:[%s18 + $0x5c] sm:$0xf]
    %v3955 = vld [vmem:[%s18 + $0x60] sm:$0xff]
    %v3956 = vld [vmem:[%s18 + $0x68] sm:$0xf]
    %v3957 = vld [vmem:[%s18 + $0x6c] sm:$0xff]
    %v3958 = vld [vmem:[%s18 + $0x74] sm:$0xf]
    %v3959 = vld [vmem:[%s18 + $0x78] sm:$0xff]
    %v3960 = vld [vmem:[%s18 + $0x80] sm:$0xf]
    %v3961 = vld [vmem:[%s18 + $0x84] sm:$0xff]
    %v3962 = vld [vmem:[%s18 + $0x8c] sm:$0xf]
    %v3963 = vld [vmem:[%s18 + $0x90] sm:$0xff]
    %v3964 = vld [vmem:[%s18 + $0x98] sm:$0xf]
    %v3965 = vld [vmem:[%s18 + $0x9c] sm:$0xff]
    %v3966 = vld [vmem:[%s18 + $0xa4] sm:$0xf]
    %v3967 = vld [vmem:[%s18 + $0xa8] sm:$0xff]
    %v3968 = vld [vmem:[%s18 + $0xb0] sm:$0xf]
    %v3969 = vld [vmem:[%s18 + $0xb4] sm:$0xff]
    %v3970 = vld [vmem:[%s18 + $0xbc] sm:$0xf]
    %v3971 = vld [vmem:[%s18 + $0xc0] sm:$0xff]
    %v3972 = vld [vmem:[%s18 + $0xc8] sm:$0xf]
    %v3973 = vld [vmem:[%s18 + $0xcc] sm:$0xff]
    %v3974 = vld [vmem:[%s18 + $0xd4] sm:$0xf]
    %v3975 = vld [vmem:[%s18 + $0xd8] sm:$0xff]
    %v3976 = vld [vmem:[%s18 + $0xe0] sm:$0xf]
    %v3977 = vld [vmem:[%s18 + $0xe4] sm:$0xff]
    %v3978 = vld [vmem:[%s18 + $0xec] sm:$0xf]
    %v3979 = vld [vmem:[%s18 + $0xf0] sm:$0xff]
    %v3980 = vld [vmem:[%s18 + $0xf8] sm:$0xf]
    %v3981 = vld [vmem:[%s18 + $0xfc] sm:$0xff]
    %v3982 = vld [vmem:[%s18 + $0x104] sm:$0xf]
    %v3983 = vld [vmem:[%s18 + $0x108] sm:$0xff]
    %v3984 = vld [vmem:[%s18 + $0x110] sm:$0xf]
    %v3985 = vld [vmem:[%s18 + $0x114] sm:$0xff]
    %v3986 = vld [vmem:[%s18 + $0x11c] sm:$0xf]
    %v3987 = vld [vmem:[%s18 + $0x120] sm:$0xff]
    %v3988 = vld [vmem:[%s18 + $0x128] sm:$0xf]
    %v3989 = vld [vmem:[%s18 + $0x12c] sm:$0xff]
    %v3990 = vld [vmem:[%s18 + $0x134] sm:$0xf]
    %v3991 = vld [vmem:[%s18 + $0x138] sm:$0xff]
    %v3992 = vld [vmem:[%s18 + $0x140] sm:$0xf]
    %v3993 = vld [vmem:[%s18 + $0x144] sm:$0xff]
    %v3994 = vld [vmem:[%s18 + $0x14c] sm:$0xf]
    %v3995 = vld [vmem:[%s18 + $0x150] sm:$0xff]
    %v3996 = vld [vmem:[%s18 + $0x158] sm:$0xf]
    %v3997 = vld [vmem:[%s18 + $0x15c] sm:$0xff]
    %v3998 = vld [vmem:[%s18 + $0x164] sm:$0xf]
    %v3999 = vld [vmem:[%s18 + $0x168] sm:$0xff]
    %v4000 = vld [vmem:[%s18 + $0x170] sm:$0xf]
    %v4001 = vld [vmem:[%s18 + $0x174] sm:$0xff]
    %v4002 = vld [vmem:[%s18 + $0x17c] sm:$0xf]
    %v4003 = vld [vmem:[%s18 + $0x180] sm:$0xff]
    %v4004 = vld [vmem:[%s18 + $0x188] sm:$0xf]
    %v4005 = vld [vmem:[%s18 + $0x18c] sm:$0xff]
    %v4006 = vld [vmem:[%s18 + $0x194] sm:$0xf]
    %v4007 = vld [vmem:[%s18 + $0x198] sm:$0xff]
    %v4008 = vld [vmem:[%s18 + $0x1a0] sm:$0xf]
    %v4009 = vld [vmem:[%s18 + $0x1a4] sm:$0xff]
    %v4010 = vld [vmem:[%s18 + $0x1ac] sm:$0xf]
    %v4011 = vld [vmem:[%s18 + $0x1b0] sm:$0xff]
    %v4012 = vld [vmem:[%s18 + $0x1b8] sm:$0xf]
    %v4013 = vld [vmem:[%s18 + $0x1bc] sm:$0xff]
    %v4014 = vld [vmem:[%s18 + $0x1c4] sm:$0xf]
    %v4015 = vld [vmem:[%s18 + $0x1c8] sm:$0xff]
    %v4016 = vld [vmem:[%s18 + $0x1d0] sm:$0xf]
    %v4017 = vld [vmem:[%s18 + $0x1d4] sm:$0xff]
    %v4018 = vld [vmem:[%s18 + $0x1dc] sm:$0xf]
    %v4019 = vld [vmem:[%s18 + $0x1e0] sm:$0xff]
    %v4020 = vld [vmem:[%s18 + $0x1e8] sm:$0xf]
    %v4021 = vld [vmem:[%s18 + $0x1ec] sm:$0xff]
    %v4022 = vld [vmem:[%s18 + $0x1f4] sm:$0xf]
    %v4023 = vld [vmem:[%s18 + $0x1f8] sm:$0xff]
    %v4024 = vld [vmem:[%s18 + $0x200] sm:$0xf]
    %v4025 = vld [vmem:[%s18 + $0x204] sm:$0xff]
    %v4026 = vld [vmem:[%s18 + $0x20c] sm:$0xf]
    %v4027 = vld [vmem:[%s18 + $0x210] sm:$0xff]
    %v4028 = vld [vmem:[%s18 + $0x218] sm:$0xf]
    %v4029 = vld [vmem:[%s18 + $0x21c] sm:$0xff]
    %v4030 = vld [vmem:[%s18 + $0x224] sm:$0xf]
    %v4031 = vld [vmem:[%s18 + $0x228] sm:$0xff]
    %v4032 = vld [vmem:[%s18 + $0x230] sm:$0xf]
    %v4033 = vld [vmem:[%s18 + $0x234] sm:$0xff]
    %v4034 = vld [vmem:[%s18 + $0x23c] sm:$0xf]
    %v4035 = vpack.c.bf16 %v3936, %v3936
    %v4036 = vpack.c.bf16 %v3937, %v3937
    %v4037 = vpack.c.bf16 %v3938, %v3938
    %v4038 = vld [vmem:[%s19] sm:$0x7]
    %v4040 = vlaneseq
    %v4041 = vshrl.u32 %v4040, 7
    %v4042 = vsub.s32 0, %v4041
    %v4043 = vrot.slane %v4038, %v4042
    %v4044 = vlaneseq
    %v4045 = vshrl.u32 %v4044, 7
    %v4046 = vsub.s32 1, %v4045
    %v4047 = vrot.slane %v4038, %v4046
    %v4048 = vlaneseq
    %v4049 = vshrl.u32 %v4048, 7
    %v4050 = vsub.s32 2, %v4049
    %v4051 = vrot.slane %v4038, %v4050
    %v4151 = vunpack.c.l.b16 %v3939
    %v4152 = vunpack.c.h.b16 %v3939
    %v4153 = vunpack.c.l.b16 %v3940
    %v4154 = vunpack.c.l.b16 %v3941
    %v4155 = vunpack.c.h.b16 %v3941
    %v4156 = vunpack.c.l.b16 %v3942
    %v4157 = vunpack.c.l.b16 %v3943
    %v4158 = vunpack.c.h.b16 %v3943
    %v4159 = vunpack.c.l.b16 %v3944
    %v4160 = vunpack.c.l.b16 %v3945
    %v4161 = vunpack.c.h.b16 %v3945
    %v4162 = vunpack.c.l.b16 %v3946
    %v4163 = vunpack.c.l.b16 %v3947
    %v4164 = vunpack.c.h.b16 %v3947
    %v4165 = vunpack.c.l.b16 %v3948
    %v4166 = vunpack.c.l.b16 %v3949
    %v4167 = vunpack.c.h.b16 %v3949
    %v4168 = vunpack.c.l.b16 %v3950
    %v4169 = vunpack.c.l.b16 %v3951
    %v4170 = vunpack.c.h.b16 %v3951
    %v4171 = vunpack.c.l.b16 %v3952
    %v4172 = vunpack.c.l.b16 %v3953
    %v4173 = vunpack.c.h.b16 %v3953
    %v4174 = vunpack.c.l.b16 %v3954
    %v4175 = vunpack.c.l.b16 %v3955
    %v4176 = vunpack.c.h.b16 %v3955
    %v4177 = vunpack.c.l.b16 %v3956
    %v4178 = vunpack.c.l.b16 %v3957
    %v4179 = vunpack.c.h.b16 %v3957
    %v4180 = vunpack.c.l.b16 %v3958
    %v4181 = vunpack.c.l.b16 %v3959
    %v4182 = vunpack.c.h.b16 %v3959
    %v4183 = vunpack.c.l.b16 %v3960
    %v4184 = vunpack.c.l.b16 %v3961
    %v4185 = vunpack.c.h.b16 %v3961
    %v4186 = vunpack.c.l.b16 %v3962
    %v4187 = vunpack.c.l.b16 %v3963
    %v4188 = vunpack.c.h.b16 %v3963
    %v4189 = vunpack.c.l.b16 %v3964
    %v4190 = vunpack.c.l.b16 %v3965
    %v4191 = vunpack.c.h.b16 %v3965
    %v4192 = vunpack.c.l.b16 %v3966
    %v4193 = vunpack.c.l.b16 %v3967
    %v4194 = vunpack.c.h.b16 %v3967
    %v4195 = vunpack.c.l.b16 %v3968
    %v4196 = vunpack.c.l.b16 %v3969
    %v4197 = vunpack.c.h.b16 %v3969
    %v4198 = vunpack.c.l.b16 %v3970
    %v4199 = vunpack.c.l.b16 %v3971
    %v4200 = vunpack.c.h.b16 %v3971
    %v4201 = vunpack.c.l.b16 %v3972
    %v4202 = vunpack.c.l.b16 %v3973
    %v4203 = vunpack.c.h.b16 %v3973
    %v4204 = vunpack.c.l.b16 %v3974
    %v4205 = vunpack.c.l.b16 %v3975
    %v4206 = vunpack.c.h.b16 %v3975
    %v4207 = vunpack.c.l.b16 %v3976
    %v4208 = vunpack.c.l.b16 %v3977
    %v4209 = vunpack.c.h.b16 %v3977
    %v4210 = vunpack.c.l.b16 %v3978
    %v4211 = vunpack.c.l.b16 %v3979
    %v4212 = vunpack.c.h.b16 %v3979
    %v4213 = vunpack.c.l.b16 %v3980
    %v4214 = vunpack.c.l.b16 %v3981
    %v4215 = vunpack.c.h.b16 %v3981
    %v4216 = vunpack.c.l.b16 %v3982
    %v4217 = vunpack.c.l.b16 %v3983
    %v4218 = vunpack.c.h.b16 %v3983
    %v4219 = vunpack.c.l.b16 %v3984
    %v4220 = vunpack.c.l.b16 %v3985
    %v4221 = vunpack.c.h.b16 %v3985
    %v4222 = vunpack.c.l.b16 %v3986
    %v4223 = vunpack.c.l.b16 %v3987
    %v4224 = vunpack.c.h.b16 %v3987
    %v4225 = vunpack.c.l.b16 %v3988
    %v4226 = vunpack.c.l.b16 %v3989
    %v4227 = vunpack.c.h.b16 %v3989
    %v4228 = vunpack.c.l.b16 %v3990
    %v4229 = vunpack.c.l.b16 %v3991
    %v4230 = vunpack.c.h.b16 %v3991
    %v4231 = vunpack.c.l.b16 %v3992
    %v4232 = vunpack.c.l.b16 %v3993
    %v4233 = vunpack.c.h.b16 %v3993
    %v4234 = vunpack.c.l.b16 %v3994
    %v4235 = vunpack.c.l.b16 %v3995
    %v4236 = vunpack.c.h.b16 %v3995
    %v4237 = vunpack.c.l.b16 %v3996
    %v4238 = vunpack.c.l.b16 %v3997
    %v4239 = vunpack.c.h.b16 %v3997
    %v4240 = vunpack.c.l.b16 %v3998
    %v4241 = vunpack.c.l.b16 %v3999
    %v4242 = vunpack.c.h.b16 %v3999
    %v4243 = vunpack.c.l.b16 %v4000
    %v4244 = vunpack.c.l.b16 %v4001
    %v4245 = vunpack.c.h.b16 %v4001
    %v4246 = vunpack.c.l.b16 %v4002
    %v4247 = vunpack.c.l.b16 %v4003
    %v4248 = vunpack.c.h.b16 %v4003
    %v4249 = vunpack.c.l.b16 %v4004
    %v4250 = vunpack.c.l.b16 %v4005
    %v4251 = vunpack.c.h.b16 %v4005
    %v4252 = vunpack.c.l.b16 %v4006
    %v4253 = vunpack.c.l.b16 %v4007
    %v4254 = vunpack.c.h.b16 %v4007
    %v4255 = vunpack.c.l.b16 %v4008
    %v4256 = vunpack.c.l.b16 %v4009
    %v4257 = vunpack.c.h.b16 %v4009
    %v4258 = vunpack.c.l.b16 %v4010
    %v4259 = vunpack.c.l.b16 %v4011
    %v4260 = vunpack.c.h.b16 %v4011
    %v4261 = vunpack.c.l.b16 %v4012
    %v4262 = vunpack.c.l.b16 %v4013
    %v4263 = vunpack.c.h.b16 %v4013
    %v4264 = vunpack.c.l.b16 %v4014
    %v4265 = vunpack.c.l.b16 %v4015
    %v4266 = vunpack.c.h.b16 %v4015
    %v4267 = vunpack.c.l.b16 %v4016
    %v4268 = vunpack.c.l.b16 %v4017
    %v4269 = vunpack.c.h.b16 %v4017
    %v4270 = vunpack.c.l.b16 %v4018
    %v4271 = vunpack.c.l.b16 %v4019
    %v4272 = vunpack.c.h.b16 %v4019
    %v4273 = vunpack.c.l.b16 %v4020
    %v4274 = vunpack.c.l.b16 %v4021
    %v4275 = vunpack.c.h.b16 %v4021
    %v4276 = vunpack.c.l.b16 %v4022
    %v4277 = vunpack.c.l.b16 %v4023
    %v4278 = vunpack.c.h.b16 %v4023
    %v4279 = vunpack.c.l.b16 %v4024
    %v4280 = vunpack.c.l.b16 %v4025
    %v4281 = vunpack.c.h.b16 %v4025
    %v4282 = vunpack.c.l.b16 %v4026
    %v4283 = vunpack.c.l.b16 %v4027
    %v4284 = vunpack.c.h.b16 %v4027
    %v4285 = vunpack.c.l.b16 %v4028
    %v4286 = vunpack.c.l.b16 %v4029
    %v4287 = vunpack.c.h.b16 %v4029
    %v4288 = vunpack.c.l.b16 %v4030
    %v4289 = vunpack.c.l.b16 %v4031
    %v4290 = vunpack.c.h.b16 %v4031
    %v4291 = vunpack.c.l.b16 %v4032
    %v4292 = vunpack.c.l.b16 %v4033
    %v4293 = vunpack.c.h.b16 %v4033
    %v4294 = vunpack.c.l.b16 %v4034
    %v4295 = vpack.c.b16 %v4154, %v4151
    %v4296 = vpack.c.b16 %v4155, %v4152
    %v4297 = vpack.c.b16 %v4156, %v4153
    %v4298 = vpack.c.b16 %v4160, %v4157
    %v4299 = vpack.c.b16 %v4161, %v4158
    %v4300 = vpack.c.b16 %v4162, %v4159
    %v4301 = vpack.c.b16 %v4166, %v4163
    %v4302 = vpack.c.b16 %v4167, %v4164
    %v4303 = vpack.c.b16 %v4168, %v4165
    %v4304 = vpack.c.b16 %v4172, %v4169
    %v4305 = vpack.c.b16 %v4173, %v4170
    %v4306 = vpack.c.b16 %v4174, %v4171
    %v4307 = vpack.c.b16 %v4178, %v4175
    %v4308 = vpack.c.b16 %v4179, %v4176
    %v4309 = vpack.c.b16 %v4180, %v4177
    %v4310 = vpack.c.b16 %v4184, %v4181
    %v4311 = vpack.c.b16 %v4185, %v4182
    %v4312 = vpack.c.b16 %v4186, %v4183
    %v4313 = vpack.c.b16 %v4190, %v4187
    %v4314 = vpack.c.b16 %v4191, %v4188
    %v4315 = vpack.c.b16 %v4192, %v4189
    %v4316 = vpack.c.b16 %v4196, %v4193
    %v4317 = vpack.c.b16 %v4197, %v4194
    %v4318 = vpack.c.b16 %v4198, %v4195
    %v4319 = vpack.c.b16 %v4202, %v4199
    %v4320 = vpack.c.b16 %v4203, %v4200
    %v4321 = vpack.c.b16 %v4204, %v4201
    %v4322 = vpack.c.b16 %v4208, %v4205
    %v4323 = vpack.c.b16 %v4209, %v4206
    %v4324 = vpack.c.b16 %v4210, %v4207
    %v4325 = vpack.c.b16 %v4214, %v4211
    %v4326 = vpack.c.b16 %v4215, %v4212
    %v4327 = vpack.c.b16 %v4216, %v4213
    %v4328 = vpack.c.b16 %v4220, %v4217
    %v4329 = vpack.c.b16 %v4221, %v4218
    %v4330 = vpack.c.b16 %v4222, %v4219
    %v4331 = vpack.c.b16 %v4226, %v4223
    %v4332 = vpack.c.b16 %v4227, %v4224
    %v4333 = vpack.c.b16 %v4228, %v4225
    %v4334 = vpack.c.b16 %v4232, %v4229
    %v4335 = vpack.c.b16 %v4233, %v4230
    %v4336 = vpack.c.b16 %v4234, %v4231
    %v4337 = vpack.c.b16 %v4238, %v4235
    %v4338 = vpack.c.b16 %v4239, %v4236
    %v4339 = vpack.c.b16 %v4240, %v4237
    %v4340 = vpack.c.b16 %v4244, %v4241
    %v4341 = vpack.c.b16 %v4245, %v4242
    %v4342 = vpack.c.b16 %v4246, %v4243
    %v4343 = vpack.c.b16 %v4250, %v4247
    %v4344 = vpack.c.b16 %v4251, %v4248
    %v4345 = vpack.c.b16 %v4252, %v4249
    %v4346 = vpack.c.b16 %v4256, %v4253
    %v4347 = vpack.c.b16 %v4257, %v4254
    %v4348 = vpack.c.b16 %v4258, %v4255
    %v4349 = vpack.c.b16 %v4262, %v4259
    %v4350 = vpack.c.b16 %v4263, %v4260
    %v4351 = vpack.c.b16 %v4264, %v4261
    %v4352 = vpack.c.b16 %v4268, %v4265
    %v4353 = vpack.c.b16 %v4269, %v4266
    %v4354 = vpack.c.b16 %v4270, %v4267
    %v4355 = vpack.c.b16 %v4274, %v4271
    %v4356 = vpack.c.b16 %v4275, %v4272
    %v4357 = vpack.c.b16 %v4276, %v4273
    %v4358 = vpack.c.b16 %v4280, %v4277
    %v4359 = vpack.c.b16 %v4281, %v4278
    %v4360 = vpack.c.b16 %v4282, %v4279
    %v4361 = vpack.c.b16 %v4286, %v4283
    %v4362 = vpack.c.b16 %v4287, %v4284
    %v4363 = vpack.c.b16 %v4288, %v4285
    %v4364 = vpack.c.b16 %v4292, %v4289
    %v4365 = vpack.c.b16 %v4293, %v4290
    %v4366 = vpack.c.b16 %v4294, %v4291
    %4439 = vmatprep.subr.bf16.mxu0 %v4296
    %4440 = vmatpush1.bf16.msra.mxu0 %v4295
    %4441 = vmatprep.subr.bf16.mxu0 %v4299
    %4442 = vmatpush1.bf16.msra.mxu0 %v4298
    %4443 = vmatprep.subr.bf16.mxu0 %v4302
    %4444 = vmatpush1.bf16.msra.mxu0 %v4301
    %4445 = vmatprep.subr.bf16.mxu0 %v4305
    %4446 = vmatpush1.bf16.msra.mxu0 %v4304
    %4447 = vmatprep.subr.bf16.mxu0 %v4308
    %4448 = vmatpush1.bf16.msra.mxu0 %v4307
    %4449 = vmatprep.subr.bf16.mxu0 %v4311
    %4450 = vmatpush1.bf16.msra.mxu0 %v4310
    %4451 = vmatprep.subr.bf16.mxu0 %v4314
    %4452 = vmatpush1.bf16.msra.mxu0 %v4313
    %4453 = vmatprep.subr.bf16.mxu0 %v4317
    %4454 = vmatpush1.bf16.msra.mxu0 %v4316
    %4455 = vmatprep.subr.bf16.mxu0 %v4320
    %4456 = vmatpush1.bf16.msra.mxu0 %v4319
    %4457 = vmatprep.subr.bf16.mxu0 %v4323
    %4458 = vmatpush1.bf16.msra.mxu0 %v4322
    %4459 = vmatprep.subr.bf16.mxu0 %v4326
    %4460 = vmatpush1.bf16.msra.mxu0 %v4325
    %4461 = vmatprep.subr.bf16.mxu0 %v4329
    %4462 = vmatpush1.bf16.msra.mxu0 %v4328
    %4463 = vmatprep.subr.bf16.mxu0 %v4332
    %4464 = vmatpush1.bf16.msra.mxu0 %v4331
    %4465 = vmatprep.subr.bf16.mxu0 %v4335
    %4466 = vmatpush1.bf16.msra.mxu0 %v4334
    %4467 = vmatprep.subr.bf16.mxu0 %v4338
    %4468 = vmatpush1.bf16.msra.mxu0 %v4337
    %4469 = vmatprep.subr.bf16.mxu0 %v4341
    %4470 = vmatpush1.bf16.msra.mxu0 %v4340
    %4471 = vmatprep.mubr.bf16.mxu0 %v4036
    %4472 = vmatmul.mubr.bf16.gmra.mrb[0].mxu0 %v4035
    %v4473 = vpop.f32.mrb[0].mxu0
    %v4474 = vadd.f32 %v4043, %v4473
    %v4475 = vpop.f32.mrb[0].mxu0
    %v4476 = vadd.f32 %v4047, %v4475
    %v4477 = vpop.f32.mrb[0].mxu0
    %v4478 = vpop.f32.mrb[0].mxu0
    %4479 = vdwg.mxu0
    %4480 = vmatprep.subr.bf16.mxu0 %v4344
    %4481 = vmatpush1.bf16.msra.mxu0 %v4343
    %4482 = vmatprep.subr.bf16.mxu0 %v4347
    %4483 = vmatpush1.bf16.msra.mxu0 %v4346
    %4484 = vmatprep.subr.bf16.mxu0 %v4350
    %4485 = vmatpush1.bf16.msra.mxu0 %v4349
    %4486 = vmatprep.subr.bf16.mxu0 %v4353
    %4487 = vmatpush1.bf16.msra.mxu0 %v4352
    %4488 = vmatprep.subr.bf16.mxu0 %v4356
    %4489 = vmatpush1.bf16.msra.mxu0 %v4355
    %4490 = vmatprep.subr.bf16.mxu0 %v4359
    %4491 = vmatpush1.bf16.msra.mxu0 %v4358
    %4492 = vmatprep.subr.bf16.mxu0 %v4362
    %4493 = vmatpush1.bf16.msra.mxu0 %v4361
    %4494 = vmatprep.subr.bf16.mxu0 %v4365
    %4495 = vmatpush1.bf16.msra.mxu0 %v4364
    %4496 = vmatprep.subr.bf16.mxu0 0
    %4497 = vmatpush1.bf16.msra.mxu0 0
    %4498 = vmatprep.subr.bf16.mxu0 0
    %4499 = vmatpush1.bf16.msra.mxu0 0
    %4500 = vmatprep.subr.bf16.mxu0 0
    %4501 = vmatpush1.bf16.msra.mxu0 0
    %4502 = vmatprep.subr.bf16.mxu0 0
    %4503 = vmatpush1.bf16.msra.mxu0 0
    %4504 = vmatprep.subr.bf16.mxu0 0
    %4505 = vmatpush1.bf16.msra.mxu0 0
    %4506 = vmatprep.subr.bf16.mxu0 0
    %4507 = vmatpush1.bf16.msra.mxu0 0
    %4508 = vmatprep.subr.bf16.mxu0 0
    %4509 = vmatpush1.bf16.msra.mxu0 0
    %4510 = vmatprep.subr.bf16.mxu0 0
    %4511 = vmatpush1.bf16.msra.mxu0 0
    %4512 = vmatprep.mubr.bf16.mxu0 0
    %4513 = vmatmul.mubr.bf16.gmra.mrb[0].mxu0 %v4037
    %v4514 = vpop.f32.mrb[0].mxu0
    %v4515 = vadd.f32 %v4474, %v4514
    %v4516 = vpop.f32.mrb[0].mxu0
    %v4517 = vadd.f32 %v4476, %v4516
    %v4518 = vpop.f32.mrb[0].mxu0
    %v4519 = vpop.f32.mrb[0].mxu0
    %4520 = vdwg.mxu0
    %4521 = vmatprep.subr.bf16.mxu0 0
    %4522 = vmatpush1.bf16.msra.mxu0 %v4297
    %4523 = vmatprep.subr.bf16.mxu0 0
    %4524 = vmatpush1.bf16.msra.mxu0 %v4300
    %4525 = vmatprep.subr.bf16.mxu0 0
    %4526 = vmatpush1.bf16.msra.mxu0 %v4303
    %4527 = vmatprep.subr.bf16.mxu0 0
    %4528 = vmatpush1.bf16.msra.mxu0 %v4306
    %4529 = vmatprep.subr.bf16.mxu0 0
    %4530 = vmatpush1.bf16.msra.mxu0 %v4309
    %4531 = vmatprep.subr.bf16.mxu0 0
    %4532 = vmatpush1.bf16.msra.mxu0 %v4312
    %4533 = vmatprep.subr.bf16.mxu0 0
    %4534 = vmatpush1.bf16.msra.mxu0 %v4315
    %4535 = vmatprep.subr.bf16.mxu0 0
    %4536 = vmatpush1.bf16.msra.mxu0 %v4318
    %4537 = vmatprep.subr.bf16.mxu0 0
    %4538 = vmatpush1.bf16.msra.mxu0 %v4321
    %4539 = vmatprep.subr.bf16.mxu0 0
    %4540 = vmatpush1.bf16.msra.mxu0 %v4324
    %4541 = vmatprep.subr.bf16.mxu0 0
    %4542 = vmatpush1.bf16.msra.mxu0 %v4327
    %4543 = vmatprep.subr.bf16.mxu0 0
    %4544 = vmatpush1.bf16.msra.mxu0 %v4330
    %4545 = vmatprep.subr.bf16.mxu0 0
    %4546 = vmatpush1.bf16.msra.mxu0 %v4333
    %4547 = vmatprep.subr.bf16.mxu0 0
    %4548 = vmatpush1.bf16.msra.mxu0 %v4336
    %4549 = vmatprep.subr.bf16.mxu0 0
    %4550 = vmatpush1.bf16.msra.mxu0 %v4339
    %4551 = vmatprep.subr.bf16.mxu0 0
    %4552 = vmatpush1.bf16.msra.mxu0 %v4342
    %4553 = vmatprep.mubr.bf16.mxu0 %v4036
    %4554 = vmatmul.mubr.bf16.gmra.mrb[0].mxu0 %v4035
    %v4555 = vpop.f32.mrb[0].mxu0
    %v4556 = vadd.f32 %v4051, %v4555
    %v4557 = vpop.f32.mrb[0].mxu0
    %v4558 = vpop.f32.mrb[0].mxu0
    %v4559 = vpop.f32.mrb[0].mxu0
    %4560 = vdwg.mxu0
    %4561 = vmatprep.subr.bf16.mxu0 0
    %4562 = vmatpush1.bf16.msra.mxu0 %v4345
    %4563 = vmatprep.subr.bf16.mxu0 0
    %4564 = vmatpush1.bf16.msra.mxu0 %v4348
    %4565 = vmatprep.subr.bf16.mxu0 0
    %4566 = vmatpush1.bf16.msra.mxu0 %v4351
    %4567 = vmatprep.subr.bf16.mxu0 0
    %4568 = vmatpush1.bf16.msra.mxu0 %v4354
    %4569 = vmatprep.subr.bf16.mxu0 0
    %4570 = vmatpush1.bf16.msra.mxu0 %v4357
    %4571 = vmatprep.subr.bf16.mxu0 0
    %4572 = vmatpush1.bf16.msra.mxu0 %v4360
    %4573 = vmatprep.subr.bf16.mxu0 0
    %4574 = vmatpush1.bf16.msra.mxu0 %v4363
    %4575 = vmatprep.subr.bf16.mxu0 0
    %4576 = vmatpush1.bf16.msra.mxu0 %v4366
    %4577 = vmatprep.subr.bf16.mxu0 0
    %4578 = vmatpush1.bf16.msra.mxu0 0
    %4579 = vmatprep.subr.bf16.mxu0 0
    %4580 = vmatpush1.bf16.msra.mxu0 0
    %4581 = vmatprep.subr.bf16.mxu0 0
    %4582 = vmatpush1.bf16.msra.mxu0 0
    %4583 = vmatprep.subr.bf16.mxu0 0
    %4584 = vmatpush1.bf16.msra.mxu0 0
    %4585 = vmatprep.subr.bf16.mxu0 0
    %4586 = vmatpush1.bf16.msra.mxu0 0
    %4587 = vmatprep.subr.bf16.mxu0 0
    %4588 = vmatpush1.bf16.msra.mxu0 0
    %4589 = vmatprep.subr.bf16.mxu0 0
    %4590 = vmatpush1.bf16.msra.mxu0 0
    %4591 = vmatprep.subr.bf16.mxu0 0
    %4592 = vmatpush1.bf16.msra.mxu0 0
    %4593 = vmatprep.mubr.bf16.mxu0 0
    %4594 = vmatmul.mubr.bf16.gmra.mrb[0].mxu0 %v4037
    %v4595 = vpop.f32.mrb[0].mxu0
    %v4596 = vadd.f32 %v4556, %v4595
    %v4597 = vpop.f32.mrb[0].mxu0
    %v4598 = vpop.f32.mrb[0].mxu0
    %v4599 = vpop.f32.mrb[0].mxu0
    %4600 = vdwg.mxu0
    %v4601 = vlaneseq
    %v4602 = vand.u32 %v4601, 127
    %v4603 = vadd.s32 %v4602, 128
    %v4604 = vadd.s32 %v4602, 256
    %vm4605 = vcmp.ge.s32.totalorder %v4602, 64
    %vm4606 = vcmp.ge.s32.totalorder %v4603, 64
    %vm4607 = vcmp.ge.s32.totalorder %v4604, 64
    %vm4608 = vcmp.lt.s32.totalorder %v4602, 192
    %vm4609 = vcmp.lt.s32.totalorder %v4603, 192
    %vm4610 = vcmp.lt.s32.totalorder %v4604, 192
    %vm4611 = vmand %vm4605, %vm4608
    %vm4612 = vmand %vm4606, %vm4609
    %vm4613 = vmand %vm4607, %vm4610
    %vm4614 = vcmp.ge.s32.totalorder %v4602, 256
    %vm4615 = vcmp.ge.s32.totalorder %v4603, 256
    %vm4616 = vcmp.ge.s32.totalorder %v4604, 256
    %vm4617 = vmor %vm4611, %vm4614
    %vm4618 = vmor %vm4612, %vm4615
    %vm4619 = vmor %vm4613, %vm4616
    %v4620 = vmax.f32 %v4515, 0.0
    %v4621 = vmax.f32 %v4517, 0.0
    %v4622 = vmax.f32 %v4596, 0.0
    %v4623 = vsel %vm4617, %v4620, %v4515
    %v4624 = vsel %vm4618, %v4621, %v4517
    %v4625 = vsel %vm4619, %v4622, %v4596
    %v4627 = vsel %vm3394, %v633, 0
    %v4629 = vsel %vm3394, %v3323, 0
    %4631 = vmatprep.subr.mxu0 0.0
    %4632 = vmatpush1.xpose.msra.mxu0 %v4629
    %4633 = vmatprep.subr.mxu0 0.0
    %4634 = vmatpush1.xpose.msra.mxu0 0.0
    %4635 = vmatprep.subr.mxu0 0.0
    %4636 = vmatpush1.xpose.msra.mxu0 0.0
    %4637 = vmatprep.subr.mxu0 0.0
    %4638 = vmatpush1.xpose.msra.mxu0 0.0
    %4639 = vmatprep.subr.mxu0 0.0
    %4640 = vmatpush1.xpose.msra.mxu0 0.0
    %4641 = vmatprep.subr.mxu0 0.0
    %4642 = vmatpush1.xpose.msra.mxu0 0.0
    %4643 = vmatprep.subr.mxu0 0.0
    %4644 = vmatpush1.xpose.msra.mxu0 0.0
    %4645 = vmatprep.subr.mxu0 0.0
    %4646 = vmatpush1.xpose.msra.mxu0 0.0
    %4647 = vmatprep.subr.mxu0 0.0
    %4648 = vmatpush1.xpose.msra.mxu0 0.0
    %4649 = vmatprep.subr.mxu0 0.0
    %4650 = vmatpush1.xpose.msra.mxu0 0.0
    %4651 = vmatprep.subr.mxu0 0.0
    %4652 = vmatpush1.xpose.msra.mxu0 0.0
    %4653 = vmatprep.subr.mxu0 0.0
    %4654 = vmatpush1.xpose.msra.mxu0 0.0
    %4655 = vmatprep.subr.mxu0 0.0
    %4656 = vmatpush1.xpose.msra.mxu0 0.0
    %4657 = vmatprep.subr.mxu0 0.0
    %4658 = vmatpush1.xpose.msra.mxu0 0.0
    %4659 = vmatprep.subr.mxu0 0.0
    %4660 = vmatpush1.xpose.msra.mxu0 0.0
    %4661 = vmatprep.subr.mxu0 0.0
    %4662 = vmatpush1.xpose.msra.mxu0 0.0
    %4663 = vmatprep.subr.mxu0 0.0
    %4664 = vmatpush1.xpose.msra.mxu0 0.0
    %4665 = vmatprep.subr.mxu0 0.0
    %4666 = vmatpush1.xpose.msra.mxu0 0.0
    %4667 = vmatprep.subr.mxu0 0.0
    %4668 = vmatpush1.xpose.msra.mxu0 0.0
    %4669 = vmatprep.subr.mxu0 0.0
    %4670 = vmatpush1.xpose.msra.mxu0 0.0
    %4671 = vmatprep.subr.mxu0 0.0
    %4672 = vmatpush1.xpose.msra.mxu0 0.0
    %4673 = vmatprep.subr.mxu0 0.0
    %4674 = vmatpush1.xpose.msra.mxu0 0.0
    %4675 = vmatprep.subr.mxu0 0.0
    %4676 = vmatpush1.xpose.msra.mxu0 0.0
    %4677 = vmatprep.subr.mxu0 0.0
    %4678 = vmatpush1.xpose.msra.mxu0 0.0
    %4679 = vmatprep.subr.mxu0 0.0
    %4680 = vmatpush1.xpose.msra.mxu0 0.0
    %4681 = vmatprep.subr.mxu0 0.0
    %4682 = vmatpush1.xpose.msra.mxu0 0.0
    %4683 = vmatprep.subr.mxu0 0.0
    %4684 = vmatpush1.xpose.msra.mxu0 0.0
    %4685 = vmatprep.subr.mxu0 0.0
    %4686 = vmatpush1.xpose.msra.mxu0 0.0
    %4687 = vmatprep.subr.mxu0 0.0
    %4688 = vmatpush1.xpose.msra.mxu0 0.0
    %4689 = vmatprep.subr.mxu0 0.0
    %4690 = vmatpush1.xpose.msra.mxu0 0.0
    %4691 = vmatprep.subr.mxu0 0.0
    %4692 = vmatpush1.xpose.msra.mxu0 0.0
    %4693 = vmatprep.subr.mxu0 0.0
    %4694 = vmatpush1.xpose.msra.mxu0 0.0
    %4695 = vmatprep.mubr.f32.mxu0 0.0
    %4696 = vmatmul.mubr.f32.gmra.mrb[0].mxu0 %v4627
    %v4697 = vpop.f32.mrb[0].mxu0
    %v4698 = vadd.f32 0.0, %v4697
    %v4699 = vpop.f32.mrb[0].mxu0
    %4700 = vdwg.mxu0
    %v4701 = vld [vmem:[%s2] sm:$0x3]
    %v4702 = vld [vmem:[%s3] sm:$0x1]
    %4704 = vset.pattern.permute.xlu0 0
    %4705 = vperm.xlu0 %4704, %v4701
    %v4706 = vpop.permute.xlu0 %4705
    %v4709 = vlaneseq
    %v4710 = vshrl.u32 %v4709, 7
    %v4711 = vsub.s32 0, %v4710
    %v4712 = vrot.slane %v4702, %v4711
    %v4714 = vsub.f32 %v4706, %v4712
    %vm4715 = vcmp.ne.f32.partialorder %v4714, 0.0
    %v4716 = vsel %vm4715, 1, 0
    %v4717 = vcvt.s32.f32 %v4716
    %v4718 = vmul.f32 %v4698, 10.0
    %vm4719 = vcmask 9216
    %v4720 = vsel %vm4719, %v4718, -inf
    %4721 = vmax.xlane.f32.xlu0 %v4720
    %v4722 = vpop.xlane.xlu0 %4721
    %v4723 = vsub.f32 %v4718, %v4722
    %v4724 = vmul.f32 %v4723, 1.442695
    %v4725 = vpow.pop %v4724
    %v4726 = vsel %vm4719, %v4725, 0.0
    %4727 = vadd.xlane.f32.xlu0 %v4726
    %v4728 = vpop.xlane.xlu0 %4727
    %v4729 = vrcp.pop %v4728
    %v4730 = vmul.f32 %v4725, %v4729
    %v4731 = vlog2.pop %v4728
    %v4732 = vmul.f32 %v4731, 0.6931472
    %v4733 = vsub.f32 %v4723, %v4732
    %v4734 = vsub.f32 0.0, %v4733
    %v4735 = vsub.f32 1.0, %v4717
    %v4736 = vmul.f32 %v4734, %v4735
    %v4737 = vsub.f32 1.0, %v4730
    %v4738 = vadd.f32 %v4737, 1e-09
    %v4739 = vlog2.pop %v4738
    %v4740 = vmul.f32 %v4739, 0.6931472
    %v4741 = vsub.f32 0.0, %v4740
    %v4742 = vmul.f32 %v4741, %v4717
    %v4743 = vsel %vm4719, %v4735, 0.0
    %4744 = vadd.xlane.f32.xlu0 %v4743
    %v4745 = vpop.xlane.xlu0 %4744
    %v4746 = vsel %vm4719, %v4736, 0.0
    %4747 = vadd.xlane.f32.xlu0 %v4746
    %v4748 = vpop.xlane.xlu0 %4747
    %v4749 = vsel %vm4719, %v4742, 0.0
    %4750 = vadd.xlane.f32.xlu0 %v4749
    %v4751 = vpop.xlane.xlu0 %4750
    %v4752 = vadd.f32 %v4748, %v4751
    %v4753 = vrcp.pop %v4745
    %v4754 = vmul.f32 %v4752, %v4753
    %v4755 = vmax.f32 %v3383, 0.0
    %v4756 = vmul.f32 %v3383, %v4701
    %v4757 = vsub.f32 %v4755, %v4756
    %v4758 = vand.u32 2147483647, %v3383
    %v4759 = vsub.f32 0.0, %v4758
    %v4760 = vmul.f32 %v4759, 1.442695
    %v4761 = vpow.pop %v4760
    %v4762 = vadd.f32 %v4761, 1.0
    %v4763 = vlog2.pop %v4762
    %v4764 = vmul.f32 %v4763, 0.6931472
    %v4765 = vmul.f32 -0.5, %v4761
    %v4766 = vadd.f32 %v4765, 1.0
    %v4767 = vmul.f32 %v4766, %v4761
    %v4768 = vand.u32 2147483647, %v4761
    %vm4769 = vcmp.lt.f32.partialorder %v4768, 0.0004427343
    %v4770 = vsel %vm4769, %v4767, %v4764
    %v4771 = vadd.f32 %v4757, %v4770
    %4772 = vst.msk [vmem:[#allocation3] sm:$0x3] %vm627, %v633
    %v4774 = vunpack.c.l.s4 1983009808
    %v4775 = vunpack.c.0.s8 %v4774
    %v4776 = vlaneseq
    %v4777 = vshrl.u32 %v4776, 7
    %v4778 = vsub.s32 %v4775, %v4777
    %v4779 = vrot.slane %v3323, %v4778
    %4780 = vrot.lane.b32.xlu0 %v4779, 64
    %v4781 = vpop.permute.xlu0 %4780
    %vm4783 = vcmask 1041920
    %4784 = vst.msk [vmem:[#allocation3] sm:$0x3] %vm4783, %v4781
    %v4788 = vcombine.low %v4623, %v4624
    %v4790 = vunpack.c.l.s4 1983009808
    %v4791 = vunpack.c.0.s8 %v4790
    %v4792 = vlaneseq
    %v4793 = vshrl.u32 %v4792, 7
    %v4794 = vsub.s32 %v4791, %v4793
    %v4795 = vrot.slane %v4788, %v4794
    %v4797 = vunpack.c.l.s4 1983009808
    %v4798 = vunpack.c.0.s8 %v4797
    %v4799 = vlaneseq
    %v4800 = vshrl.u32 %v4799, 7
    %v4801 = vsub.s32 %v4798, %v4800
    %v4802 = vrot.slane %v4625, %v4801
    %v4803 = vcombine.low %v4795, %v4802
    %4805 = vst [vmem:[#allocation3 + $0x2] sm:$0x3f] %v4803
    %vm4806 = vcmp.eq.s32.totalorder %v4602, 0
    %4808 = vset.pattern.permute.xlu0 0
    %4809 = vperm.xlu0 %4808, %v3383
    %v4810 = vpop.permute.xlu0 %4809
    %v4812 = vsel %vm4806, %v4810, 0.0
    %vm4813 = vcmp.eq.s32.totalorder %v4602, 1
    %4815 = vset.pattern.permute.xlu0 0
    %4816 = vperm.xlu0 %4815, %v3389
    %v4817 = vpop.permute.xlu0 %4816
    %v4819 = vsel %vm4813, %v4817, 0.0
    %v4820 = vadd.f32 %v4812, %v4819
    %vm4821 = vcmp.eq.s32.totalorder %v4602, 2
    %4823 = vset.pattern.permute.xlu0 0
    %4824 = vperm.xlu0 %4823, %v4771
    %v4825 = vpop.permute.xlu0 %4824
    %v4827 = vsel %vm4821, %v4825, 0.0
    %v4828 = vadd.f32 %v4820, %v4827
    %vm4829 = vcmp.eq.s32.totalorder %v4602, 3
    %v4830 = vsel %vm4829, %v4754, 0.0
    %v4831 = vadd.f32 %v4828, %v4830
    %4832 = vst [vmem:[#allocation5] sm:$0x3] %v4831
    // Predicated region
    $region82: #{tpu_custom_call.1} parent=1 // pred_check
      _
    $region83: #{tpu_custom_call.1} parent=1 // pred_check_branch
      %4834 = sbr.rel (0) target = $region85
    $region84: #{tpu_custom_call.1} parent=1 // pred_region
      %s4836 = ssub.s32 128, 128
      %4837 = vsyncadd [#allocation4], %s4836
      %s4839 = sshll.u32 [#allocation3], 4
      %s4840 = int_to_ptr.vmem [resolvable:$true] %s4839
      %4842 = dma.vmem_to_hbm [thread:$0]  %s4840, 128, %s20, [#allocation4]
    $region85: #{tpu_custom_call.1} parent=1 // pred_fallthru
      _
    // Predicated region
    $region86: #{tpu_custom_call.1} parent=1 // pred_check
      _
    $region87: #{tpu_custom_call.1} parent=1 // pred_check_branch
      %4844 = sbr.rel (0) target = $region89
    $region88: #{tpu_custom_call.1} parent=1 // pred_region
      %s4846 = ssub.s32 32, 32
      %4847 = vsyncadd [#allocation6], %s4846
      %s4849 = sshll.u32 [#allocation5], 4
      %s4850 = int_to_ptr.vmem [resolvable:$true] %s4849
      %4852 = dma.vmem_to_hbm [thread:$0]  %s4850, 32, %s21, [#allocation6]
    $region89: #{tpu_custom_call.1} parent=1 // pred_fallthru
      _
    // Predicated region
    $region90: #{tpu_custom_call.1} parent=1 // pred_check
      _
    $region91: #{tpu_custom_call.1} parent=1 // pred_check_branch
      %4854 = sbr.rel (0) target = $region93
    $region92: #{tpu_custom_call.1} parent=1 // pred_region
      %4855 = dma.done [#allocation4], 128
    $region93: #{tpu_custom_call.1} parent=1 // pred_fallthru
      _
    // Predicated region
    $region94: #{tpu_custom_call.1} parent=1 // pred_check
      _
    $region95: #{tpu_custom_call.1} parent=1 // pred_check_branch
      %4857 = sbr.rel (0) target = $region97
    $region96: #{tpu_custom_call.1} parent=1 // pred_region
      %4858 = dma.done [#allocation6], 32
    $region97: #{tpu_custom_call.1} parent=1 // pred_fallthru
      _
    %4859 = vsyncpa [#allocation4], 1
    %4860 = vsyncpa [#allocation6], 1

</llo_original>
